<compile_context>
chip_gen: v6e
topology: v6e:2x2x1
jax: 0.10.0
libtpu: 0.0.40
codegen_flags: <defaults>
</compile_context>

<pallas_src>
import jax
import jax.numpy as jnp
from jax.experimental import pallas as pl
from jax.experimental.pallas import tpu as pltpu

# Model hyper-parameters implied by AADP
B = 2          # batch
C = 8          # conv channels (in == out)
D = 3          # depth axis (reduced by imp_score_senti)
H = 16         # conv height, consumed by the three convs
W = 768        # feature width fed to linear1
K1, K2, K3 = 9, 5, 4
FV = 16        # v_senti feature size (144 - 128)
NL = 128       # linear3 output width

# Flattened row counts
NBD = B * D * C            # 48 trunk rows, ordered (b, d, c)
NBC = B * C * D            # 48 v_senti rows, ordered (b, c, d)  (== NBD here)

# Packed-operand layouts (static offsets shared by host packer and kernel)
PF_ROWS, PF_COLS = 8 + NBD, 512          # f32 pack: biases, mixing, conv bias
PW_W4A, PW_W4B, PW_W5, PW_W6 = 0, 128, 144, 272
PW_ROWS, PW_COLS = 280, 128              # bf16 pack: w4a, w4b, w5(pad), w6 row


def aadp_kernel(x_ref, v_ref, wc_ref, w1_ref, w2_ref, w3_ref, pf_ref, pw_ref,
                out_ref):
    f32 = jnp.float32
    bf16 = jnp.bfloat16

    # ---- packed small operands: static slices of the two VMEM packs --------
    b_col = pf_ref[8:8 + NBD, 0:1]        # (48, 1)  conv bias per (b,d,c) row
    b1 = pf_ref[0:1, :]                   # (1, 512)
    b2 = pf_ref[1:2, 0:256]               # (1, 256)
    b3 = pf_ref[1:2, 256:384]             # (1, 128)
    b4 = pf_ref[1:2, 384:512]             # (1, 128)
    b5 = pf_ref[2:3, 0:128]               # (1, 128)  cols 16: are zero padding
    b6 = pf_ref[2:3, 128:129]             # (1, 1)
    mix_l = pf_ref[3:5, 0:NBD]            # (B, B*D*C) block-diag importance mix
    mix_v = pf_ref[5:7, 0:NBC]            # (B, B*C*D)
    w4a = pw_ref[PW_W4A:PW_W4A + NL, :]   # (128, 128) bf16
    w4b = pw_ref[PW_W4B:PW_W4B + FV, :]   # (16, 128)  bf16
    w5p = pw_ref[PW_W5:PW_W5 + NL, :]     # (128, 128) bf16 (cols 16: zero)
    w6r = pw_ref[PW_W6:PW_W6 + 1, :]      # (1, 128)   bf16 (cols 16: zero)

    # ---- collapsed conv1/2/3 stack: one (48,768)@(768,768) MXU matmul ------
    xb = x_ref[...].astype(bf16)                               # (B*C*D*H, W)
    c3 = jnp.dot(wc_ref[...], xb, preferred_element_type=f32) + b_col

    # ---- dense trunk, rows ordered (b, d, c); dropout1 == identity (eval) --
    l = jnp.maximum(jnp.dot(c3.astype(bf16), w1_ref[...],
                            preferred_element_type=f32) + b1, 0.0)
    l = jnp.maximum(jnp.dot(l.astype(bf16), w2_ref[...],
                            preferred_element_type=f32) + b2, 0.0)
    l3 = jnp.maximum(jnp.dot(l.astype(bf16), w3_ref[...],
                             preferred_element_type=f32) + b3, 0.0)

    # ---- importance mixing (softmax over d, then over c), block-diagonal
    #      over the flattened batch ------------------------------------------
    e_l = jnp.dot(mix_l, l3, preferred_element_type=f32)          # (B, 128)
    e_v = jnp.dot(mix_v, v_ref[...], preferred_element_type=f32)  # (B, 16)

    # ---- head: linear4 -> relu -> linear5 -> relu -> last_dense -> sigmoid -
    h = jnp.maximum(
        jnp.dot(e_l.astype(bf16), w4a, preferred_element_type=f32)
        + jnp.dot(e_v.astype(bf16), w4b, preferred_element_type=f32)
        + b4, 0.0)                                                 # (B, 128)
    h = jnp.maximum(
        jnp.dot(h.astype(bf16), w5p, preferred_element_type=f32) + b5, 0.0)
    logit = jnp.sum(h * w6r.astype(f32), axis=-1, keepdims=True) + b6
    out_ref[...] = jax.nn.sigmoid(logit)                           # (B, 1)


def aadp_pallas(ids, v_senti, p):
    bq, cq, dq, hq, wq = ids.shape
    fv = v_senti.shape[-1]
    f32, bf16 = jnp.float32, jnp.bfloat16

    # ---- compose the three activation-free convs into one affine map -------
    def band(w5d, h_in):
        w3 = w5d[:, :, 0, :, 0]                       # (O, Ci, K)
        o_dim, ci_dim, k_dim = w3.shape
        h_out = h_in - k_dim + 1
        a = jnp.zeros((h_out * o_dim, h_in * ci_dim), f32)
        for ho in range(h_out):
            for kk in range(k_dim):
                a = a.at[ho * o_dim:(ho + 1) * o_dim,
                         (ho + kk) * ci_dim:(ho + kk + 1) * ci_dim].set(w3[:, :, kk])
        return a, h_out

    a1, h1 = band(p["conv1_w"], hq)                  # (h1*C, H*C)
    a2, h2 = band(p["conv2_w"], h1)                  # (h2*C, h1*C)
    a3, _ = band(p["conv3_w"], h2)                   # (C,    h2*C)
    w_eff = a3 @ (a2 @ a1)                           # (C, H*C), cols (h, c_in)
    b_eff = (a3 @ (a2 @ jnp.tile(p["conv1_b"], h1))
             + a3 @ jnp.tile(p["conv2_b"], h2)
             + p["conv3_b"])                         # (C,)

    # Re-order composed-conv columns to (c_in, h) and expand block-diagonally
    # over (batch, depth): rows (b, d, c_out), cols (b', c_in, d', h).  This
    # lets the kernel consume ids.reshape(B*C*D*H, W) with NO transpose.
    w_eff3 = w_eff.reshape(cq, hq, cq).transpose(0, 2, 1)     # [c_out, c_in, h]
    w_full = jnp.einsum('oih,bp,dq->bdopiqh', w_eff3,
                        jnp.eye(bq, dtype=f32), jnp.eye(dq, dtype=f32))
    w_full = w_full.reshape(NBD, bq * cq * dq * hq)           # (48, 768)
    b_col = jnp.tile(b_eff, bq * dq)                          # (48,), (b,d,c)

    # ---- inputs: pure reshapes only (free views, no extra HBM passes) ------
    x2 = ids.reshape(bq * cq * dq * hq, wq)          # rows ordered (b, c, d, h)
    v2 = v_senti.reshape(NBC, fv)                    # rows ordered (b, c, d)

    # ---- importance mixing rows (block-diagonal over batch) ----------------
    ip = jax.nn.softmax(p["imp_score"], axis=0)[:, 0]          # (C,)
    ips = jax.nn.softmax(p["imp_score_senti"], axis=0)[:, 0]   # (D,)
    mix_l = jnp.kron(jnp.eye(bq, dtype=f32),
                     (ips[:, None] * ip[None, :]).reshape(1, dq * cq))
    mix_v = jnp.kron(jnp.eye(bq, dtype=f32),
                     (ip[:, None] * ips[None, :]).reshape(1, cq * dq))

    # ---- pack the small f32 operands into one buffer -----------------------
    pf = jnp.zeros((PF_ROWS, PF_COLS), f32)
    pf = pf.at[0, 0:512].set(p["lin1_b"])
    pf = pf.at[1, 0:256].set(p["lin2_b"])
    pf = pf.at[1, 256:384].set(p["lin3_b"])
    pf = pf.at[1, 384:512].set(p["lin4_b"])
    pf = pf.at[2, 0:16].set(p["lin5_b"])
    pf = pf.at[2, 128].set(p["lin6_b"][0])
    pf = pf.at[3:5, 0:NBD].set(mix_l)
    pf = pf.at[5:7, 0:NBC].set(mix_v)
    pf = pf.at[8:8 + NBD, 0].set(b_col)

    # ---- pack the small bf16 matmul weights into one buffer ----------------
    pw = jnp.zeros((PW_ROWS, PW_COLS), f32)
    pw = pw.at[PW_W4A:PW_W4A + NL, :].set(p["lin4_w"][:, :NL].T)   # (128,128)
    pw = pw.at[PW_W4B:PW_W4B + FV, :].set(p["lin4_w"][:, NL:].T)   # (16,128)
    pw = pw.at[PW_W5:PW_W5 + NL, 0:FV].set(p["lin5_w"].T)          # (128,16)
    pw = pw.at[PW_W6, 0:FV].set(p["lin6_w"][0])                    # (16,)
    pw = pw.astype(bf16)

    # bf16 for the big MXU weight operands (f32 accumulation in the kernel).
    wcb = w_full.astype(bf16)
    w1b = p["lin1_w"].T.astype(bf16)                 # (768, 512)
    w2b = p["lin2_w"].T.astype(bf16)                 # (512, 256)
    w3b = p["lin3_w"].T.astype(bf16)                 # (256, 128)

    # Single invocation, no grid: every operand is staged whole into VMEM
    # (total footprint ~5 MB), the batch is flattened to M = B*D*C = 48 rows,
    # and there is exactly one DMA per input (8 inputs total).
    out = pl.pallas_call(
        aadp_kernel,
        out_shape=jax.ShapeDtypeStruct((bq, 1), jnp.float32),
        compiler_params=pltpu.CompilerParams(
            vmem_limit_bytes=16 * 1024 * 1024),
    )(x2, v2, wcb, w1b, w2b, w3b, pf, pw)

    return out, jax.nn.softmax(p["imp_score"], axis=0)[None]   # (B,1), (1,8,1)


def aadp_reference(ids, v_senti, p):
    """Pure-JAX reference matching the PyTorch forward (eval mode)."""
    x = ids
    for wk, bk in (("conv1_w", "conv1_b"), ("conv2_w", "conv2_b"), ("conv3_w", "conv3_b")):
        w = p[wk][:, :, 0, :, 0]                               # (O, Cin, K)
        k = w.shape[-1]
        h_in = x.shape[3]
        outs = [jnp.einsum('bcdkw,ock->bodw', x[:, :, :, h:h + k, :], w)
                for h in range(h_in - k + 1)]
        x = jnp.stack(outs, axis=3) + p[bk][None, :, None, None, None]
    x = x[:, :, :, 0, :]                                       # squeeze(3)

    def lin(t, wn, bn):
        return jnp.einsum('...i,oi->...o', t, p[wn]) + p[bn]

    l = jax.nn.relu(lin(x, "lin1_w", "lin1_b"))
    l = jax.nn.relu(lin(l, "lin2_w", "lin2_b"))
    l = jax.nn.relu(lin(l, "lin3_w", "lin3_b"))
    aspect = jnp.concatenate([l, v_senti], axis=3)             # (B, 8, 3, 144)
    ips = jax.nn.softmax(p["imp_score_senti"], axis=0)[:, 0]
    asp = jnp.einsum('bcdf,d->bcf', aspect, ips)
    ip = jax.nn.softmax(p["imp_score"], axis=0)[:, 0]
    e = jnp.einsum('bcf,c->bf', asp, ip)
    l = jax.nn.relu(lin(e, "lin4_w", "lin4_b"))
    l = jax.nn.relu(lin(l, "lin5_w", "lin5_b"))
    out = jax.nn.sigmoid(lin(l, "lin6_w", "lin6_b"))
    return out, jax.nn.softmax(p["imp_score"], axis=0)[None]


def init_params(key):
    ks = jax.random.split(key, 24)

    def nrm(k, shape, fan_in):
        return (jax.random.normal(k, shape, jnp.float32) / jnp.sqrt(float(fan_in)))

    p = {}
    p["conv1_w"] = nrm(ks[0], (C, C, 1, K1, 1), C * K1)
    p["conv1_b"] = nrm(ks[1], (C,), C * K1)
    p["conv2_w"] = nrm(ks[2], (C, C, 1, K2, 1), C * K2)
    p["conv2_b"] = nrm(ks[3], (C,), C * K2)
    p["conv3_w"] = nrm(ks[4], (C, C, 1, K3, 1), C * K3)
    p["conv3_b"] = nrm(ks[5], (C,), C * K3)
    p["lin1_w"] = nrm(ks[6], (512, 768), 768)
    p["lin1_b"] = nrm(ks[7], (512,), 768)
    p["lin2_w"] = nrm(ks[8], (256, 512), 512)
    p["lin2_b"] = nrm(ks[9], (256,), 512)
    p["lin3_w"] = nrm(ks[10], (128, 256), 256)
    p["lin3_b"] = nrm(ks[11], (128,), 256)
    p["lin4_w"] = nrm(ks[12], (128, 144), 144)
    p["lin4_b"] = nrm(ks[13], (128,), 144)
    p["lin5_w"] = nrm(ks[14], (16, 128), 128)
    p["lin5_b"] = nrm(ks[15], (16,), 128)
    p["lin6_w"] = nrm(ks[16], (1, 16), 16)
    p["lin6_b"] = nrm(ks[17], (1,), 16)
    p["imp_score"] = jax.random.normal(ks[18], (8, 1), jnp.float32) * 0.5
    p["imp_score_senti"] = jax.random.normal(ks[19], (3, 1), jnp.float32) * 0.5
    return p


if __name__ == "__main__":
    key = jax.random.PRNGKey(0)
    k_ids, k_v, k_p = jax.random.split(key, 3)
    ids = jax.random.normal(k_ids, (B, C, D, H, W), jnp.float32)
    v_senti = jax.random.normal(k_v, (B, C, D, FV), jnp.float32)
    params = init_params(k_p)

    fwd = jax.jit(aadp_pallas)
    out, i_p = fwd(ids, v_senti, params)
    jax.block_until_ready(out)

    ref_out, ref_ip = aadp_reference(ids, v_senti, params)
    assert out.shape == (B, 1) and i_p.shape == (1, C, 1)
    assert jnp.allclose(out, ref_out, atol=2e-2, rtol=2e-2)
    assert jnp.allclose(i_p, ref_ip, atol=1e-5)
    print("KERNEL_OK")
</pallas_src>

<mosaic_0001>
module attributes {stable_mosaic.version = 11 : i64} {
  func.func @aadp_kernel(%arg0: memref<768x768xf32, #tpu.memory_space<vmem>>, %arg1: memref<48x16xf32, #tpu.memory_space<vmem>>, %arg2: memref<48x768xbf16, #tpu.memory_space<vmem>>, %arg3: memref<768x512xbf16, #tpu.memory_space<vmem>>, %arg4: memref<512x256xbf16, #tpu.memory_space<vmem>>, %arg5: memref<256x128xbf16, #tpu.memory_space<vmem>>, %arg6: memref<56x512xf32, #tpu.memory_space<vmem>>, %arg7: memref<280x128xbf16, #tpu.memory_space<vmem>>, %arg8: memref<2x1xf32, #tpu.memory_space<vmem>>) attributes {dimension_semantics = [], scalar_prefetch = 0 : i64, scratch_operands = 0 : i64, tpu.core_type = #tpu.core_type<tc>} {
    %c8 = arith.constant 8 : index
    %c0 = arith.constant 0 : index
    %0 = vector.load %arg6[%c8, %c0] : memref<56x512xf32, #tpu.memory_space<vmem>>, vector<48x1xf32>
    %c0_0 = arith.constant 0 : index
    %c0_1 = arith.constant 0 : index
    %1 = vector.load %arg6[%c0_0, %c0_1] : memref<56x512xf32, #tpu.memory_space<vmem>>, vector<1x512xf32>
    %c1 = arith.constant 1 : index
    %c0_2 = arith.constant 0 : index
    %2 = vector.load %arg6[%c1, %c0_2] : memref<56x512xf32, #tpu.memory_space<vmem>>, vector<1x256xf32>
    %c1_3 = arith.constant 1 : index
    %c256 = arith.constant 256 : index
    %3 = vector.load %arg6[%c1_3, %c256] : memref<56x512xf32, #tpu.memory_space<vmem>>, vector<1x128xf32>
    %c1_4 = arith.constant 1 : index
    %c384 = arith.constant 384 : index
    %4 = vector.load %arg6[%c1_4, %c384] : memref<56x512xf32, #tpu.memory_space<vmem>>, vector<1x128xf32>
    %c2 = arith.constant 2 : index
    %c0_5 = arith.constant 0 : index
    %5 = vector.load %arg6[%c2, %c0_5] : memref<56x512xf32, #tpu.memory_space<vmem>>, vector<1x128xf32>
    %c2_6 = arith.constant 2 : index
    %c128 = arith.constant 128 : index
    %6 = vector.load %arg6[%c2_6, %c128] : memref<56x512xf32, #tpu.memory_space<vmem>>, vector<1x1xf32>
    %c3 = arith.constant 3 : index
    %c0_7 = arith.constant 0 : index
    %7 = vector.load %arg6[%c3, %c0_7] : memref<56x512xf32, #tpu.memory_space<vmem>>, vector<2x48xf32>
    %c5 = arith.constant 5 : index
    %c0_8 = arith.constant 0 : index
    %8 = vector.load %arg6[%c5, %c0_8] : memref<56x512xf32, #tpu.memory_space<vmem>>, vector<2x48xf32>
    %c0_9 = arith.constant 0 : index
    %c0_10 = arith.constant 0 : index
    %9 = vector.load %arg7[%c0_9, %c0_10] : memref<280x128xbf16, #tpu.memory_space<vmem>>, vector<128x128xbf16>
    %c128_11 = arith.constant 128 : index
    %c0_12 = arith.constant 0 : index
    %10 = vector.load %arg7[%c128_11, %c0_12] : memref<280x128xbf16, #tpu.memory_space<vmem>>, vector<16x128xbf16>
    %c144 = arith.constant 144 : index
    %c0_13 = arith.constant 0 : index
    %11 = vector.load %arg7[%c144, %c0_13] : memref<280x128xbf16, #tpu.memory_space<vmem>>, vector<128x128xbf16>
    %c272 = arith.constant 272 : index
    %c0_14 = arith.constant 0 : index
    %12 = vector.load %arg7[%c272, %c0_14] : memref<280x128xbf16, #tpu.memory_space<vmem>>, vector<1x128xbf16>
    %c0_15 = arith.constant 0 : index
    %c0_16 = arith.constant 0 : index
    %13 = vector.load %arg0[%c0_15, %c0_16] : memref<768x768xf32, #tpu.memory_space<vmem>>, vector<768x768xf32>
    %14 = arith.truncf %13 : vector<768x768xf32> to vector<768x768xbf16>
    %c0_17 = arith.constant 0 : index
    %c0_18 = arith.constant 0 : index
    %15 = vector.load %arg2[%c0_17, %c0_18] : memref<48x768xbf16, #tpu.memory_space<vmem>>, vector<48x768xbf16>
    %cst = arith.constant dense<0.000000e+00> : vector<48x768xf32>
    %16 = tpu.matmul %15, %14, %cst {dimension_numbers = #tpu.dot_dimension_numbers<[1], [0], [0], [1], [0, 0, 1, 1], [], []>} : vector<48x768xbf16>, vector<768x768xbf16>, vector<48x768xf32> -> vector<48x768xf32>
    %17 = vector.broadcast %0 : vector<48x1xf32> to vector<48x768xf32>
    %18 = arith.addf %16, %17 : vector<48x768xf32>
    %19 = arith.truncf %18 : vector<48x768xf32> to vector<48x768xbf16>
    %c0_19 = arith.constant 0 : index
    %c0_20 = arith.constant 0 : index
    %20 = vector.load %arg3[%c0_19, %c0_20] : memref<768x512xbf16, #tpu.memory_space<vmem>>, vector<768x512xbf16>
    %cst_21 = arith.constant dense<0.000000e+00> : vector<48x512xf32>
    %21 = tpu.matmul %19, %20, %cst_21 {dimension_numbers = #tpu.dot_dimension_numbers<[1], [0], [0], [1], [0, 0, 1, 1], [], []>} : vector<48x768xbf16>, vector<768x512xbf16>, vector<48x512xf32> -> vector<48x512xf32>
    %22 = vector.broadcast %1 : vector<1x512xf32> to vector<48x512xf32>
    %23 = arith.addf %21, %22 : vector<48x512xf32>
    %cst_22 = arith.constant 0.000000e+00 : f32
    %24 = vector.broadcast %cst_22 : f32 to vector<48x512xf32>
    %25 = arith.maximumf %23, %24 : vector<48x512xf32>
    %26 = arith.truncf %25 : vector<48x512xf32> to vector<48x512xbf16>
    %c0_23 = arith.constant 0 : index
    %c0_24 = arith.constant 0 : index
    %27 = vector.load %arg4[%c0_23, %c0_24] : memref<512x256xbf16, #tpu.memory_space<vmem>>, vector<512x256xbf16>
    %cst_25 = arith.constant dense<0.000000e+00> : vector<48x256xf32>
    %28 = tpu.matmul %26, %27, %cst_25 {dimension_numbers = #tpu.dot_dimension_numbers<[1], [0], [0], [1], [0, 0, 1, 1], [], []>} : vector<48x512xbf16>, vector<512x256xbf16>, vector<48x256xf32> -> vector<48x256xf32>
    %29 = vector.broadcast %2 : vector<1x256xf32> to vector<48x256xf32>
    %30 = arith.addf %28, %29 : vector<48x256xf32>
    %cst_26 = arith.constant 0.000000e+00 : f32
    %31 = vector.broadcast %cst_26 : f32 to vector<48x256xf32>
    %32 = arith.maximumf %30, %31 : vector<48x256xf32>
    %33 = arith.truncf %32 : vector<48x256xf32> to vector<48x256xbf16>
    %c0_27 = arith.constant 0 : index
    %c0_28 = arith.constant 0 : index
    %34 = vector.load %arg5[%c0_27, %c0_28] : memref<256x128xbf16, #tpu.memory_space<vmem>>, vector<256x128xbf16>
    %cst_29 = arith.constant dense<0.000000e+00> : vector<48x128xf32>
    %35 = tpu.matmul %33, %34, %cst_29 {dimension_numbers = #tpu.dot_dimension_numbers<[1], [0], [0], [1], [0, 0, 1, 1], [], []>} : vector<48x256xbf16>, vector<256x128xbf16>, vector<48x128xf32> -> vector<48x128xf32>
    %36 = vector.broadcast %3 : vector<1x128xf32> to vector<48x128xf32>
    %37 = arith.addf %35, %36 : vector<48x128xf32>
    %cst_30 = arith.constant 0.000000e+00 : f32
    %38 = vector.broadcast %cst_30 : f32 to vector<48x128xf32>
    %39 = arith.maximumf %37, %38 : vector<48x128xf32>
    %cst_31 = arith.constant dense<0.000000e+00> : vector<2x128xf32>
    %40 = tpu.matmul %7, %39, %cst_31 {dimension_numbers = #tpu.dot_dimension_numbers<[1], [0], [0], [1], [0, 0, 1, 1], [], []>} : vector<2x48xf32>, vector<48x128xf32>, vector<2x128xf32> -> vector<2x128xf32>
    %c0_32 = arith.constant 0 : index
    %c0_33 = arith.constant 0 : index
    %41 = vector.load %arg1[%c0_32, %c0_33] : memref<48x16xf32, #tpu.memory_space<vmem>>, vector<48x16xf32>
    %cst_34 = arith.constant dense<0.000000e+00> : vector<2x16xf32>
    %42 = tpu.matmul %8, %41, %cst_34 {dimension_numbers = #tpu.dot_dimension_numbers<[1], [0], [0], [1], [0, 0, 1, 1], [], []>} : vector<2x48xf32>, vector<48x16xf32>, vector<2x16xf32> -> vector<2x16xf32>
    %43 = arith.truncf %40 : vector<2x128xf32> to vector<2x128xbf16>
    %cst_35 = arith.constant dense<0.000000e+00> : vector<2x128xf32>
    %44 = tpu.matmul %43, %9, %cst_35 {dimension_numbers = #tpu.dot_dimension_numbers<[1], [0], [0], [1], [0, 0, 1, 1], [], []>} : vector<2x128xbf16>, vector<128x128xbf16>, vector<2x128xf32> -> vector<2x128xf32>
    %45 = arith.truncf %42 : vector<2x16xf32> to vector<2x16xbf16>
    %cst_36 = arith.constant dense<0.000000e+00> : vector<2x128xf32>
    %46 = tpu.matmul %45, %10, %cst_36 {dimension_numbers = #tpu.dot_dimension_numbers<[1], [0], [0], [1], [0, 0, 1, 1], [], []>} : vector<2x16xbf16>, vector<16x128xbf16>, vector<2x128xf32> -> vector<2x128xf32>
    %47 = arith.addf %44, %46 : vector<2x128xf32>
    %48 = vector.broadcast %4 : vector<1x128xf32> to vector<2x128xf32>
    %49 = arith.addf %47, %48 : vector<2x128xf32>
    %cst_37 = arith.constant 0.000000e+00 : f32
    %50 = vector.broadcast %cst_37 : f32 to vector<2x128xf32>
    %51 = arith.maximumf %49, %50 : vector<2x128xf32>
    %52 = arith.truncf %51 : vector<2x128xf32> to vector<2x128xbf16>
    %cst_38 = arith.constant dense<0.000000e+00> : vector<2x128xf32>
    %53 = tpu.matmul %52, %11, %cst_38 {dimension_numbers = #tpu.dot_dimension_numbers<[1], [0], [0], [1], [0, 0, 1, 1], [], []>} : vector<2x128xbf16>, vector<128x128xbf16>, vector<2x128xf32> -> vector<2x128xf32>
    %54 = vector.broadcast %5 : vector<1x128xf32> to vector<2x128xf32>
    %55 = arith.addf %53, %54 : vector<2x128xf32>
    %cst_39 = arith.constant 0.000000e+00 : f32
    %56 = vector.broadcast %cst_39 : f32 to vector<2x128xf32>
    %57 = arith.maximumf %55, %56 : vector<2x128xf32>
    %58 = arith.extf %12 : vector<1x128xbf16> to vector<1x128xf32>
    %59 = vector.broadcast %58 : vector<1x128xf32> to vector<2x128xf32>
    %60 = arith.mulf %57, %59 : vector<2x128xf32>
    %cst_40 = arith.constant dense<0.000000e+00> : vector<2xf32>
    %61 = vector.multi_reduction <add>, %60, %cst_40 [1] : vector<2x128xf32> to vector<2xf32>
    %62 = vector.shape_cast %61 : vector<2xf32> to vector<2x1xf32>
    %63 = vector.broadcast %6 : vector<1x1xf32> to vector<2x1xf32>
    %64 = arith.addf %62, %63 : vector<2x1xf32>
    %65 = arith.negf %64 : vector<2x1xf32>
    %66 = math.exp %65 : vector<2x1xf32>
    %cst_41 = arith.constant 1.000000e+00 : f32
    %67 = vector.broadcast %cst_41 : f32 to vector<2x1xf32>
    %68 = arith.addf %67, %66 : vector<2x1xf32>
    %69 = arith.divf %67, %68 : vector<2x1xf32>
    %c0_42 = arith.constant 0 : index
    %c0_43 = arith.constant 0 : index
    %70 = vector.load %arg8[%c0_42, %c0_43] : memref<2x1xf32, #tpu.memory_space<vmem>>, vector<2x1xf32>
    tpu.vector_store %arg8[%c0_42, %c0_43], %69 {strides = array<i32>} : memref<2x1xf32, #tpu.memory_space<vmem>>, vector<2x1xf32>,
    return
  }
}

</mosaic_0001>

<llo_original>
// kernel: tile.23
$region0: #{tile.23}
  #allocation2 [shape = 's32[1]{0}', space=sflag, size = 0x4, scoped, tag = 'scoped memory for tile.23']
  %s0 = inlined_call_operand.hbm [shape: f32[8], index: 0, kind: input, shape index: {}]
  %s1 = inlined_call_operand.vmem [shape: f32[4,8], index: 1, kind: output, shape index: {}]
  $region1: #{tile.23} parent=0
    #allocation0 [shape = 'u8[512]{0}', space=vmem, size = 0x400, scoped, tag = 'operand span for operand 0']
    #allocation1 [shape = 's32[1]{0}', space=sflag, size = 0x4, scoped, tag = 'scoped memory for tile.23']
    %2 = vsyncpa [#allocation1], 0
    // Predicated region
    $region2: #{tile.23} parent=1 // pred_check
      _
    $region3: #{tile.23} parent=1 // pred_check_branch
      %4 = sbr.rel (0) target = $region5
    $region4: #{tile.23} parent=1 // pred_region
      %s6 = ssub.s32 16, 16
      %7 = vsyncadd [#allocation1], %s6
      %s9 = sshll.u32 [#allocation0], 4
      %s10 = int_to_ptr.vmem [resolvable:$true] %s9
      %12 = dma.hbm_to_vmem [thread:$0]  %s0, 16, %s10, [#allocation1]
    $region5: #{tile.23} parent=1 // pred_fallthru
      _
    // Predicated region
    $region6: #{tile.23} parent=1 // pred_check
      _
    $region7: #{tile.23} parent=1 // pred_check_branch
      %14 = sbr.rel (0) target = $region9
    $region8: #{tile.23} parent=1 // pred_region
      %15 = dma.done [#allocation1], 16
    $region9: #{tile.23} parent=1 // pred_fallthru
      _
    %v16 = vld [vmem:[#allocation0] ss:$0 sm:$0xff]
    %17 = vst [vmem:[%s1] sm:$0xf] %v16
    %18 = vsyncpa [#allocation1], 1

// kernel: tile.24
$region0: #{tile.24}
  %s0 = inlined_call_operand.vmem [shape: f32[4,8], index: 0, kind: input, shape index: {}]
  %s1 = inlined_call_operand.vmem [shape: f32[32], index: 1, kind: output, shape index: {}]
  $region1: #{tile.24} parent=0
    #allocation0 [shape = 'u8[4096]{0}', space=vmem, size = 0x1000, scoped, tag = 'scoped mem for output reshape']
    #allocation1 [shape = 'u8[4096]{0}', space=vmem, size = 0x1000, scoped, tag = 'scoped mem for input reshape']
    %s3 = sshll.u32 1, 4
    %s4 = ssub.s32 %s3, 1
    %v5 = vld [vmem:[%s0] sm:%s4]
    %6 = vst [vmem:[#allocation1] sm:%s4] %v5
    %v7 = vld [vmem:[#allocation1] sm:$0x1]
    %vm8 = vcmask 64512
    %9 = vst.msk [vmem:[#allocation0] sm:$0x1] %vm8, %v7
    %s10 = scalar_lea.vmem [#allocation1], 3
    %v11 = vld [vmem:[%s10] sm:$0x1]
    %12 = vrot.lane.b32.xlu0 %v11, 24
    %v13 = vpop.permute.xlu0 %12
    %vm14 = vcmask 261312
    %15 = vst.msk [vmem:[#allocation0] sm:$0x1] %vm14, %v13
    %s16 = scalar_lea.vmem [#allocation1], 2
    %v17 = vld [vmem:[%s16] sm:$0x1]
    %18 = vrot.lane.b32.xlu0 %v17, 16
    %v19 = vpop.permute.xlu0 %18
    %vm20 = vcmask 195712
    %21 = vst.msk [vmem:[#allocation0] sm:$0x1] %vm20, %v19
    %s22 = scalar_lea.vmem [#allocation1], 1
    %v23 = vld [vmem:[%s22] sm:$0x1]
    %24 = vrot.lane.b32.xlu0 %v23, 8
    %v25 = vpop.permute.xlu0 %24
    %vm26 = vcmask 130112
    %27 = vst.msk [vmem:[#allocation0] sm:$0x1] %vm26, %v25
    %s29 = sshll.u32 1, 1
    %s30 = ssub.s32 %s29, 1
    %v32 = vld [vmem:[#allocation0] sm:%s30]
    %s33 = sshll.u32 1, 1
    %s34 = ssub.s32 %s33, 1
    %35 = vst [vmem:[%s1] sm:%s34] %v32

// kernel: tile.18
$region0: #{tile.18}
  #allocation2 [shape = 's32[1]{0}', space=sflag, size = 0x4, scoped, tag = 'scoped memory for tile.18']
  %s0 = inlined_call_operand.hbm [shape: f32[8], index: 0, kind: input, shape index: {}]
  %s1 = inlined_call_operand.vmem [shape: f32[8,8], index: 1, kind: output, shape index: {}]
  $region1: #{tile.18} parent=0
    #allocation0 [shape = 'u8[512]{0}', space=vmem, size = 0x400, scoped, tag = 'operand span for operand 0']
    #allocation1 [shape = 's32[1]{0}', space=sflag, size = 0x4, scoped, tag = 'scoped memory for tile.18']
    %2 = vsyncpa [#allocation1], 0
    // Predicated region
    $region2: #{tile.18} parent=1 // pred_check
      _
    $region3: #{tile.18} parent=1 // pred_check_branch
      %4 = sbr.rel (0) target = $region5
    $region4: #{tile.18} parent=1 // pred_region
      %s6 = ssub.s32 16, 16
      %7 = vsyncadd [#allocation1], %s6
      %s9 = sshll.u32 [#allocation0], 4
      %s10 = int_to_ptr.vmem [resolvable:$true] %s9
      %12 = dma.hbm_to_vmem [thread:$0]  %s0, 16, %s10, [#allocation1]
    $region5: #{tile.18} parent=1 // pred_fallthru
      _
    // Predicated region
    $region6: #{tile.18} parent=1 // pred_check
      _
    $region7: #{tile.18} parent=1 // pred_check_branch
      %14 = sbr.rel (0) target = $region9
    $region8: #{tile.18} parent=1 // pred_region
      %15 = dma.done [#allocation1], 16
    $region9: #{tile.18} parent=1 // pred_fallthru
      _
    %v16 = vld [vmem:[#allocation0] ss:$0 sm:$0xff]
    %17 = vst [vmem:[%s1] sm:$0xff] %v16
    %18 = vsyncpa [#allocation1], 1

// kernel: tile.19
$region0: #{tile.19}
  %s0 = inlined_call_operand.vmem [shape: f32[8,8], index: 0, kind: input, shape index: {}]
  %s1 = inlined_call_operand.vmem [shape: f32[64], index: 1, kind: output, shape index: {}]
  $region1: #{tile.19} parent=0
    #allocation0 [shape = 'u8[4096]{0}', space=vmem, size = 0x1000, scoped, tag = 'scoped mem for output reshape']
    %v2 = vld [vmem:[%s0] sm:$0x1]
    %vm3 = vcmask 64512
    %4 = vst.msk [vmem:[#allocation0] sm:$0x1] %vm3, %v2
    %s5 = scalar_lea.vmem %s0, 7
    %v6 = vld [vmem:[%s5] sm:$0x1]
    %7 = vrot.lane.b32.xlu0 %v6, 56
    %v8 = vpop.permute.xlu0 %7
    %vm9 = vcmask 523712
    %10 = vst.msk [vmem:[#allocation0] sm:$0x1] %vm9, %v8
    %s11 = scalar_lea.vmem %s0, 6
    %v12 = vld [vmem:[%s11] sm:$0x1]
    %13 = vrot.lane.b32.xlu0 %v12, 48
    %v14 = vpop.permute.xlu0 %13
    %vm15 = vcmask 458112
    %16 = vst.msk [vmem:[#allocation0] sm:$0x1] %vm15, %v14
    %s17 = scalar_lea.vmem %s0, 5
    %v18 = vld [vmem:[%s17] sm:$0x1]
    %19 = vrot.lane.b32.xlu0 %v18, 40
    %v20 = vpop.permute.xlu0 %19
    %vm21 = vcmask 392512
    %22 = vst.msk [vmem:[#allocation0] sm:$0x1] %vm21, %v20
    %s23 = scalar_lea.vmem %s0, 4
    %v24 = vld [vmem:[%s23] sm:$0x1]
    %25 = vrot.lane.b32.xlu0 %v24, 32
    %v26 = vpop.permute.xlu0 %25
    %vm27 = vcmask 326912
    %28 = vst.msk [vmem:[#allocation0] sm:$0x1] %vm27, %v26
    %s29 = scalar_lea.vmem %s0, 3
    %v30 = vld [vmem:[%s29] sm:$0x1]
    %31 = vrot.lane.b32.xlu0 %v30, 24
    %v32 = vpop.permute.xlu0 %31
    %vm33 = vcmask 261312
    %34 = vst.msk [vmem:[#allocation0] sm:$0x1] %vm33, %v32
    %s35 = scalar_lea.vmem %s0, 2
    %v36 = vld [vmem:[%s35] sm:$0x1]
    %37 = vrot.lane.b32.xlu0 %v36, 16
    %v38 = vpop.permute.xlu0 %37
    %vm39 = vcmask 195712
    %40 = vst.msk [vmem:[#allocation0] sm:$0x1] %vm39, %v38
    %s41 = scalar_lea.vmem %s0, 1
    %v42 = vld [vmem:[%s41] sm:$0x1]
    %43 = vrot.lane.b32.xlu0 %v42, 8
    %v44 = vpop.permute.xlu0 %43
    %vm45 = vcmask 130112
    %46 = vst.msk [vmem:[#allocation0] sm:$0x1] %vm45, %v44
    %s48 = sshll.u32 1, 1
    %s49 = ssub.s32 %s48, 1
    %v51 = vld [vmem:[#allocation0] sm:%s49]
    %s52 = sshll.u32 1, 1
    %s53 = ssub.s32 %s52, 1
    %54 = vst [vmem:[%s1] sm:%s53] %v51

// kernel: tile.28
$region0: #{tile.28}
  #allocation0 [shape = 's32[1]{0}', space=sflag, size = 0x4, scoped, tag = 'scoped memory for tile.28']
  %s0 = inlined_call_operand.vmem [shape: f32[8], index: 0, kind: input, shape index: {}]
  %s1 = inlined_call_operand.vmem [shape: f32[6,8], index: 1, kind: output, shape index: {}]
  // Predicated region
  $region2: #{tile.28} parent=0 // pred_check
    _
  $region3: #{tile.28} parent=0 // pred_check_branch
    %3 = sbr.rel (0) target = $region5
  $region4: #{tile.28} parent=0 // pred_region
    _
  $region5: #{tile.28} parent=0 // pred_fallthru
    _
  %v4 = vld [vmem:[%s0] ss:$0 sm:$0xff]
  %5 = vst [vmem:[%s1] sm:$0xff] %v4

// kernel: aadp_pallas.1
$region0: #{aadp_pallas.1}
  #allocation0 [shape = 'u32[]', space=smem, size = 0x4, offset = 0x4, fixed_abs, tag = 'smem constant byte address 0x4 - core index']
  #allocation1 [shape = 'u32[144,128]{1,0:T(1,128)}', space=vmem, size = 0x12000, scoped, tag = 'internal scratch']
  %s0 = inlined_call_operand.vmem [shape: f32[768,768], index: 0, kind: input, shape index: {}]
  %s1 = inlined_call_operand.vmem [shape: f32[48,16], index: 1, kind: input, shape index: {}]
  %s2 = inlined_call_operand.vmem [shape: bf16[48,768], index: 2, kind: input, shape index: {}]
  %s3 = inlined_call_operand.vmem [shape: bf16[768,512], index: 3, kind: input, shape index: {}]
  %s4 = inlined_call_operand.vmem [shape: bf16[512,256], index: 4, kind: input, shape index: {}]
  %s5 = inlined_call_operand.vmem [shape: bf16[256,128], index: 5, kind: input, shape index: {}]
  %s6 = inlined_call_operand.vmem [shape: f32[56,512], index: 6, kind: input, shape index: {}]
  %s7 = inlined_call_operand.vmem [shape: bf16[280,128], index: 7, kind: input, shape index: {}]
  %s8 = inlined_call_operand.vmem [shape: f32[2,1], index: 8, kind: output, shape index: {}]
  %s9 = sld [smem:[#allocation0]]
  $region42: #{aadp_pallas.1} parent=0
    _
  %s11 = ssub.s32 1, %s9
  %s12 = scalar_select 0, %s11, %s9
  // Predicated region
  $region2: #{aadp_pallas.1} parent=0 // pred_check
    _
  $region3: #{aadp_pallas.1} parent=0 // pred_check_branch
    %14 = sbr.rel (0) target = $region5
  $region4: #{aadp_pallas.1} parent=0 // pred_region
    _
  $region5: #{aadp_pallas.1} parent=0 // pred_fallthru
    _
  // Predicated region
  $region6: #{aadp_pallas.1} parent=0 // pred_check
    _
  $region7: #{aadp_pallas.1} parent=0 // pred_check_branch
    %16 = sbr.rel (0) target = $region9
  $region8: #{aadp_pallas.1} parent=0 // pred_region
    _
  $region9: #{aadp_pallas.1} parent=0 // pred_fallthru
    _
  // Predicated region
  $region10: #{aadp_pallas.1} parent=0 // pred_check
    _
  $region11: #{aadp_pallas.1} parent=0 // pred_check_branch
    %18 = sbr.rel (0) target = $region13
  $region12: #{aadp_pallas.1} parent=0 // pred_region
    _
  $region13: #{aadp_pallas.1} parent=0 // pred_fallthru
    _
  // Predicated region
  $region14: #{aadp_pallas.1} parent=0 // pred_check
    _
  $region15: #{aadp_pallas.1} parent=0 // pred_check_branch
    %20 = sbr.rel (0) target = $region17
  $region16: #{aadp_pallas.1} parent=0 // pred_region
    _
  $region17: #{aadp_pallas.1} parent=0 // pred_fallthru
    _
  // Predicated region
  $region18: #{aadp_pallas.1} parent=0 // pred_check
    _
  $region19: #{aadp_pallas.1} parent=0 // pred_check_branch
    %22 = sbr.rel (0) target = $region21
  $region20: #{aadp_pallas.1} parent=0 // pred_region
    _
  $region21: #{aadp_pallas.1} parent=0 // pred_fallthru
    _
  // Predicated region
  $region22: #{aadp_pallas.1} parent=0 // pred_check
    _
  $region23: #{aadp_pallas.1} parent=0 // pred_check_branch
    %24 = sbr.rel (0) target = $region25
  $region24: #{aadp_pallas.1} parent=0 // pred_region
    _
  $region25: #{aadp_pallas.1} parent=0 // pred_fallthru
    _
  // Predicated region
  $region26: #{aadp_pallas.1} parent=0 // pred_check
    _
  $region27: #{aadp_pallas.1} parent=0 // pred_check_branch
    %26 = sbr.rel (0) target = $region29
  $region28: #{aadp_pallas.1} parent=0 // pred_region
    _
  $region29: #{aadp_pallas.1} parent=0 // pred_fallthru
    _
  // Predicated region
  $region30: #{aadp_pallas.1} parent=0 // pred_check
    _
  $region31: #{aadp_pallas.1} parent=0 // pred_check_branch
    %28 = sbr.rel (0) target = $region33
  $region32: #{aadp_pallas.1} parent=0 // pred_region
    _
  $region33: #{aadp_pallas.1} parent=0 // pred_fallthru
    _
  %v30 = vld [vmem:[%s6 + $0x20] sm:$0xff]
  %v31 = vld [vmem:[%s6 + $0x40] sm:$0xff]
  %v32 = vld [vmem:[%s6 + $0x60] sm:$0xff]
  %v33 = vld [vmem:[%s6 + $0x80] sm:$0xff]
  %v34 = vld [vmem:[%s6 + $0xa0] sm:$0xff]
  %v35 = vld [vmem:[%s6 + $0xc0] sm:$0xff]
  %v36 = vld [vmem:[%s6] ss:$8 sm:$0xf]
  %s37 = scalar_lea.vmem %s6, 1
  %v38 = vld [vmem:[%s37] ss:$8 sm:$0x3]
  %v39 = vld [vmem:[%s6 + $0x11] ss:$0 sm:$0xff]
  %v40 = vld [vmem:[%s6 + $0x19] ss:$0 sm:$0xff]
  %v41 = vld [vmem:[%s6 + $0x2] ss:$0 sm:$0xff]
  %v42 = vld [vmem:[%s6 + $0xa] ss:$0 sm:$0xff]
  %v43 = vld [vmem:[%s6] sm:$0x18]
  %v44 = vld [vmem:[%s6] sm:$0x60]
  %v45 = vld [vmem:[%s7] sm:$0xf]
  %v46 = vld [vmem:[%s7 + $0x4] sm:$0xf]
  %v47 = vld [vmem:[%s7 + $0x8] sm:$0xf]
  %v48 = vld [vmem:[%s7 + $0xc] sm:$0xf]
  %v49 = vld [vmem:[%s7 + $0x10] sm:$0xf]
  %v50 = vld [vmem:[%s7 + $0x14] sm:$0xf]
  %v51 = vld [vmem:[%s7 + $0x18] sm:$0xf]
  %v52 = vld [vmem:[%s7 + $0x1c] sm:$0xf]
  %v53 = vld [vmem:[%s7 + $0x20] sm:$0xf]
  %v54 = vld [vmem:[%s7 + $0x24] sm:$0xf]
  %v55 = vld [vmem:[%s7 + $0x28] sm:$0xf]
  %v56 = vld [vmem:[%s7 + $0x2c] sm:$0xf]
  %v57 = vld [vmem:[%s7 + $0x30] sm:$0xf]
  %v58 = vld [vmem:[%s7 + $0x34] sm:$0xf]
  %v59 = vld [vmem:[%s7 + $0x38] sm:$0xf]
  %v60 = vld [vmem:[%s7 + $0x3c] sm:$0xf]
  %v61 = vld [vmem:[%s7 + $0x40] sm:$0xf]
  %v62 = vld [vmem:[%s7 + $0x44] sm:$0xf]
  %v63 = vld [vmem:[%s7 + $0x48] sm:$0xf]
  %v64 = vld [vmem:[%s7 + $0x4c] sm:$0xf]
  %v65 = vld [vmem:[%s7 + $0x50] sm:$0xf]
  %v66 = vld [vmem:[%s7 + $0x54] sm:$0xf]
  %v67 = vld [vmem:[%s7 + $0x58] sm:$0xf]
  %v68 = vld [vmem:[%s7 + $0x5c] sm:$0xf]
  %v69 = vld [vmem:[%s7 + $0x60] sm:$0xf]
  %v70 = vld [vmem:[%s7 + $0x64] sm:$0xf]
  %v71 = vld [vmem:[%s7 + $0x68] sm:$0xf]
  %v72 = vld [vmem:[%s7 + $0x6c] sm:$0xf]
  %v73 = vld [vmem:[%s7 + $0x70] sm:$0xf]
  %v74 = vld [vmem:[%s7 + $0x74] sm:$0xf]
  %v75 = vld [vmem:[%s7 + $0x78] sm:$0xf]
  %v76 = vld [vmem:[%s7 + $0x7c] sm:$0xf]
  %v77 = vld [vmem:[%s7 + $0x80] sm:$0xf]
  %v78 = vld [vmem:[%s7 + $0x84] sm:$0xf]
  %v79 = vld [vmem:[%s7 + $0x88] sm:$0x1]
  %v80 = vld [vmem:[%s0] sm:$0xff]
  %v81 = vld [vmem:[%s0 + $0x8] sm:$0xff]
  %v82 = vld [vmem:[%s0 + $0x10] sm:$0xff]
  %v83 = vld [vmem:[%s0 + $0x18] sm:$0xff]
  %v84 = vld [vmem:[%s0 + $0x20] sm:$0xff]
  %v85 = vld [vmem:[%s0 + $0x28] sm:$0xff]
  %v86 = vld [vmem:[%s0 + $0x30] sm:$0xff]
  %v87 = vld [vmem:[%s0 + $0x38] sm:$0xff]
  %v88 = vld [vmem:[%s0 + $0x40] sm:$0xff]
  %v89 = vld [vmem:[%s0 + $0x48] sm:$0xff]
  %v90 = vld [vmem:[%s0 + $0x50] sm:$0xff]
  %v91 = vld [vmem:[%s0 + $0x58] sm:$0xff]
  %v92 = vld [vmem:[%s0 + $0x60] sm:$0xff]
  %v93 = vld [vmem:[%s0 + $0x68] sm:$0xff]
  %v94 = vld [vmem:[%s0 + $0x70] sm:$0xff]
  %v95 = vld [vmem:[%s0 + $0x78] sm:$0xff]
  %v96 = vld [vmem:[%s0 + $0x80] sm:$0xff]
  %v97 = vld [vmem:[%s0 + $0x88] sm:$0xff]
  %v98 = vld [vmem:[%s0 + $0x90] sm:$0xff]
  %v99 = vld [vmem:[%s0 + $0x98] sm:$0xff]
  %v100 = vld [vmem:[%s0 + $0xa0] sm:$0xff]
  %v101 = vld [vmem:[%s0 + $0xa8] sm:$0xff]
  %v102 = vld [vmem:[%s0 + $0xb0] sm:$0xff]
  %v103 = vld [vmem:[%s0 + $0xb8] sm:$0xff]
  %v104 = vld [vmem:[%s0 + $0xc0] sm:$0xff]
  %v105 = vld [vmem:[%s0 + $0xc8] sm:$0xff]
  %v106 = vld [vmem:[%s0 + $0xd0] sm:$0xff]
  %v107 = vld [vmem:[%s0 + $0xd8] sm:$0xff]
  %v108 = vld [vmem:[%s0 + $0xe0] sm:$0xff]
  %v109 = vld [vmem:[%s0 + $0xe8] sm:$0xff]
  %v110 = vld [vmem:[%s0 + $0xf0] sm:$0xff]
  %v111 = vld [vmem:[%s0 + $0xf8] sm:$0xff]
  %v112 = vld [vmem:[%s0 + $0x100] sm:$0xff]
  %v113 = vld [vmem:[%s0 + $0x108] sm:$0xff]
  %v114 = vld [vmem:[%s0 + $0x110] sm:$0xff]
  %v115 = vld [vmem:[%s0 + $0x118] sm:$0xff]
  %v116 = vld [vmem:[%s0 + $0x120] sm:$0xff]
  %v117 = vld [vmem:[%s0 + $0x128] sm:$0xff]
  %v118 = vld [vmem:[%s0 + $0x130] sm:$0xff]
  %v119 = vld [vmem:[%s0 + $0x138] sm:$0xff]
  %v120 = vld [vmem:[%s0 + $0x140] sm:$0xff]
  %v121 = vld [vmem:[%s0 + $0x148] sm:$0xff]
  %v122 = vld [vmem:[%s0 + $0x150] sm:$0xff]
  %v123 = vld [vmem:[%s0 + $0x158] sm:$0xff]
  %v124 = vld [vmem:[%s0 + $0x160] sm:$0xff]
  %v125 = vld [vmem:[%s0 + $0x168] sm:$0xff]
  %v126 = vld [vmem:[%s0 + $0x170] sm:$0xff]
  %v127 = vld [vmem:[%s0 + $0x178] sm:$0xff]
  %v128 = vld [vmem:[%s0 + $0x180] sm:$0xff]
  %v129 = vld [vmem:[%s0 + $0x188] sm:$0xff]
  %v130 = vld [vmem:[%s0 + $0x190] sm:$0xff]
  %v131 = vld [vmem:[%s0 + $0x198] sm:$0xff]
  %v132 = vld [vmem:[%s0 + $0x1a0] sm:$0xff]
  %v133 = vld [vmem:[%s0 + $0x1a8] sm:$0xff]
  %v134 = vld [vmem:[%s0 + $0x1b0] sm:$0xff]
  %v135 = vld [vmem:[%s0 + $0x1b8] sm:$0xff]
  %v136 = vld [vmem:[%s0 + $0x1c0] sm:$0xff]
  %v137 = vld [vmem:[%s0 + $0x1c8] sm:$0xff]
  %v138 = vld [vmem:[%s0 + $0x1d0] sm:$0xff]
  %v139 = vld [vmem:[%s0 + $0x1d8] sm:$0xff]
  %v140 = vld [vmem:[%s0 + $0x1e0] sm:$0xff]
  %v141 = vld [vmem:[%s0 + $0x1e8] sm:$0xff]
  %v142 = vld [vmem:[%s0 + $0x1f0] sm:$0xff]
  %v143 = vld [vmem:[%s0 + $0x1f8] sm:$0xff]
  %v144 = vld [vmem:[%s0 + $0x200] sm:$0xff]
  %v145 = vld [vmem:[%s0 + $0x208] sm:$0xff]
  %v146 = vld [vmem:[%s0 + $0x210] sm:$0xff]
  %v147 = vld [vmem:[%s0 + $0x218] sm:$0xff]
  %v148 = vld [vmem:[%s0 + $0x220] sm:$0xff]
  %v149 = vld [vmem:[%s0 + $0x228] sm:$0xff]
  %v150 = vld [vmem:[%s0 + $0x230] sm:$0xff]
  %v151 = vld [vmem:[%s0 + $0x238] sm:$0xff]
  %v152 = vld [vmem:[%s0 + $0x240] sm:$0xff]
  %v153 = vld [vmem:[%s0 + $0x248] sm:$0xff]
  %v154 = vld [vmem:[%s0 + $0x250] sm:$0xff]
  %v155 = vld [vmem:[%s0 + $0x258] sm:$0xff]
  %v156 = vld [vmem:[%s0 + $0x260] sm:$0xff]
  %v157 = vld [vmem:[%s0 + $0x268] sm:$0xff]
  %v158 = vld [vmem:[%s0 + $0x270] sm:$0xff]
  %v159 = vld [vmem:[%s0 + $0x278] sm:$0xff]
  %v160 = vld [vmem:[%s0 + $0x280] sm:$0xff]
  %v161 = vld [vmem:[%s0 + $0x288] sm:$0xff]
  %v162 = vld [vmem:[%s0 + $0x290] sm:$0xff]
  %v163 = vld [vmem:[%s0 + $0x298] sm:$0xff]
  %v164 = vld [vmem:[%s0 + $0x2a0] sm:$0xff]
  %v165 = vld [vmem:[%s0 + $0x2a8] sm:$0xff]
  %v166 = vld [vmem:[%s0 + $0x2b0] sm:$0xff]
  %v167 = vld [vmem:[%s0 + $0x2b8] sm:$0xff]
  %v168 = vld [vmem:[%s0 + $0x2c0] sm:$0xff]
  %v169 = vld [vmem:[%s0 + $0x2c8] sm:$0xff]
  %v170 = vld [vmem:[%s0 + $0x2d0] sm:$0xff]
  %v171 = vld [vmem:[%s0 + $0x2d8] sm:$0xff]
  %v172 = vld [vmem:[%s0 + $0x2e0] sm:$0xff]
  %v173 = vld [vmem:[%s0 + $0x2e8] sm:$0xff]
  %v174 = vld [vmem:[%s0 + $0x2f0] sm:$0xff]
  %v175 = vld [vmem:[%s0 + $0x2f8] sm:$0xff]
  %v176 = vld [vmem:[%s0 + $0x300] sm:$0xff]
  %v177 = vld [vmem:[%s0 + $0x308] sm:$0xff]
  %v178 = vld [vmem:[%s0 + $0x310] sm:$0xff]
  %v179 = vld [vmem:[%s0 + $0x318] sm:$0xff]
  %v180 = vld [vmem:[%s0 + $0x320] sm:$0xff]
  %v181 = vld [vmem:[%s0 + $0x328] sm:$0xff]
  %v182 = vld [vmem:[%s0 + $0x330] sm:$0xff]
  %v183 = vld [vmem:[%s0 + $0x338] sm:$0xff]
  %v184 = vld [vmem:[%s0 + $0x340] sm:$0xff]
  %v185 = vld [vmem:[%s0 + $0x348] sm:$0xff]
  %v186 = vld [vmem:[%s0 + $0x350] sm:$0xff]
  %v187 = vld [vmem:[%s0 + $0x358] sm:$0xff]
  %v188 = vld [vmem:[%s0 + $0x360] sm:$0xff]
  %v189 = vld [vmem:[%s0 + $0x368] sm:$0xff]
  %v190 = vld [vmem:[%s0 + $0x370] sm:$0xff]
  %v191 = vld [vmem:[%s0 + $0x378] sm:$0xff]
  %v192 = vld [vmem:[%s0 + $0x380] sm:$0xff]
  %v193 = vld [vmem:[%s0 + $0x388] sm:$0xff]
  %v194 = vld [vmem:[%s0 + $0x390] sm:$0xff]
  %v195 = vld [vmem:[%s0 + $0x398] sm:$0xff]
  %v196 = vld [vmem:[%s0 + $0x3a0] sm:$0xff]
  %v197 = vld [vmem:[%s0 + $0x3a8] sm:$0xff]
  %v198 = vld [vmem:[%s0 + $0x3b0] sm:$0xff]
  %v199 = vld [vmem:[%s0 + $0x3b8] sm:$0xff]
  %v200 = vld [vmem:[%s0 + $0x3c0] sm:$0xff]
  %v201 = vld [vmem:[%s0 + $0x3c8] sm:$0xff]
  %v202 = vld [vmem:[%s0 + $0x3d0] sm:$0xff]
  %v203 = vld [vmem:[%s0 + $0x3d8] sm:$0xff]
  %v204 = vld [vmem:[%s0 + $0x3e0] sm:$0xff]
  %v205 = vld [vmem:[%s0 + $0x3e8] sm:$0xff]
  %v206 = vld [vmem:[%s0 + $0x3f0] sm:$0xff]
  %v207 = vld [vmem:[%s0 + $0x3f8] sm:$0xff]
  %v208 = vld [vmem:[%s0 + $0x400] sm:$0xff]
  %v209 = vld [vmem:[%s0 + $0x408] sm:$0xff]
  %v210 = vld [vmem:[%s0 + $0x410] sm:$0xff]
  %v211 = vld [vmem:[%s0 + $0x418] sm:$0xff]
  %v212 = vld [vmem:[%s0 + $0x420] sm:$0xff]
  %v213 = vld [vmem:[%s0 + $0x428] sm:$0xff]
  %v214 = vld [vmem:[%s0 + $0x430] sm:$0xff]
  %v215 = vld [vmem:[%s0 + $0x438] sm:$0xff]
  %v216 = vld [vmem:[%s0 + $0x440] sm:$0xff]
  %v217 = vld [vmem:[%s0 + $0x448] sm:$0xff]
  %v218 = vld [vmem:[%s0 + $0x450] sm:$0xff]
  %v219 = vld [vmem:[%s0 + $0x458] sm:$0xff]
  %v220 = vld [vmem:[%s0 + $0x460] sm:$0xff]
  %v221 = vld [vmem:[%s0 + $0x468] sm:$0xff]
  %v222 = vld [vmem:[%s0 + $0x470] sm:$0xff]
  %v223 = vld [vmem:[%s0 + $0x478] sm:$0xff]
  %v224 = vld [vmem:[%s0 + $0x480] sm:$0xff]
  %v225 = vld [vmem:[%s0 + $0x488] sm:$0xff]
  %v226 = vld [vmem:[%s0 + $0x490] sm:$0xff]
  %v227 = vld [vmem:[%s0 + $0x498] sm:$0xff]
  %v228 = vld [vmem:[%s0 + $0x4a0] sm:$0xff]
  %v229 = vld [vmem:[%s0 + $0x4a8] sm:$0xff]
  %v230 = vld [vmem:[%s0 + $0x4b0] sm:$0xff]
  %v231 = vld [vmem:[%s0 + $0x4b8] sm:$0xff]
  %v232 = vld [vmem:[%s0 + $0x4c0] sm:$0xff]
  %v233 = vld [vmem:[%s0 + $0x4c8] sm:$0xff]
  %v234 = vld [vmem:[%s0 + $0x4d0] sm:$0xff]
  %v235 = vld [vmem:[%s0 + $0x4d8] sm:$0xff]
  %v236 = vld [vmem:[%s0 + $0x4e0] sm:$0xff]
  %v237 = vld [vmem:[%s0 + $0x4e8] sm:$0xff]
  %v238 = vld [vmem:[%s0 + $0x4f0] sm:$0xff]
  %v239 = vld [vmem:[%s0 + $0x4f8] sm:$0xff]
  %v240 = vld [vmem:[%s0 + $0x500] sm:$0xff]
  %v241 = vld [vmem:[%s0 + $0x508] sm:$0xff]
  %v242 = vld [vmem:[%s0 + $0x510] sm:$0xff]
  %v243 = vld [vmem:[%s0 + $0x518] sm:$0xff]
  %v244 = vld [vmem:[%s0 + $0x520] sm:$0xff]
  %v245 = vld [vmem:[%s0 + $0x528] sm:$0xff]
  %v246 = vld [vmem:[%s0 + $0x530] sm:$0xff]
  %v247 = vld [vmem:[%s0 + $0x538] sm:$0xff]
  %v248 = vld [vmem:[%s0 + $0x540] sm:$0xff]
  %v249 = vld [vmem:[%s0 + $0x548] sm:$0xff]
  %v250 = vld [vmem:[%s0 + $0x550] sm:$0xff]
  %v251 = vld [vmem:[%s0 + $0x558] sm:$0xff]
  %v252 = vld [vmem:[%s0 + $0x560] sm:$0xff]
  %v253 = vld [vmem:[%s0 + $0x568] sm:$0xff]
  %v254 = vld [vmem:[%s0 + $0x570] sm:$0xff]
  %v255 = vld [vmem:[%s0 + $0x578] sm:$0xff]
  %v256 = vld [vmem:[%s0 + $0x580] sm:$0xff]
  %v257 = vld [vmem:[%s0 + $0x588] sm:$0xff]
  %v258 = vld [vmem:[%s0 + $0x590] sm:$0xff]
  %v259 = vld [vmem:[%s0 + $0x598] sm:$0xff]
  %v260 = vld [vmem:[%s0 + $0x5a0] sm:$0xff]
  %v261 = vld [vmem:[%s0 + $0x5a8] sm:$0xff]
  %v262 = vld [vmem:[%s0 + $0x5b0] sm:$0xff]
  %v263 = vld [vmem:[%s0 + $0x5b8] sm:$0xff]
  %v264 = vld [vmem:[%s0 + $0x5c0] sm:$0xff]
  %v265 = vld [vmem:[%s0 + $0x5c8] sm:$0xff]
  %v266 = vld [vmem:[%s0 + $0x5d0] sm:$0xff]
  %v267 = vld [vmem:[%s0 + $0x5d8] sm:$0xff]
  %v268 = vld [vmem:[%s0 + $0x5e0] sm:$0xff]
  %v269 = vld [vmem:[%s0 + $0x5e8] sm:$0xff]
  %v270 = vld [vmem:[%s0 + $0x5f0] sm:$0xff]
  %v271 = vld [vmem:[%s0 + $0x5f8] sm:$0xff]
  %v272 = vld [vmem:[%s0 + $0x600] sm:$0xff]
  %v273 = vld [vmem:[%s0 + $0x608] sm:$0xff]
  %v274 = vld [vmem:[%s0 + $0x610] sm:$0xff]
  %v275 = vld [vmem:[%s0 + $0x618] sm:$0xff]
  %v276 = vld [vmem:[%s0 + $0x620] sm:$0xff]
  %v277 = vld [vmem:[%s0 + $0x628] sm:$0xff]
  %v278 = vld [vmem:[%s0 + $0x630] sm:$0xff]
  %v279 = vld [vmem:[%s0 + $0x638] sm:$0xff]
  %v280 = vld [vmem:[%s0 + $0x640] sm:$0xff]
  %v281 = vld [vmem:[%s0 + $0x648] sm:$0xff]
  %v282 = vld [vmem:[%s0 + $0x650] sm:$0xff]
  %v283 = vld [vmem:[%s0 + $0x658] sm:$0xff]
  %v284 = vld [vmem:[%s0 + $0x660] sm:$0xff]
  %v285 = vld [vmem:[%s0 + $0x668] sm:$0xff]
  %v286 = vld [vmem:[%s0 + $0x670] sm:$0xff]
  %v287 = vld [vmem:[%s0 + $0x678] sm:$0xff]
  %v288 = vld [vmem:[%s0 + $0x680] sm:$0xff]
  %v289 = vld [vmem:[%s0 + $0x688] sm:$0xff]
  %v290 = vld [vmem:[%s0 + $0x690] sm:$0xff]
  %v291 = vld [vmem:[%s0 + $0x698] sm:$0xff]
  %v292 = vld [vmem:[%s0 + $0x6a0] sm:$0xff]
  %v293 = vld [vmem:[%s0 + $0x6a8] sm:$0xff]
  %v294 = vld [vmem:[%s0 + $0x6b0] sm:$0xff]
  %v295 = vld [vmem:[%s0 + $0x6b8] sm:$0xff]
  %v296 = vld [vmem:[%s0 + $0x6c0] sm:$0xff]
  %v297 = vld [vmem:[%s0 + $0x6c8] sm:$0xff]
  %v298 = vld [vmem:[%s0 + $0x6d0] sm:$0xff]
  %v299 = vld [vmem:[%s0 + $0x6d8] sm:$0xff]
  %v300 = vld [vmem:[%s0 + $0x6e0] sm:$0xff]
  %v301 = vld [vmem:[%s0 + $0x6e8] sm:$0xff]
  %v302 = vld [vmem:[%s0 + $0x6f0] sm:$0xff]
  %v303 = vld [vmem:[%s0 + $0x6f8] sm:$0xff]
  %v304 = vld [vmem:[%s0 + $0x700] sm:$0xff]
  %v305 = vld [vmem:[%s0 + $0x708] sm:$0xff]
  %v306 = vld [vmem:[%s0 + $0x710] sm:$0xff]
  %v307 = vld [vmem:[%s0 + $0x718] sm:$0xff]
  %v308 = vld [vmem:[%s0 + $0x720] sm:$0xff]
  %v309 = vld [vmem:[%s0 + $0x728] sm:$0xff]
  %v310 = vld [vmem:[%s0 + $0x730] sm:$0xff]
  %v311 = vld [vmem:[%s0 + $0x738] sm:$0xff]
  %v312 = vld [vmem:[%s0 + $0x740] sm:$0xff]
  %v313 = vld [vmem:[%s0 + $0x748] sm:$0xff]
  %v314 = vld [vmem:[%s0 + $0x750] sm:$0xff]
  %v315 = vld [vmem:[%s0 + $0x758] sm:$0xff]
  %v316 = vld [vmem:[%s0 + $0x760] sm:$0xff]
  %v317 = vld [vmem:[%s0 + $0x768] sm:$0xff]
  %v318 = vld [vmem:[%s0 + $0x770] sm:$0xff]
  %v319 = vld [vmem:[%s0 + $0x778] sm:$0xff]
  %v320 = vld [vmem:[%s0 + $0x780] sm:$0xff]
  %v321 = vld [vmem:[%s0 + $0x788] sm:$0xff]
  %v322 = vld [vmem:[%s0 + $0x790] sm:$0xff]
  %v323 = vld [vmem:[%s0 + $0x798] sm:$0xff]
  %v324 = vld [vmem:[%s0 + $0x7a0] sm:$0xff]
  %v325 = vld [vmem:[%s0 + $0x7a8] sm:$0xff]
  %v326 = vld [vmem:[%s0 + $0x7b0] sm:$0xff]
  %v327 = vld [vmem:[%s0 + $0x7b8] sm:$0xff]
  %v328 = vld [vmem:[%s0 + $0x7c0] sm:$0xff]
  %v329 = vld [vmem:[%s0 + $0x7c8] sm:$0xff]
  %v330 = vld [vmem:[%s0 + $0x7d0] sm:$0xff]
  %v331 = vld [vmem:[%s0 + $0x7d8] sm:$0xff]
  %v332 = vld [vmem:[%s0 + $0x7e0] sm:$0xff]
  %v333 = vld [vmem:[%s0 + $0x7e8] sm:$0xff]
  %v334 = vld [vmem:[%s0 + $0x7f0] sm:$0xff]
  %v335 = vld [vmem:[%s0 + $0x7f8] sm:$0xff]
  %v336 = vld [vmem:[%s0 + $0x800] sm:$0xff]
  %v337 = vld [vmem:[%s0 + $0x808] sm:$0xff]
  %v338 = vld [vmem:[%s0 + $0x810] sm:$0xff]
  %v339 = vld [vmem:[%s0 + $0x818] sm:$0xff]
  %v340 = vld [vmem:[%s0 + $0x820] sm:$0xff]
  %v341 = vld [vmem:[%s0 + $0x828] sm:$0xff]
  %v342 = vld [vmem:[%s0 + $0x830] sm:$0xff]
  %v343 = vld [vmem:[%s0 + $0x838] sm:$0xff]
  %v344 = vld [vmem:[%s0 + $0x840] sm:$0xff]
  %v345 = vld [vmem:[%s0 + $0x848] sm:$0xff]
  %v346 = vld [vmem:[%s0 + $0x850] sm:$0xff]
  %v347 = vld [vmem:[%s0 + $0x858] sm:$0xff]
  %v348 = vld [vmem:[%s0 + $0x860] sm:$0xff]
  %v349 = vld [vmem:[%s0 + $0x868] sm:$0xff]
  %v350 = vld [vmem:[%s0 + $0x870] sm:$0xff]
  %v351 = vld [vmem:[%s0 + $0x878] sm:$0xff]
  %v352 = vld [vmem:[%s0 + $0x880] sm:$0xff]
  %v353 = vld [vmem:[%s0 + $0x888] sm:$0xff]
  %v354 = vld [vmem:[%s0 + $0x890] sm:$0xff]
  %v355 = vld [vmem:[%s0 + $0x898] sm:$0xff]
  %v356 = vld [vmem:[%s0 + $0x8a0] sm:$0xff]
  %v357 = vld [vmem:[%s0 + $0x8a8] sm:$0xff]
  %v358 = vld [vmem:[%s0 + $0x8b0] sm:$0xff]
  %v359 = vld [vmem:[%s0 + $0x8b8] sm:$0xff]
  %v360 = vld [vmem:[%s0 + $0x8c0] sm:$0xff]
  %v361 = vld [vmem:[%s0 + $0x8c8] sm:$0xff]
  %v362 = vld [vmem:[%s0 + $0x8d0] sm:$0xff]
  %v363 = vld [vmem:[%s0 + $0x8d8] sm:$0xff]
  %v364 = vld [vmem:[%s0 + $0x8e0] sm:$0xff]
  %v365 = vld [vmem:[%s0 + $0x8e8] sm:$0xff]
  %v366 = vld [vmem:[%s0 + $0x8f0] sm:$0xff]
  %v367 = vld [vmem:[%s0 + $0x8f8] sm:$0xff]
  %v368 = vld [vmem:[%s0 + $0x900] sm:$0xff]
  %v369 = vld [vmem:[%s0 + $0x908] sm:$0xff]
  %v370 = vld [vmem:[%s0 + $0x910] sm:$0xff]
  %v371 = vld [vmem:[%s0 + $0x918] sm:$0xff]
  %v372 = vld [vmem:[%s0 + $0x920] sm:$0xff]
  %v373 = vld [vmem:[%s0 + $0x928] sm:$0xff]
  %v374 = vld [vmem:[%s0 + $0x930] sm:$0xff]
  %v375 = vld [vmem:[%s0 + $0x938] sm:$0xff]
  %v376 = vld [vmem:[%s0 + $0x940] sm:$0xff]
  %v377 = vld [vmem:[%s0 + $0x948] sm:$0xff]
  %v378 = vld [vmem:[%s0 + $0x950] sm:$0xff]
  %v379 = vld [vmem:[%s0 + $0x958] sm:$0xff]
  %v380 = vld [vmem:[%s0 + $0x960] sm:$0xff]
  %v381 = vld [vmem:[%s0 + $0x968] sm:$0xff]
  %v382 = vld [vmem:[%s0 + $0x970] sm:$0xff]
  %v383 = vld [vmem:[%s0 + $0x978] sm:$0xff]
  %v384 = vld [vmem:[%s0 + $0x980] sm:$0xff]
  %v385 = vld [vmem:[%s0 + $0x988] sm:$0xff]
  %v386 = vld [vmem:[%s0 + $0x990] sm:$0xff]
  %v387 = vld [vmem:[%s0 + $0x998] sm:$0xff]
  %v388 = vld [vmem:[%s0 + $0x9a0] sm:$0xff]
  %v389 = vld [vmem:[%s0 + $0x9a8] sm:$0xff]
  %v390 = vld [vmem:[%s0 + $0x9b0] sm:$0xff]
  %v391 = vld [vmem:[%s0 + $0x9b8] sm:$0xff]
  %v392 = vld [vmem:[%s0 + $0x9c0] sm:$0xff]
  %v393 = vld [vmem:[%s0 + $0x9c8] sm:$0xff]
  %v394 = vld [vmem:[%s0 + $0x9d0] sm:$0xff]
  %v395 = vld [vmem:[%s0 + $0x9d8] sm:$0xff]
  %v396 = vld [vmem:[%s0 + $0x9e0] sm:$0xff]
  %v397 = vld [vmem:[%s0 + $0x9e8] sm:$0xff]
  %v398 = vld [vmem:[%s0 + $0x9f0] sm:$0xff]
  %v399 = vld [vmem:[%s0 + $0x9f8] sm:$0xff]
  %v400 = vld [vmem:[%s0 + $0xa00] sm:$0xff]
  %v401 = vld [vmem:[%s0 + $0xa08] sm:$0xff]
  %v402 = vld [vmem:[%s0 + $0xa10] sm:$0xff]
  %v403 = vld [vmem:[%s0 + $0xa18] sm:$0xff]
  %v404 = vld [vmem:[%s0 + $0xa20] sm:$0xff]
  %v405 = vld [vmem:[%s0 + $0xa28] sm:$0xff]
  %v406 = vld [vmem:[%s0 + $0xa30] sm:$0xff]
  %v407 = vld [vmem:[%s0 + $0xa38] sm:$0xff]
  %v408 = vld [vmem:[%s0 + $0xa40] sm:$0xff]
  %v409 = vld [vmem:[%s0 + $0xa48] sm:$0xff]
  %v410 = vld [vmem:[%s0 + $0xa50] sm:$0xff]
  %v411 = vld [vmem:[%s0 + $0xa58] sm:$0xff]
  %v412 = vld [vmem:[%s0 + $0xa60] sm:$0xff]
  %v413 = vld [vmem:[%s0 + $0xa68] sm:$0xff]
  %v414 = vld [vmem:[%s0 + $0xa70] sm:$0xff]
  %v415 = vld [vmem:[%s0 + $0xa78] sm:$0xff]
  %v416 = vld [vmem:[%s0 + $0xa80] sm:$0xff]
  %v417 = vld [vmem:[%s0 + $0xa88] sm:$0xff]
  %v418 = vld [vmem:[%s0 + $0xa90] sm:$0xff]
  %v419 = vld [vmem:[%s0 + $0xa98] sm:$0xff]
  %v420 = vld [vmem:[%s0 + $0xaa0] sm:$0xff]
  %v421 = vld [vmem:[%s0 + $0xaa8] sm:$0xff]
  %v422 = vld [vmem:[%s0 + $0xab0] sm:$0xff]
  %v423 = vld [vmem:[%s0 + $0xab8] sm:$0xff]
  %v424 = vld [vmem:[%s0 + $0xac0] sm:$0xff]
  %v425 = vld [vmem:[%s0 + $0xac8] sm:$0xff]
  %v426 = vld [vmem:[%s0 + $0xad0] sm:$0xff]
  %v427 = vld [vmem:[%s0 + $0xad8] sm:$0xff]
  %v428 = vld [vmem:[%s0 + $0xae0] sm:$0xff]
  %v429 = vld [vmem:[%s0 + $0xae8] sm:$0xff]
  %v430 = vld [vmem:[%s0 + $0xaf0] sm:$0xff]
  %v431 = vld [vmem:[%s0 + $0xaf8] sm:$0xff]
  %v432 = vld [vmem:[%s0 + $0xb00] sm:$0xff]
  %v433 = vld [vmem:[%s0 + $0xb08] sm:$0xff]
  %v434 = vld [vmem:[%s0 + $0xb10] sm:$0xff]
  %v435 = vld [vmem:[%s0 + $0xb18] sm:$0xff]
  %v436 = vld [vmem:[%s0 + $0xb20] sm:$0xff]
  %v437 = vld [vmem:[%s0 + $0xb28] sm:$0xff]
  %v438 = vld [vmem:[%s0 + $0xb30] sm:$0xff]
  %v439 = vld [vmem:[%s0 + $0xb38] sm:$0xff]
  %v440 = vld [vmem:[%s0 + $0xb40] sm:$0xff]
  %v441 = vld [vmem:[%s0 + $0xb48] sm:$0xff]
  %v442 = vld [vmem:[%s0 + $0xb50] sm:$0xff]
  %v443 = vld [vmem:[%s0 + $0xb58] sm:$0xff]
  %v444 = vld [vmem:[%s0 + $0xb60] sm:$0xff]
  %v445 = vld [vmem:[%s0 + $0xb68] sm:$0xff]
  %v446 = vld [vmem:[%s0 + $0xb70] sm:$0xff]
  %v447 = vld [vmem:[%s0 + $0xb78] sm:$0xff]
  %v448 = vld [vmem:[%s0 + $0xb80] sm:$0xff]
  %v449 = vld [vmem:[%s0 + $0xb88] sm:$0xff]
  %v450 = vld [vmem:[%s0 + $0xb90] sm:$0xff]
  %v451 = vld [vmem:[%s0 + $0xb98] sm:$0xff]
  %v452 = vld [vmem:[%s0 + $0xba0] sm:$0xff]
  %v453 = vld [vmem:[%s0 + $0xba8] sm:$0xff]
  %v454 = vld [vmem:[%s0 + $0xbb0] sm:$0xff]
  %v455 = vld [vmem:[%s0 + $0xbb8] sm:$0xff]
  %v456 = vld [vmem:[%s0 + $0xbc0] sm:$0xff]
  %v457 = vld [vmem:[%s0 + $0xbc8] sm:$0xff]
  %v458 = vld [vmem:[%s0 + $0xbd0] sm:$0xff]
  %v459 = vld [vmem:[%s0 + $0xbd8] sm:$0xff]
  %v460 = vld [vmem:[%s0 + $0xbe0] sm:$0xff]
  %v461 = vld [vmem:[%s0 + $0xbe8] sm:$0xff]
  %v462 = vld [vmem:[%s0 + $0xbf0] sm:$0xff]
  %v463 = vld [vmem:[%s0 + $0xbf8] sm:$0xff]
  %v464 = vld [vmem:[%s0 + $0xc00] sm:$0xff]
  %v465 = vld [vmem:[%s0 + $0xc08] sm:$0xff]
  %v466 = vld [vmem:[%s0 + $0xc10] sm:$0xff]
  %v467 = vld [vmem:[%s0 + $0xc18] sm:$0xff]
  %v468 = vld [vmem:[%s0 + $0xc20] sm:$0xff]
  %v469 = vld [vmem:[%s0 + $0xc28] sm:$0xff]
  %v470 = vld [vmem:[%s0 + $0xc30] sm:$0xff]
  %v471 = vld [vmem:[%s0 + $0xc38] sm:$0xff]
  %v472 = vld [vmem:[%s0 + $0xc40] sm:$0xff]
  %v473 = vld [vmem:[%s0 + $0xc48] sm:$0xff]
  %v474 = vld [vmem:[%s0 + $0xc50] sm:$0xff]
  %v475 = vld [vmem:[%s0 + $0xc58] sm:$0xff]
  %v476 = vld [vmem:[%s0 + $0xc60] sm:$0xff]
  %v477 = vld [vmem:[%s0 + $0xc68] sm:$0xff]
  %v478 = vld [vmem:[%s0 + $0xc70] sm:$0xff]
  %v479 = vld [vmem:[%s0 + $0xc78] sm:$0xff]
  %v480 = vld [vmem:[%s0 + $0xc80] sm:$0xff]
  %v481 = vld [vmem:[%s0 + $0xc88] sm:$0xff]
  %v482 = vld [vmem:[%s0 + $0xc90] sm:$0xff]
  %v483 = vld [vmem:[%s0 + $0xc98] sm:$0xff]
  %v484 = vld [vmem:[%s0 + $0xca0] sm:$0xff]
  %v485 = vld [vmem:[%s0 + $0xca8] sm:$0xff]
  %v486 = vld [vmem:[%s0 + $0xcb0] sm:$0xff]
  %v487 = vld [vmem:[%s0 + $0xcb8] sm:$0xff]
  %v488 = vld [vmem:[%s0 + $0xcc0] sm:$0xff]
  %v489 = vld [vmem:[%s0 + $0xcc8] sm:$0xff]
  %v490 = vld [vmem:[%s0 + $0xcd0] sm:$0xff]
  %v491 = vld [vmem:[%s0 + $0xcd8] sm:$0xff]
  %v492 = vld [vmem:[%s0 + $0xce0] sm:$0xff]
  %v493 = vld [vmem:[%s0 + $0xce8] sm:$0xff]
  %v494 = vld [vmem:[%s0 + $0xcf0] sm:$0xff]
  %v495 = vld [vmem:[%s0 + $0xcf8] sm:$0xff]
  %v496 = vld [vmem:[%s0 + $0xd00] sm:$0xff]
  %v497 = vld [vmem:[%s0 + $0xd08] sm:$0xff]
  %v498 = vld [vmem:[%s0 + $0xd10] sm:$0xff]
  %v499 = vld [vmem:[%s0 + $0xd18] sm:$0xff]
  %v500 = vld [vmem:[%s0 + $0xd20] sm:$0xff]
  %v501 = vld [vmem:[%s0 + $0xd28] sm:$0xff]
  %v502 = vld [vmem:[%s0 + $0xd30] sm:$0xff]
  %v503 = vld [vmem:[%s0 + $0xd38] sm:$0xff]
  %v504 = vld [vmem:[%s0 + $0xd40] sm:$0xff]
  %v505 = vld [vmem:[%s0 + $0xd48] sm:$0xff]
  %v506 = vld [vmem:[%s0 + $0xd50] sm:$0xff]
  %v507 = vld [vmem:[%s0 + $0xd58] sm:$0xff]
  %v508 = vld [vmem:[%s0 + $0xd60] sm:$0xff]
  %v509 = vld [vmem:[%s0 + $0xd68] sm:$0xff]
  %v510 = vld [vmem:[%s0 + $0xd70] sm:$0xff]
  %v511 = vld [vmem:[%s0 + $0xd78] sm:$0xff]
  %v512 = vld [vmem:[%s0 + $0xd80] sm:$0xff]
  %v513 = vld [vmem:[%s0 + $0xd88] sm:$0xff]
  %v514 = vld [vmem:[%s0 + $0xd90] sm:$0xff]
  %v515 = vld [vmem:[%s0 + $0xd98] sm:$0xff]
  %v516 = vld [vmem:[%s0 + $0xda0] sm:$0xff]
  %v517 = vld [vmem:[%s0 + $0xda8] sm:$0xff]
  %v518 = vld [vmem:[%s0 + $0xdb0] sm:$0xff]
  %v519 = vld [vmem:[%s0 + $0xdb8] sm:$0xff]
  %v520 = vld [vmem:[%s0 + $0xdc0] sm:$0xff]
  %v521 = vld [vmem:[%s0 + $0xdc8] sm:$0xff]
  %v522 = vld [vmem:[%s0 + $0xdd0] sm:$0xff]
  %v523 = vld [vmem:[%s0 + $0xdd8] sm:$0xff]
  %v524 = vld [vmem:[%s0 + $0xde0] sm:$0xff]
  %v525 = vld [vmem:[%s0 + $0xde8] sm:$0xff]
  %v526 = vld [vmem:[%s0 + $0xdf0] sm:$0xff]
  %v527 = vld [vmem:[%s0 + $0xdf8] sm:$0xff]
  %v528 = vld [vmem:[%s0 + $0xe00] sm:$0xff]
  %v529 = vld [vmem:[%s0 + $0xe08] sm:$0xff]
  %v530 = vld [vmem:[%s0 + $0xe10] sm:$0xff]
  %v531 = vld [vmem:[%s0 + $0xe18] sm:$0xff]
  %v532 = vld [vmem:[%s0 + $0xe20] sm:$0xff]
  %v533 = vld [vmem:[%s0 + $0xe28] sm:$0xff]
  %v534 = vld [vmem:[%s0 + $0xe30] sm:$0xff]
  %v535 = vld [vmem:[%s0 + $0xe38] sm:$0xff]
  %v536 = vld [vmem:[%s0 + $0xe40] sm:$0xff]
  %v537 = vld [vmem:[%s0 + $0xe48] sm:$0xff]
  %v538 = vld [vmem:[%s0 + $0xe50] sm:$0xff]
  %v539 = vld [vmem:[%s0 + $0xe58] sm:$0xff]
  %v540 = vld [vmem:[%s0 + $0xe60] sm:$0xff]
  %v541 = vld [vmem:[%s0 + $0xe68] sm:$0xff]
  %v542 = vld [vmem:[%s0 + $0xe70] sm:$0xff]
  %v543 = vld [vmem:[%s0 + $0xe78] sm:$0xff]
  %v544 = vld [vmem:[%s0 + $0xe80] sm:$0xff]
  %v545 = vld [vmem:[%s0 + $0xe88] sm:$0xff]
  %v546 = vld [vmem:[%s0 + $0xe90] sm:$0xff]
  %v547 = vld [vmem:[%s0 + $0xe98] sm:$0xff]
  %v548 = vld [vmem:[%s0 + $0xea0] sm:$0xff]
  %v549 = vld [vmem:[%s0 + $0xea8] sm:$0xff]
  %v550 = vld [vmem:[%s0 + $0xeb0] sm:$0xff]
  %v551 = vld [vmem:[%s0 + $0xeb8] sm:$0xff]
  %v552 = vld [vmem:[%s0 + $0xec0] sm:$0xff]
  %v553 = vld [vmem:[%s0 + $0xec8] sm:$0xff]
  %v554 = vld [vmem:[%s0 + $0xed0] sm:$0xff]
  %v555 = vld [vmem:[%s0 + $0xed8] sm:$0xff]
  %v556 = vld [vmem:[%s0 + $0xee0] sm:$0xff]
  %v557 = vld [vmem:[%s0 + $0xee8] sm:$0xff]
  %v558 = vld [vmem:[%s0 + $0xef0] sm:$0xff]
  %v559 = vld [vmem:[%s0 + $0xef8] sm:$0xff]
  %v560 = vld [vmem:[%s0 + $0xf00] sm:$0xff]
  %v561 = vld [vmem:[%s0 + $0xf08] sm:$0xff]
  %v562 = vld [vmem:[%s0 + $0xf10] sm:$0xff]
  %v563 = vld [vmem:[%s0 + $0xf18] sm:$0xff]
  %v564 = vld [vmem:[%s0 + $0xf20] sm:$0xff]
  %v565 = vld [vmem:[%s0 + $0xf28] sm:$0xff]
  %v566 = vld [vmem:[%s0 + $0xf30] sm:$0xff]
  %v567 = vld [vmem:[%s0 + $0xf38] sm:$0xff]
  %v568 = vld [vmem:[%s0 + $0xf40] sm:$0xff]
  %v569 = vld [vmem:[%s0 + $0xf48] sm:$0xff]
  %v570 = vld [vmem:[%s0 + $0xf50] sm:$0xff]
  %v571 = vld [vmem:[%s0 + $0xf58] sm:$0xff]
  %v572 = vld [vmem:[%s0 + $0xf60] sm:$0xff]
  %v573 = vld [vmem:[%s0 + $0xf68] sm:$0xff]
  %v574 = vld [vmem:[%s0 + $0xf70] sm:$0xff]
  %v575 = vld [vmem:[%s0 + $0xf78] sm:$0xff]
  %v576 = vld [vmem:[%s0 + $0xf80] sm:$0xff]
  %v577 = vld [vmem:[%s0 + $0xf88] sm:$0xff]
  %v578 = vld [vmem:[%s0 + $0xf90] sm:$0xff]
  %v579 = vld [vmem:[%s0 + $0xf98] sm:$0xff]
  %v580 = vld [vmem:[%s0 + $0xfa0] sm:$0xff]
  %v581 = vld [vmem:[%s0 + $0xfa8] sm:$0xff]
  %v582 = vld [vmem:[%s0 + $0xfb0] sm:$0xff]
  %v583 = vld [vmem:[%s0 + $0xfb8] sm:$0xff]
  %v584 = vld [vmem:[%s0 + $0xfc0] sm:$0xff]
  %v585 = vld [vmem:[%s0 + $0xfc8] sm:$0xff]
  %v586 = vld [vmem:[%s0 + $0xfd0] sm:$0xff]
  %v587 = vld [vmem:[%s0 + $0xfd8] sm:$0xff]
  %v588 = vld [vmem:[%s0 + $0xfe0] sm:$0xff]
  %v589 = vld [vmem:[%s0 + $0xfe8] sm:$0xff]
  %v590 = vld [vmem:[%s0 + $0xff0] sm:$0xff]
  %v591 = vld [vmem:[%s0 + $0xff8] sm:$0xff]
  %v592 = vld [vmem:[%s0 + $0x1000] sm:$0xff]
  %v593 = vld [vmem:[%s0 + $0x1008] sm:$0xff]
  %v594 = vld [vmem:[%s0 + $0x1010] sm:$0xff]
  %v595 = vld [vmem:[%s0 + $0x1018] sm:$0xff]
  %v596 = vld [vmem:[%s0 + $0x1020] sm:$0xff]
  %v597 = vld [vmem:[%s0 + $0x1028] sm:$0xff]
  %v598 = vld [vmem:[%s0 + $0x1030] sm:$0xff]
  %v599 = vld [vmem:[%s0 + $0x1038] sm:$0xff]
  %v600 = vld [vmem:[%s0 + $0x1040] sm:$0xff]
  %v601 = vld [vmem:[%s0 + $0x1048] sm:$0xff]
  %v602 = vld [vmem:[%s0 + $0x1050] sm:$0xff]
  %v603 = vld [vmem:[%s0 + $0x1058] sm:$0xff]
  %v604 = vld [vmem:[%s0 + $0x1060] sm:$0xff]
  %v605 = vld [vmem:[%s0 + $0x1068] sm:$0xff]
  %v606 = vld [vmem:[%s0 + $0x1070] sm:$0xff]
  %v607 = vld [vmem:[%s0 + $0x1078] sm:$0xff]
  %v608 = vld [vmem:[%s0 + $0x1080] sm:$0xff]
  %v609 = vld [vmem:[%s0 + $0x1088] sm:$0xff]
  %v610 = vld [vmem:[%s0 + $0x1090] sm:$0xff]
  %v611 = vld [vmem:[%s0 + $0x1098] sm:$0xff]
  %v612 = vld [vmem:[%s0 + $0x10a0] sm:$0xff]
  %v613 = vld [vmem:[%s0 + $0x10a8] sm:$0xff]
  %v614 = vld [vmem:[%s0 + $0x10b0] sm:$0xff]
  %v615 = vld [vmem:[%s0 + $0x10b8] sm:$0xff]
  %v616 = vld [vmem:[%s0 + $0x10c0] sm:$0xff]
  %v617 = vld [vmem:[%s0 + $0x10c8] sm:$0xff]
  %v618 = vld [vmem:[%s0 + $0x10d0] sm:$0xff]
  %v619 = vld [vmem:[%s0 + $0x10d8] sm:$0xff]
  %v620 = vld [vmem:[%s0 + $0x10e0] sm:$0xff]
  %v621 = vld [vmem:[%s0 + $0x10e8] sm:$0xff]
  %v622 = vld [vmem:[%s0 + $0x10f0] sm:$0xff]
  %v623 = vld [vmem:[%s0 + $0x10f8] sm:$0xff]
  %v624 = vld [vmem:[%s0 + $0x1100] sm:$0xff]
  %v625 = vld [vmem:[%s0 + $0x1108] sm:$0xff]
  %v626 = vld [vmem:[%s0 + $0x1110] sm:$0xff]
  %v627 = vld [vmem:[%s0 + $0x1118] sm:$0xff]
  %v628 = vld [vmem:[%s0 + $0x1120] sm:$0xff]
  %v629 = vld [vmem:[%s0 + $0x1128] sm:$0xff]
  %v630 = vld [vmem:[%s0 + $0x1130] sm:$0xff]
  %v631 = vld [vmem:[%s0 + $0x1138] sm:$0xff]
  %v632 = vld [vmem:[%s0 + $0x1140] sm:$0xff]
  %v633 = vld [vmem:[%s0 + $0x1148] sm:$0xff]
  %v634 = vld [vmem:[%s0 + $0x1150] sm:$0xff]
  %v635 = vld [vmem:[%s0 + $0x1158] sm:$0xff]
  %v636 = vld [vmem:[%s0 + $0x1160] sm:$0xff]
  %v637 = vld [vmem:[%s0 + $0x1168] sm:$0xff]
  %v638 = vld [vmem:[%s0 + $0x1170] sm:$0xff]
  %v639 = vld [vmem:[%s0 + $0x1178] sm:$0xff]
  %v640 = vld [vmem:[%s0 + $0x1180] sm:$0xff]
  %v641 = vld [vmem:[%s0 + $0x1188] sm:$0xff]
  %v642 = vld [vmem:[%s0 + $0x1190] sm:$0xff]
  %v643 = vld [vmem:[%s0 + $0x1198] sm:$0xff]
  %v644 = vld [vmem:[%s0 + $0x11a0] sm:$0xff]
  %v645 = vld [vmem:[%s0 + $0x11a8] sm:$0xff]
  %v646 = vld [vmem:[%s0 + $0x11b0] sm:$0xff]
  %v647 = vld [vmem:[%s0 + $0x11b8] sm:$0xff]
  %v648 = vld [vmem:[%s0 + $0x11c0] sm:$0xff]
  %v649 = vld [vmem:[%s0 + $0x11c8] sm:$0xff]
  %v650 = vld [vmem:[%s0 + $0x11d0] sm:$0xff]
  %v651 = vld [vmem:[%s0 + $0x11d8] sm:$0xff]
  %v652 = vld [vmem:[%s0 + $0x11e0] sm:$0xff]
  %v653 = vld [vmem:[%s0 + $0x11e8] sm:$0xff]
  %v654 = vld [vmem:[%s0 + $0x11f0] sm:$0xff]
  %v655 = vld [vmem:[%s0 + $0x11f8] sm:$0xff]
  %v656 = vpack.c.bf16 %v86, %v80
  %v657 = vpack.c.bf16 %v87, %v81
  %v658 = vpack.c.bf16 %v88, %v82
  %v659 = vpack.c.bf16 %v89, %v83
  %v660 = vpack.c.bf16 %v90, %v84
  %v661 = vpack.c.bf16 %v91, %v85
  %v662 = vpack.c.bf16 %v98, %v92
  %v663 = vpack.c.bf16 %v99, %v93
  %v664 = vpack.c.bf16 %v100, %v94
  %v665 = vpack.c.bf16 %v101, %v95
  %v666 = vpack.c.bf16 %v102, %v96
  %v667 = vpack.c.bf16 %v103, %v97
  %v668 = vpack.c.bf16 %v110, %v104
  %v669 = vpack.c.bf16 %v111, %v105
  %v670 = vpack.c.bf16 %v112, %v106
  %v671 = vpack.c.bf16 %v113, %v107
  %v672 = vpack.c.bf16 %v114, %v108
  %v673 = vpack.c.bf16 %v115, %v109
  %v674 = vpack.c.bf16 %v122, %v116
  %v675 = vpack.c.bf16 %v123, %v117
  %v676 = vpack.c.bf16 %v124, %v118
  %v677 = vpack.c.bf16 %v125, %v119
  %v678 = vpack.c.bf16 %v126, %v120
  %v679 = vpack.c.bf16 %v127, %v121
  %v680 = vpack.c.bf16 %v134, %v128
  %v681 = vpack.c.bf16 %v135, %v129
  %v682 = vpack.c.bf16 %v136, %v130
  %v683 = vpack.c.bf16 %v137, %v131
  %v684 = vpack.c.bf16 %v138, %v132
  %v685 = vpack.c.bf16 %v139, %v133
  %v686 = vpack.c.bf16 %v146, %v140
  %v687 = vpack.c.bf16 %v147, %v141
  %v688 = vpack.c.bf16 %v148, %v142
  %v689 = vpack.c.bf16 %v149, %v143
  %v690 = vpack.c.bf16 %v150, %v144
  %v691 = vpack.c.bf16 %v151, %v145
  %v692 = vpack.c.bf16 %v158, %v152
  %v693 = vpack.c.bf16 %v159, %v153
  %v694 = vpack.c.bf16 %v160, %v154
  %v695 = vpack.c.bf16 %v161, %v155
  %v696 = vpack.c.bf16 %v162, %v156
  %v697 = vpack.c.bf16 %v163, %v157
  %v698 = vpack.c.bf16 %v170, %v164
  %v699 = vpack.c.bf16 %v171, %v165
  %v700 = vpack.c.bf16 %v172, %v166
  %v701 = vpack.c.bf16 %v173, %v167
  %v702 = vpack.c.bf16 %v174, %v168
  %v703 = vpack.c.bf16 %v175, %v169
  %v704 = vpack.c.bf16 %v182, %v176
  %v705 = vpack.c.bf16 %v183, %v177
  %v706 = vpack.c.bf16 %v184, %v178
  %v707 = vpack.c.bf16 %v185, %v179
  %v708 = vpack.c.bf16 %v186, %v180
  %v709 = vpack.c.bf16 %v187, %v181
  %v710 = vpack.c.bf16 %v194, %v188
  %v711 = vpack.c.bf16 %v195, %v189
  %v712 = vpack.c.bf16 %v196, %v190
  %v713 = vpack.c.bf16 %v197, %v191
  %v714 = vpack.c.bf16 %v198, %v192
  %v715 = vpack.c.bf16 %v199, %v193
  %v716 = vpack.c.bf16 %v206, %v200
  %v717 = vpack.c.bf16 %v207, %v201
  %v718 = vpack.c.bf16 %v208, %v202
  %v719 = vpack.c.bf16 %v209, %v203
  %v720 = vpack.c.bf16 %v210, %v204
  %v721 = vpack.c.bf16 %v211, %v205
  %v722 = vpack.c.bf16 %v218, %v212
  %v723 = vpack.c.bf16 %v219, %v213
  %v724 = vpack.c.bf16 %v220, %v214
  %v725 = vpack.c.bf16 %v221, %v215
  %v726 = vpack.c.bf16 %v222, %v216
  %v727 = vpack.c.bf16 %v223, %v217
  %v728 = vpack.c.bf16 %v230, %v224
  %v729 = vpack.c.bf16 %v231, %v225
  %v730 = vpack.c.bf16 %v232, %v226
  %v731 = vpack.c.bf16 %v233, %v227
  %v732 = vpack.c.bf16 %v234, %v228
  %v733 = vpack.c.bf16 %v235, %v229
  %v734 = vpack.c.bf16 %v242, %v236
  %v735 = vpack.c.bf16 %v243, %v237
  %v736 = vpack.c.bf16 %v244, %v238
  %v737 = vpack.c.bf16 %v245, %v239
  %v738 = vpack.c.bf16 %v246, %v240
  %v739 = vpack.c.bf16 %v247, %v241
  %v740 = vpack.c.bf16 %v254, %v248
  %v741 = vpack.c.bf16 %v255, %v249
  %v742 = vpack.c.bf16 %v256, %v250
  %v743 = vpack.c.bf16 %v257, %v251
  %v744 = vpack.c.bf16 %v258, %v252
  %v745 = vpack.c.bf16 %v259, %v253
  %v746 = vpack.c.bf16 %v266, %v260
  %v747 = vpack.c.bf16 %v267, %v261
  %v748 = vpack.c.bf16 %v268, %v262
  %v749 = vpack.c.bf16 %v269, %v263
  %v750 = vpack.c.bf16 %v270, %v264
  %v751 = vpack.c.bf16 %v271, %v265
  %v752 = vpack.c.bf16 %v278, %v272
  %v753 = vpack.c.bf16 %v279, %v273
  %v754 = vpack.c.bf16 %v280, %v274
  %v755 = vpack.c.bf16 %v281, %v275
  %v756 = vpack.c.bf16 %v282, %v276
  %v757 = vpack.c.bf16 %v283, %v277
  %v758 = vpack.c.bf16 %v290, %v284
  %v759 = vpack.c.bf16 %v291, %v285
  %v760 = vpack.c.bf16 %v292, %v286
  %v761 = vpack.c.bf16 %v293, %v287
  %v762 = vpack.c.bf16 %v294, %v288
  %v763 = vpack.c.bf16 %v295, %v289
  %v764 = vpack.c.bf16 %v302, %v296
  %v765 = vpack.c.bf16 %v303, %v297
  %v766 = vpack.c.bf16 %v304, %v298
  %v767 = vpack.c.bf16 %v305, %v299
  %v768 = vpack.c.bf16 %v306, %v300
  %v769 = vpack.c.bf16 %v307, %v301
  %v770 = vpack.c.bf16 %v314, %v308
  %v771 = vpack.c.bf16 %v315, %v309
  %v772 = vpack.c.bf16 %v316, %v310
  %v773 = vpack.c.bf16 %v317, %v311
  %v774 = vpack.c.bf16 %v318, %v312
  %v775 = vpack.c.bf16 %v319, %v313
  %v776 = vpack.c.bf16 %v326, %v320
  %v777 = vpack.c.bf16 %v327, %v321
  %v778 = vpack.c.bf16 %v328, %v322
  %v779 = vpack.c.bf16 %v329, %v323
  %v780 = vpack.c.bf16 %v330, %v324
  %v781 = vpack.c.bf16 %v331, %v325
  %v782 = vpack.c.bf16 %v338, %v332
  %v783 = vpack.c.bf16 %v339, %v333
  %v784 = vpack.c.bf16 %v340, %v334
  %v785 = vpack.c.bf16 %v341, %v335
  %v786 = vpack.c.bf16 %v342, %v336
  %v787 = vpack.c.bf16 %v343, %v337
  %v788 = vpack.c.bf16 %v350, %v344
  %v789 = vpack.c.bf16 %v351, %v345
  %v790 = vpack.c.bf16 %v352, %v346
  %v791 = vpack.c.bf16 %v353, %v347
  %v792 = vpack.c.bf16 %v354, %v348
  %v793 = vpack.c.bf16 %v355, %v349
  %v794 = vpack.c.bf16 %v362, %v356
  %v795 = vpack.c.bf16 %v363, %v357
  %v796 = vpack.c.bf16 %v364, %v358
  %v797 = vpack.c.bf16 %v365, %v359
  %v798 = vpack.c.bf16 %v366, %v360
  %v799 = vpack.c.bf16 %v367, %v361
  %v800 = vpack.c.bf16 %v374, %v368
  %v801 = vpack.c.bf16 %v375, %v369
  %v802 = vpack.c.bf16 %v376, %v370
  %v803 = vpack.c.bf16 %v377, %v371
  %v804 = vpack.c.bf16 %v378, %v372
  %v805 = vpack.c.bf16 %v379, %v373
  %v806 = vpack.c.bf16 %v386, %v380
  %v807 = vpack.c.bf16 %v387, %v381
  %v808 = vpack.c.bf16 %v388, %v382
  %v809 = vpack.c.bf16 %v389, %v383
  %v810 = vpack.c.bf16 %v390, %v384
  %v811 = vpack.c.bf16 %v391, %v385
  %v812 = vpack.c.bf16 %v398, %v392
  %v813 = vpack.c.bf16 %v399, %v393
  %v814 = vpack.c.bf16 %v400, %v394
  %v815 = vpack.c.bf16 %v401, %v395
  %v816 = vpack.c.bf16 %v402, %v396
  %v817 = vpack.c.bf16 %v403, %v397
  %v818 = vpack.c.bf16 %v410, %v404
  %v819 = vpack.c.bf16 %v411, %v405
  %v820 = vpack.c.bf16 %v412, %v406
  %v821 = vpack.c.bf16 %v413, %v407
  %v822 = vpack.c.bf16 %v414, %v408
  %v823 = vpack.c.bf16 %v415, %v409
  %v824 = vpack.c.bf16 %v422, %v416
  %v825 = vpack.c.bf16 %v423, %v417
  %v826 = vpack.c.bf16 %v424, %v418
  %v827 = vpack.c.bf16 %v425, %v419
  %v828 = vpack.c.bf16 %v426, %v420
  %v829 = vpack.c.bf16 %v427, %v421
  %v830 = vpack.c.bf16 %v434, %v428
  %v831 = vpack.c.bf16 %v435, %v429
  %v832 = vpack.c.bf16 %v436, %v430
  %v833 = vpack.c.bf16 %v437, %v431
  %v834 = vpack.c.bf16 %v438, %v432
  %v835 = vpack.c.bf16 %v439, %v433
  %v836 = vpack.c.bf16 %v446, %v440
  %v837 = vpack.c.bf16 %v447, %v441
  %v838 = vpack.c.bf16 %v448, %v442
  %v839 = vpack.c.bf16 %v449, %v443
  %v840 = vpack.c.bf16 %v450, %v444
  %v841 = vpack.c.bf16 %v451, %v445
  %v842 = vpack.c.bf16 %v458, %v452
  %v843 = vpack.c.bf16 %v459, %v453
  %v844 = vpack.c.bf16 %v460, %v454
  %v845 = vpack.c.bf16 %v461, %v455
  %v846 = vpack.c.bf16 %v462, %v456
  %v847 = vpack.c.bf16 %v463, %v457
  %v848 = vpack.c.bf16 %v470, %v464
  %v849 = vpack.c.bf16 %v471, %v465
  %v850 = vpack.c.bf16 %v472, %v466
  %v851 = vpack.c.bf16 %v473, %v467
  %v852 = vpack.c.bf16 %v474, %v468
  %v853 = vpack.c.bf16 %v475, %v469
  %v854 = vpack.c.bf16 %v482, %v476
  %v855 = vpack.c.bf16 %v483, %v477
  %v856 = vpack.c.bf16 %v484, %v478
  %v857 = vpack.c.bf16 %v485, %v479
  %v858 = vpack.c.bf16 %v486, %v480
  %v859 = vpack.c.bf16 %v487, %v481
  %v860 = vpack.c.bf16 %v494, %v488
  %v861 = vpack.c.bf16 %v495, %v489
  %v862 = vpack.c.bf16 %v496, %v490
  %v863 = vpack.c.bf16 %v497, %v491
  %v864 = vpack.c.bf16 %v498, %v492
  %v865 = vpack.c.bf16 %v499, %v493
  %v866 = vpack.c.bf16 %v506, %v500
  %v867 = vpack.c.bf16 %v507, %v501
  %v868 = vpack.c.bf16 %v508, %v502
  %v869 = vpack.c.bf16 %v509, %v503
  %v870 = vpack.c.bf16 %v510, %v504
  %v871 = vpack.c.bf16 %v511, %v505
  %v872 = vpack.c.bf16 %v518, %v512
  %v873 = vpack.c.bf16 %v519, %v513
  %v874 = vpack.c.bf16 %v520, %v514
  %v875 = vpack.c.bf16 %v521, %v515
  %v876 = vpack.c.bf16 %v522, %v516
  %v877 = vpack.c.bf16 %v523, %v517
  %v878 = vpack.c.bf16 %v530, %v524
  %v879 = vpack.c.bf16 %v531, %v525
  %v880 = vpack.c.bf16 %v532, %v526
  %v881 = vpack.c.bf16 %v533, %v527
  %v882 = vpack.c.bf16 %v534, %v528
  %v883 = vpack.c.bf16 %v535, %v529
  %v884 = vpack.c.bf16 %v542, %v536
  %v885 = vpack.c.bf16 %v543, %v537
  %v886 = vpack.c.bf16 %v544, %v538
  %v887 = vpack.c.bf16 %v545, %v539
  %v888 = vpack.c.bf16 %v546, %v540
  %v889 = vpack.c.bf16 %v547, %v541
  %v890 = vpack.c.bf16 %v554, %v548
  %v891 = vpack.c.bf16 %v555, %v549
  %v892 = vpack.c.bf16 %v556, %v550
  %v893 = vpack.c.bf16 %v557, %v551
  %v894 = vpack.c.bf16 %v558, %v552
  %v895 = vpack.c.bf16 %v559, %v553
  %v896 = vpack.c.bf16 %v566, %v560
  %v897 = vpack.c.bf16 %v567, %v561
  %v898 = vpack.c.bf16 %v568, %v562
  %v899 = vpack.c.bf16 %v569, %v563
  %v900 = vpack.c.bf16 %v570, %v564
  %v901 = vpack.c.bf16 %v571, %v565
  %v902 = vpack.c.bf16 %v578, %v572
  %v903 = vpack.c.bf16 %v579, %v573
  %v904 = vpack.c.bf16 %v580, %v574
  %v905 = vpack.c.bf16 %v581, %v575
  %v906 = vpack.c.bf16 %v582, %v576
  %v907 = vpack.c.bf16 %v583, %v577
  %v908 = vpack.c.bf16 %v590, %v584
  %v909 = vpack.c.bf16 %v591, %v585
  %v910 = vpack.c.bf16 %v592, %v586
  %v911 = vpack.c.bf16 %v593, %v587
  %v912 = vpack.c.bf16 %v594, %v588
  %v913 = vpack.c.bf16 %v595, %v589
  %v914 = vpack.c.bf16 %v602, %v596
  %v915 = vpack.c.bf16 %v603, %v597
  %v916 = vpack.c.bf16 %v604, %v598
  %v917 = vpack.c.bf16 %v605, %v599
  %v918 = vpack.c.bf16 %v606, %v600
  %v919 = vpack.c.bf16 %v607, %v601
  %v920 = vpack.c.bf16 %v614, %v608
  %v921 = vpack.c.bf16 %v615, %v609
  %v922 = vpack.c.bf16 %v616, %v610
  %v923 = vpack.c.bf16 %v617, %v611
  %v924 = vpack.c.bf16 %v618, %v612
  %v925 = vpack.c.bf16 %v619, %v613
  %v926 = vpack.c.bf16 %v626, %v620
  %v927 = vpack.c.bf16 %v627, %v621
  %v928 = vpack.c.bf16 %v628, %v622
  %v929 = vpack.c.bf16 %v629, %v623
  %v930 = vpack.c.bf16 %v630, %v624
  %v931 = vpack.c.bf16 %v631, %v625
  %v932 = vpack.c.bf16 %v638, %v632
  %v933 = vpack.c.bf16 %v639, %v633
  %v934 = vpack.c.bf16 %v640, %v634
  %v935 = vpack.c.bf16 %v641, %v635
  %v936 = vpack.c.bf16 %v642, %v636
  %v937 = vpack.c.bf16 %v643, %v637
  %v938 = vpack.c.bf16 %v650, %v644
  %v939 = vpack.c.bf16 %v651, %v645
  %v940 = vpack.c.bf16 %v652, %v646
  %v941 = vpack.c.bf16 %v653, %v647
  %v942 = vpack.c.bf16 %v654, %v648
  %v943 = vpack.c.bf16 %v655, %v649
  %v944 = vld [vmem:[%s2] sm:$0xff]
  %v945 = vld [vmem:[%s2 + $0x8] sm:$0xff]
  %v946 = vld [vmem:[%s2 + $0x10] sm:$0xff]
  %v947 = vld [vmem:[%s2 + $0x18] sm:$0xff]
  %v948 = vld [vmem:[%s2 + $0x20] sm:$0xff]
  %v949 = vld [vmem:[%s2 + $0x28] sm:$0xff]
  %v950 = vld [vmem:[%s2 + $0x30] sm:$0xff]
  %v951 = vld [vmem:[%s2 + $0x38] sm:$0xff]
  %v952 = vld [vmem:[%s2 + $0x40] sm:$0xff]
  %v953 = vld [vmem:[%s2 + $0x48] sm:$0xff]
  %v954 = vld [vmem:[%s2 + $0x50] sm:$0xff]
  %v955 = vld [vmem:[%s2 + $0x58] sm:$0xff]
  %v956 = vld [vmem:[%s2 + $0x60] sm:$0xff]
  %v957 = vld [vmem:[%s2 + $0x68] sm:$0xff]
  %v958 = vld [vmem:[%s2 + $0x70] sm:$0xff]
  %v959 = vld [vmem:[%s2 + $0x78] sm:$0xff]
  %v960 = vld [vmem:[%s2 + $0x80] sm:$0xff]
  %v961 = vld [vmem:[%s2 + $0x88] sm:$0xff]
  %963 = vset.pattern.permute.xlu0 0
  %964 = vperm.xlu0 %963, %v30
  %v965 = vpop.permute.xlu0 %964
  %968 = vset.pattern.permute.xlu0 0
  %969 = vperm.xlu0 %968, %v31
  %v970 = vpop.permute.xlu0 %969
  %973 = vset.pattern.permute.xlu0 0
  %974 = vperm.xlu0 %973, %v32
  %v975 = vpop.permute.xlu0 %974
  %978 = vset.pattern.permute.xlu0 0
  %979 = vperm.xlu0 %978, %v33
  %v980 = vpop.permute.xlu0 %979
  %983 = vset.pattern.permute.xlu0 0
  %984 = vperm.xlu0 %983, %v34
  %v985 = vpop.permute.xlu0 %984
  %988 = vset.pattern.permute.xlu0 0
  %989 = vperm.xlu0 %988, %v35
  %v990 = vpop.permute.xlu0 %989
  %v1010 = vunpack.c.l.b16 %v944
  %v1011 = vunpack.c.h.b16 %v944
  %v1012 = vunpack.c.l.b16 %v945
  %v1013 = vunpack.c.h.b16 %v945
  %v1014 = vunpack.c.l.b16 %v946
  %v1015 = vunpack.c.h.b16 %v946
  %v1016 = vunpack.c.l.b16 %v947
  %v1017 = vunpack.c.h.b16 %v947
  %v1018 = vunpack.c.l.b16 %v948
  %v1019 = vunpack.c.h.b16 %v948
  %v1020 = vunpack.c.l.b16 %v949
  %v1021 = vunpack.c.h.b16 %v949
  %v1022 = vunpack.c.l.b16 %v950
  %v1023 = vunpack.c.h.b16 %v950
  %v1024 = vunpack.c.l.b16 %v951
  %v1025 = vunpack.c.h.b16 %v951
  %v1026 = vunpack.c.l.b16 %v952
  %v1027 = vunpack.c.h.b16 %v952
  %v1028 = vunpack.c.l.b16 %v953
  %v1029 = vunpack.c.h.b16 %v953
  %v1030 = vunpack.c.l.b16 %v954
  %v1031 = vunpack.c.h.b16 %v954
  %v1032 = vunpack.c.l.b16 %v955
  %v1033 = vunpack.c.h.b16 %v955
  %v1034 = vunpack.c.l.b16 %v956
  %v1035 = vunpack.c.h.b16 %v956
  %v1036 = vunpack.c.l.b16 %v957
  %v1037 = vunpack.c.h.b16 %v957
  %v1038 = vunpack.c.l.b16 %v958
  %v1039 = vunpack.c.h.b16 %v958
  %v1040 = vunpack.c.l.b16 %v959
  %v1041 = vunpack.c.h.b16 %v959
  %v1042 = vunpack.c.l.b16 %v960
  %v1043 = vunpack.c.h.b16 %v960
  %v1044 = vunpack.c.l.b16 %v961
  %v1045 = vunpack.c.h.b16 %v961
  %v1046 = vpack.c.b16 %v1016, %v1010
  %v1047 = vpack.c.b16 %v1017, %v1011
  %v1048 = vpack.c.b16 %v1018, %v1012
  %v1049 = vpack.c.b16 %v1019, %v1013
  %v1050 = vpack.c.b16 %v1020, %v1014
  %v1051 = vpack.c.b16 %v1021, %v1015
  %v1052 = vpack.c.b16 %v1028, %v1022
  %v1053 = vpack.c.b16 %v1029, %v1023
  %v1054 = vpack.c.b16 %v1030, %v1024
  %v1055 = vpack.c.b16 %v1031, %v1025
  %v1056 = vpack.c.b16 %v1032, %v1026
  %v1057 = vpack.c.b16 %v1033, %v1027
  %v1058 = vpack.c.b16 %v1040, %v1034
  %v1059 = vpack.c.b16 %v1041, %v1035
  %v1060 = vpack.c.b16 %v1042, %v1036
  %v1061 = vpack.c.b16 %v1043, %v1037
  %v1062 = vpack.c.b16 %v1044, %v1038
  %v1063 = vpack.c.b16 %v1045, %v1039
  %1082 = vmatprep.subr.bf16.mxu0 %v699
  %1083 = vmatpush1.bf16.msra.mxu0 %v698
  %1084 = vmatprep.subr.bf16.mxu0 %v693
  %1085 = vmatpush1.bf16.msra.mxu0 %v692
  %1086 = vmatprep.subr.bf16.mxu0 %v687
  %1087 = vmatpush1.bf16.msra.mxu0 %v686
  %1088 = vmatprep.subr.bf16.mxu0 %v681
  %1089 = vmatpush1.bf16.msra.mxu0 %v680
  %1090 = vmatprep.subr.bf16.mxu0 %v675
  %1091 = vmatpush1.bf16.msra.mxu0 %v674
  %1092 = vmatprep.subr.bf16.mxu0 %v669
  %1093 = vmatpush1.bf16.msra.mxu0 %v668
  %1094 = vmatprep.subr.bf16.mxu0 %v663
  %1095 = vmatpush1.bf16.msra.mxu0 %v662
  %1096 = vmatprep.subr.bf16.mxu0 %v657
  %1097 = vmatpush1.bf16.msra.mxu0 %v656
  %1098 = vmatprep.subr.bf16.mxu0 %v747
  %1099 = vmatpush2.bf16.msra.mxu0 %v746
  %1100 = vmatprep.subr.bf16.mxu0 %v741
  %1101 = vmatpush2.bf16.msra.mxu0 %v740
  %1102 = vmatprep.subr.bf16.mxu0 %v735
  %1103 = vmatpush2.bf16.msra.mxu0 %v734
  %1104 = vmatprep.subr.bf16.mxu0 %v729
  %1105 = vmatpush2.bf16.msra.mxu0 %v728
  %1106 = vmatprep.subr.bf16.mxu0 %v723
  %1107 = vmatpush2.bf16.msra.mxu0 %v722
  %1108 = vmatprep.subr.bf16.mxu0 %v717
  %1109 = vmatpush2.bf16.msra.mxu0 %v716
  %1110 = vmatprep.subr.bf16.mxu0 %v711
  %1111 = vmatpush2.bf16.msra.mxu0 %v710
  %1112 = vmatprep.subr.bf16.mxu0 %v705
  %1113 = vmatpush2.bf16.msra.mxu0 %v704
  %1114 = vmatprep.mubr.bf16.mxu0 %v1047
  %1115 = vmatmul.mubr.bf16.gmra.mxu0 %v1046
  %v1116 = vpop.f32.mrf.mxu0
  %v1117 = vadd.f32 %v965, %v1116
  %v1118 = vpop.f32.mrf.mxu0
  %v1119 = vadd.f32 %v965, %v1118
  %v1120 = vpop.f32.mrf.mxu0
  %v1121 = vadd.f32 %v970, %v1120
  %v1122 = vpop.f32.mrf.mxu0
  %v1123 = vadd.f32 %v970, %v1122
  %1124 = vmatprep.mubr.bf16.mxu0 %v1053
  %1125 = vmatmul.mubr.bf16.gmra.mxu0 %v1052
  %v1126 = vpop.f32.mrf.mxu0
  %v1127 = vadd.f32 %v975, %v1126
  %v1128 = vpop.f32.mrf.mxu0
  %v1129 = vadd.f32 %v975, %v1128
  %v1130 = vpop.f32.mrf.mxu0
  %v1131 = vadd.f32 %v980, %v1130
  %v1132 = vpop.f32.mrf.mxu0
  %v1133 = vadd.f32 %v980, %v1132
  %1134 = vmatprep.mubr.bf16.mxu0 %v1059
  %1135 = vmatmul.mubr.bf16.gmra.mxu0 %v1058
  %v1136 = vpop.f32.mrf.mxu0
  %v1137 = vadd.f32 %v985, %v1136
  %v1138 = vpop.f32.mrf.mxu0
  %v1139 = vadd.f32 %v985, %v1138
  %v1140 = vpop.f32.mrf.mxu0
  %v1141 = vadd.f32 %v990, %v1140
  %v1142 = vpop.f32.mrf.mxu0
  %v1143 = vadd.f32 %v990, %v1142
  %1144 = vdwg.mxu0
  %1145 = vmatprep.subr.bf16.mxu0 %v795
  %1146 = vmatpush1.bf16.msra.mxu0 %v794
  %1147 = vmatprep.subr.bf16.mxu0 %v789
  %1148 = vmatpush1.bf16.msra.mxu0 %v788
  %1149 = vmatprep.subr.bf16.mxu0 %v783
  %1150 = vmatpush1.bf16.msra.mxu0 %v782
  %1151 = vmatprep.subr.bf16.mxu0 %v777
  %1152 = vmatpush1.bf16.msra.mxu0 %v776
  %1153 = vmatprep.subr.bf16.mxu0 %v771
  %1154 = vmatpush1.bf16.msra.mxu0 %v770
  %1155 = vmatprep.subr.bf16.mxu0 %v765
  %1156 = vmatpush1.bf16.msra.mxu0 %v764
  %1157 = vmatprep.subr.bf16.mxu0 %v759
  %1158 = vmatpush1.bf16.msra.mxu0 %v758
  %1159 = vmatprep.subr.bf16.mxu0 %v753
  %1160 = vmatpush1.bf16.msra.mxu0 %v752
  %1161 = vmatprep.subr.bf16.mxu0 %v843
  %1162 = vmatpush2.bf16.msra.mxu0 %v842
  %1163 = vmatprep.subr.bf16.mxu0 %v837
  %1164 = vmatpush2.bf16.msra.mxu0 %v836
  %1165 = vmatprep.subr.bf16.mxu0 %v831
  %1166 = vmatpush2.bf16.msra.mxu0 %v830
  %1167 = vmatprep.subr.bf16.mxu0 %v825
  %1168 = vmatpush2.bf16.msra.mxu0 %v824
  %1169 = vmatprep.subr.bf16.mxu0 %v819
  %1170 = vmatpush2.bf16.msra.mxu0 %v818
  %1171 = vmatprep.subr.bf16.mxu0 %v813
  %1172 = vmatpush2.bf16.msra.mxu0 %v812
  %1173 = vmatprep.subr.bf16.mxu0 %v807
  %1174 = vmatpush2.bf16.msra.mxu0 %v806
  %1175 = vmatprep.subr.bf16.mxu0 %v801
  %1176 = vmatpush2.bf16.msra.mxu0 %v800
  %1177 = vmatprep.mubr.bf16.mxu0 %v1049
  %1178 = vmatmul.mubr.bf16.gmra.mxu0 %v1048
  %v1179 = vpop.f32.mrf.mxu0
  %v1180 = vadd.f32 %v1117, %v1179
  %v1181 = vpop.f32.mrf.mxu0
  %v1182 = vadd.f32 %v1119, %v1181
  %v1183 = vpop.f32.mrf.mxu0
  %v1184 = vadd.f32 %v1121, %v1183
  %v1185 = vpop.f32.mrf.mxu0
  %v1186 = vadd.f32 %v1123, %v1185
  %1187 = vmatprep.mubr.bf16.mxu0 %v1055
  %1188 = vmatmul.mubr.bf16.gmra.mxu0 %v1054
  %v1189 = vpop.f32.mrf.mxu0
  %v1190 = vadd.f32 %v1127, %v1189
  %v1191 = vpop.f32.mrf.mxu0
  %v1192 = vadd.f32 %v1129, %v1191
  %v1193 = vpop.f32.mrf.mxu0
  %v1194 = vadd.f32 %v1131, %v1193
  %v1195 = vpop.f32.mrf.mxu0
  %v1196 = vadd.f32 %v1133, %v1195
  %1197 = vmatprep.mubr.bf16.mxu0 %v1061
  %1198 = vmatmul.mubr.bf16.gmra.mxu0 %v1060
  %v1199 = vpop.f32.mrf.mxu0
  %v1200 = vadd.f32 %v1137, %v1199
  %v1201 = vpop.f32.mrf.mxu0
  %v1202 = vadd.f32 %v1139, %v1201
  %v1203 = vpop.f32.mrf.mxu0
  %v1204 = vadd.f32 %v1141, %v1203
  %v1205 = vpop.f32.mrf.mxu0
  %v1206 = vadd.f32 %v1143, %v1205
  %1207 = vdwg.mxu0
  %1208 = vmatprep.subr.bf16.mxu0 %v891
  %1209 = vmatpush1.bf16.msra.mxu0 %v890
  %1210 = vmatprep.subr.bf16.mxu0 %v885
  %1211 = vmatpush1.bf16.msra.mxu0 %v884
  %1212 = vmatprep.subr.bf16.mxu0 %v879
  %1213 = vmatpush1.bf16.msra.mxu0 %v878
  %1214 = vmatprep.subr.bf16.mxu0 %v873
  %1215 = vmatpush1.bf16.msra.mxu0 %v872
  %1216 = vmatprep.subr.bf16.mxu0 %v867
  %1217 = vmatpush1.bf16.msra.mxu0 %v866
  %1218 = vmatprep.subr.bf16.mxu0 %v861
  %1219 = vmatpush1.bf16.msra.mxu0 %v860
  %1220 = vmatprep.subr.bf16.mxu0 %v855
  %1221 = vmatpush1.bf16.msra.mxu0 %v854
  %1222 = vmatprep.subr.bf16.mxu0 %v849
  %1223 = vmatpush1.bf16.msra.mxu0 %v848
  %1224 = vmatprep.subr.bf16.mxu0 %v939
  %1225 = vmatpush2.bf16.msra.mxu0 %v938
  %1226 = vmatprep.subr.bf16.mxu0 %v933
  %1227 = vmatpush2.bf16.msra.mxu0 %v932
  %1228 = vmatprep.subr.bf16.mxu0 %v927
  %1229 = vmatpush2.bf16.msra.mxu0 %v926
  %1230 = vmatprep.subr.bf16.mxu0 %v921
  %1231 = vmatpush2.bf16.msra.mxu0 %v920
  %1232 = vmatprep.subr.bf16.mxu0 %v915
  %1233 = vmatpush2.bf16.msra.mxu0 %v914
  %1234 = vmatprep.subr.bf16.mxu0 %v909
  %1235 = vmatpush2.bf16.msra.mxu0 %v908
  %1236 = vmatprep.subr.bf16.mxu0 %v903
  %1237 = vmatpush2.bf16.msra.mxu0 %v902
  %1238 = vmatprep.subr.bf16.mxu0 %v897
  %1239 = vmatpush2.bf16.msra.mxu0 %v896
  %1240 = vmatprep.mubr.bf16.mxu0 %v1051
  %1241 = vmatmul.mubr.bf16.gmra.mxu0 %v1050
  %v1242 = vpop.f32.mrf.mxu0
  %v1243 = vadd.f32 %v1180, %v1242
  %v1244 = vpop.f32.mrf.mxu0
  %v1245 = vadd.f32 %v1182, %v1244
  %v1246 = vpop.f32.mrf.mxu0
  %v1247 = vadd.f32 %v1184, %v1246
  %v1248 = vpop.f32.mrf.mxu0
  %v1249 = vadd.f32 %v1186, %v1248
  %1250 = vmatprep.mubr.bf16.mxu0 %v1057
  %1251 = vmatmul.mubr.bf16.gmra.mxu0 %v1056
  %v1252 = vpop.f32.mrf.mxu0
  %v1253 = vadd.f32 %v1190, %v1252
  %v1254 = vpop.f32.mrf.mxu0
  %v1255 = vadd.f32 %v1192, %v1254
  %v1256 = vpop.f32.mrf.mxu0
  %v1257 = vadd.f32 %v1194, %v1256
  %v1258 = vpop.f32.mrf.mxu0
  %v1259 = vadd.f32 %v1196, %v1258
  %1260 = vmatprep.mubr.bf16.mxu0 %v1063
  %1261 = vmatmul.mubr.bf16.gmra.mxu0 %v1062
  %v1262 = vpop.f32.mrf.mxu0
  %v1263 = vadd.f32 %v1200, %v1262
  %v1264 = vpop.f32.mrf.mxu0
  %v1265 = vadd.f32 %v1202, %v1264
  %v1266 = vpop.f32.mrf.mxu0
  %v1267 = vadd.f32 %v1204, %v1266
  %v1268 = vpop.f32.mrf.mxu0
  %v1269 = vadd.f32 %v1206, %v1268
  %1270 = vdwg.mxu0
  %1271 = vmatprep.subr.bf16.mxu0 %v701
  %1272 = vmatpush1.bf16.msra.mxu0 %v700
  %1273 = vmatprep.subr.bf16.mxu0 %v695
  %1274 = vmatpush1.bf16.msra.mxu0 %v694
  %1275 = vmatprep.subr.bf16.mxu0 %v689
  %1276 = vmatpush1.bf16.msra.mxu0 %v688
  %1277 = vmatprep.subr.bf16.mxu0 %v683
  %1278 = vmatpush1.bf16.msra.mxu0 %v682
  %1279 = vmatprep.subr.bf16.mxu0 %v677
  %1280 = vmatpush1.bf16.msra.mxu0 %v676
  %1281 = vmatprep.subr.bf16.mxu0 %v671
  %1282 = vmatpush1.bf16.msra.mxu0 %v670
  %1283 = vmatprep.subr.bf16.mxu0 %v665
  %1284 = vmatpush1.bf16.msra.mxu0 %v664
  %1285 = vmatprep.subr.bf16.mxu0 %v659
  %1286 = vmatpush1.bf16.msra.mxu0 %v658
  %1287 = vmatprep.subr.bf16.mxu0 %v749
  %1288 = vmatpush2.bf16.msra.mxu0 %v748
  %1289 = vmatprep.subr.bf16.mxu0 %v743
  %1290 = vmatpush2.bf16.msra.mxu0 %v742
  %1291 = vmatprep.subr.bf16.mxu0 %v737
  %1292 = vmatpush2.bf16.msra.mxu0 %v736
  %1293 = vmatprep.subr.bf16.mxu0 %v731
  %1294 = vmatpush2.bf16.msra.mxu0 %v730
  %1295 = vmatprep.subr.bf16.mxu0 %v725
  %1296 = vmatpush2.bf16.msra.mxu0 %v724
  %1297 = vmatprep.subr.bf16.mxu0 %v719
  %1298 = vmatpush2.bf16.msra.mxu0 %v718
  %1299 = vmatprep.subr.bf16.mxu0 %v713
  %1300 = vmatpush2.bf16.msra.mxu0 %v712
  %1301 = vmatprep.subr.bf16.mxu0 %v707
  %1302 = vmatpush2.bf16.msra.mxu0 %v706
  %1303 = vmatprep.mubr.bf16.mxu0 %v1047
  %1304 = vmatmul.mubr.bf16.gmra.mxu0 %v1046
  %v1305 = vpop.f32.mrf.mxu0
  %v1306 = vadd.f32 %v965, %v1305
  %v1307 = vpop.f32.mrf.mxu0
  %v1308 = vadd.f32 %v965, %v1307
  %v1309 = vpop.f32.mrf.mxu0
  %v1310 = vadd.f32 %v970, %v1309
  %v1311 = vpop.f32.mrf.mxu0
  %v1312 = vadd.f32 %v970, %v1311
  %1313 = vmatprep.mubr.bf16.mxu0 %v1053
  %1314 = vmatmul.mubr.bf16.gmra.mxu0 %v1052
  %v1315 = vpop.f32.mrf.mxu0
  %v1316 = vadd.f32 %v975, %v1315
  %v1317 = vpop.f32.mrf.mxu0
  %v1318 = vadd.f32 %v975, %v1317
  %v1319 = vpop.f32.mrf.mxu0
  %v1320 = vadd.f32 %v980, %v1319
  %v1321 = vpop.f32.mrf.mxu0
  %v1322 = vadd.f32 %v980, %v1321
  %1323 = vmatprep.mubr.bf16.mxu0 %v1059
  %1324 = vmatmul.mubr.bf16.gmra.mxu0 %v1058
  %v1325 = vpop.f32.mrf.mxu0
  %v1326 = vadd.f32 %v985, %v1325
  %v1327 = vpop.f32.mrf.mxu0
  %v1328 = vadd.f32 %v985, %v1327
  %v1329 = vpop.f32.mrf.mxu0
  %v1330 = vadd.f32 %v990, %v1329
  %v1331 = vpop.f32.mrf.mxu0
  %v1332 = vadd.f32 %v990, %v1331
  %1333 = vdwg.mxu0
  %1334 = vmatprep.subr.bf16.mxu0 %v797
  %1335 = vmatpush1.bf16.msra.mxu0 %v796
  %1336 = vmatprep.subr.bf16.mxu0 %v791
  %1337 = vmatpush1.bf16.msra.mxu0 %v790
  %1338 = vmatprep.subr.bf16.mxu0 %v785
  %1339 = vmatpush1.bf16.msra.mxu0 %v784
  %1340 = vmatprep.subr.bf16.mxu0 %v779
  %1341 = vmatpush1.bf16.msra.mxu0 %v778
  %1342 = vmatprep.subr.bf16.mxu0 %v773
  %1343 = vmatpush1.bf16.msra.mxu0 %v772
  %1344 = vmatprep.subr.bf16.mxu0 %v767
  %1345 = vmatpush1.bf16.msra.mxu0 %v766
  %1346 = vmatprep.subr.bf16.mxu0 %v761
  %1347 = vmatpush1.bf16.msra.mxu0 %v760
  %1348 = vmatprep.subr.bf16.mxu0 %v755
  %1349 = vmatpush1.bf16.msra.mxu0 %v754
  %1350 = vmatprep.subr.bf16.mxu0 %v845
  %1351 = vmatpush2.bf16.msra.mxu0 %v844
  %1352 = vmatprep.subr.bf16.mxu0 %v839
  %1353 = vmatpush2.bf16.msra.mxu0 %v838
  %1354 = vmatprep.subr.bf16.mxu0 %v833
  %1355 = vmatpush2.bf16.msra.mxu0 %v832
  %1356 = vmatprep.subr.bf16.mxu0 %v827
  %1357 = vmatpush2.bf16.msra.mxu0 %v826
  %1358 = vmatprep.subr.bf16.mxu0 %v821
  %1359 = vmatpush2.bf16.msra.mxu0 %v820
  %1360 = vmatprep.subr.bf16.mxu0 %v815
  %1361 = vmatpush2.bf16.msra.mxu0 %v814
  %1362 = vmatprep.subr.bf16.mxu0 %v809
  %1363 = vmatpush2.bf16.msra.mxu0 %v808
  %1364 = vmatprep.subr.bf16.mxu0 %v803
  %1365 = vmatpush2.bf16.msra.mxu0 %v802
  %1366 = vmatprep.mubr.bf16.mxu0 %v1049
  %1367 = vmatmul.mubr.bf16.gmra.mxu0 %v1048
  %v1368 = vpop.f32.mrf.mxu0
  %v1369 = vadd.f32 %v1306, %v1368
  %v1370 = vpop.f32.mrf.mxu0
  %v1371 = vadd.f32 %v1308, %v1370
  %v1372 = vpop.f32.mrf.mxu0
  %v1373 = vadd.f32 %v1310, %v1372
  %v1374 = vpop.f32.mrf.mxu0
  %v1375 = vadd.f32 %v1312, %v1374
  %1376 = vmatprep.mubr.bf16.mxu0 %v1055
  %1377 = vmatmul.mubr.bf16.gmra.mxu0 %v1054
  %v1378 = vpop.f32.mrf.mxu0
  %v1379 = vadd.f32 %v1316, %v1378
  %v1380 = vpop.f32.mrf.mxu0
  %v1381 = vadd.f32 %v1318, %v1380
  %v1382 = vpop.f32.mrf.mxu0
  %v1383 = vadd.f32 %v1320, %v1382
  %v1384 = vpop.f32.mrf.mxu0
  %v1385 = vadd.f32 %v1322, %v1384
  %1386 = vmatprep.mubr.bf16.mxu0 %v1061
  %1387 = vmatmul.mubr.bf16.gmra.mxu0 %v1060
  %v1388 = vpop.f32.mrf.mxu0
  %v1389 = vadd.f32 %v1326, %v1388
  %v1390 = vpop.f32.mrf.mxu0
  %v1391 = vadd.f32 %v1328, %v1390
  %v1392 = vpop.f32.mrf.mxu0
  %v1393 = vadd.f32 %v1330, %v1392
  %v1394 = vpop.f32.mrf.mxu0
  %v1395 = vadd.f32 %v1332, %v1394
  %1396 = vdwg.mxu0
  %1397 = vmatprep.subr.bf16.mxu0 %v893
  %1398 = vmatpush1.bf16.msra.mxu0 %v892
  %1399 = vmatprep.subr.bf16.mxu0 %v887
  %1400 = vmatpush1.bf16.msra.mxu0 %v886
  %1401 = vmatprep.subr.bf16.mxu0 %v881
  %1402 = vmatpush1.bf16.msra.mxu0 %v880
  %1403 = vmatprep.subr.bf16.mxu0 %v875
  %1404 = vmatpush1.bf16.msra.mxu0 %v874
  %1405 = vmatprep.subr.bf16.mxu0 %v869
  %1406 = vmatpush1.bf16.msra.mxu0 %v868
  %1407 = vmatprep.subr.bf16.mxu0 %v863
  %1408 = vmatpush1.bf16.msra.mxu0 %v862
  %1409 = vmatprep.subr.bf16.mxu0 %v857
  %1410 = vmatpush1.bf16.msra.mxu0 %v856
  %1411 = vmatprep.subr.bf16.mxu0 %v851
  %1412 = vmatpush1.bf16.msra.mxu0 %v850
  %1413 = vmatprep.subr.bf16.mxu0 %v941
  %1414 = vmatpush2.bf16.msra.mxu0 %v940
  %1415 = vmatprep.subr.bf16.mxu0 %v935
  %1416 = vmatpush2.bf16.msra.mxu0 %v934
  %1417 = vmatprep.subr.bf16.mxu0 %v929
  %1418 = vmatpush2.bf16.msra.mxu0 %v928
  %1419 = vmatprep.subr.bf16.mxu0 %v923
  %1420 = vmatpush2.bf16.msra.mxu0 %v922
  %1421 = vmatprep.subr.bf16.mxu0 %v917
  %1422 = vmatpush2.bf16.msra.mxu0 %v916
  %1423 = vmatprep.subr.bf16.mxu0 %v911
  %1424 = vmatpush2.bf16.msra.mxu0 %v910
  %1425 = vmatprep.subr.bf16.mxu0 %v905
  %1426 = vmatpush2.bf16.msra.mxu0 %v904
  %1427 = vmatprep.subr.bf16.mxu0 %v899
  %1428 = vmatpush2.bf16.msra.mxu0 %v898
  %1429 = vmatprep.mubr.bf16.mxu0 %v1051
  %1430 = vmatmul.mubr.bf16.gmra.mxu0 %v1050
  %v1431 = vpop.f32.mrf.mxu0
  %v1432 = vadd.f32 %v1369, %v1431
  %v1433 = vpop.f32.mrf.mxu0
  %v1434 = vadd.f32 %v1371, %v1433
  %v1435 = vpop.f32.mrf.mxu0
  %v1436 = vadd.f32 %v1373, %v1435
  %v1437 = vpop.f32.mrf.mxu0
  %v1438 = vadd.f32 %v1375, %v1437
  %1439 = vmatprep.mubr.bf16.mxu0 %v1057
  %1440 = vmatmul.mubr.bf16.gmra.mxu0 %v1056
  %v1441 = vpop.f32.mrf.mxu0
  %v1442 = vadd.f32 %v1379, %v1441
  %v1443 = vpop.f32.mrf.mxu0
  %v1444 = vadd.f32 %v1381, %v1443
  %v1445 = vpop.f32.mrf.mxu0
  %v1446 = vadd.f32 %v1383, %v1445
  %v1447 = vpop.f32.mrf.mxu0
  %v1448 = vadd.f32 %v1385, %v1447
  %1449 = vmatprep.mubr.bf16.mxu0 %v1063
  %1450 = vmatmul.mubr.bf16.gmra.mxu0 %v1062
  %v1451 = vpop.f32.mrf.mxu0
  %v1452 = vadd.f32 %v1389, %v1451
  %v1453 = vpop.f32.mrf.mxu0
  %v1454 = vadd.f32 %v1391, %v1453
  %v1455 = vpop.f32.mrf.mxu0
  %v1456 = vadd.f32 %v1393, %v1455
  %v1457 = vpop.f32.mrf.mxu0
  %v1458 = vadd.f32 %v1395, %v1457
  %1459 = vdwg.mxu0
  %1460 = vmatprep.subr.bf16.mxu0 %v703
  %1461 = vmatpush1.bf16.msra.mxu0 %v702
  %1462 = vmatprep.subr.bf16.mxu0 %v697
  %1463 = vmatpush1.bf16.msra.mxu0 %v696
  %1464 = vmatprep.subr.bf16.mxu0 %v691
  %1465 = vmatpush1.bf16.msra.mxu0 %v690
  %1466 = vmatprep.subr.bf16.mxu0 %v685
  %1467 = vmatpush1.bf16.msra.mxu0 %v684
  %1468 = vmatprep.subr.bf16.mxu0 %v679
  %1469 = vmatpush1.bf16.msra.mxu0 %v678
  %1470 = vmatprep.subr.bf16.mxu0 %v673
  %1471 = vmatpush1.bf16.msra.mxu0 %v672
  %1472 = vmatprep.subr.bf16.mxu0 %v667
  %1473 = vmatpush1.bf16.msra.mxu0 %v666
  %1474 = vmatprep.subr.bf16.mxu0 %v661
  %1475 = vmatpush1.bf16.msra.mxu0 %v660
  %1476 = vmatprep.subr.bf16.mxu0 %v751
  %1477 = vmatpush2.bf16.msra.mxu0 %v750
  %1478 = vmatprep.subr.bf16.mxu0 %v745
  %1479 = vmatpush2.bf16.msra.mxu0 %v744
  %1480 = vmatprep.subr.bf16.mxu0 %v739
  %1481 = vmatpush2.bf16.msra.mxu0 %v738
  %1482 = vmatprep.subr.bf16.mxu0 %v733
  %1483 = vmatpush2.bf16.msra.mxu0 %v732
  %1484 = vmatprep.subr.bf16.mxu0 %v727
  %1485 = vmatpush2.bf16.msra.mxu0 %v726
  %1486 = vmatprep.subr.bf16.mxu0 %v721
  %1487 = vmatpush2.bf16.msra.mxu0 %v720
  %1488 = vmatprep.subr.bf16.mxu0 %v715
  %1489 = vmatpush2.bf16.msra.mxu0 %v714
  %1490 = vmatprep.subr.bf16.mxu0 %v709
  %1491 = vmatpush2.bf16.msra.mxu0 %v708
  %1492 = vmatprep.mubr.bf16.mxu0 %v1047
  %1493 = vmatmul.mubr.bf16.gmra.mxu0 %v1046
  %v1494 = vpop.f32.mrf.mxu0
  %v1495 = vadd.f32 %v965, %v1494
  %v1496 = vpop.f32.mrf.mxu0
  %v1497 = vadd.f32 %v965, %v1496
  %v1498 = vpop.f32.mrf.mxu0
  %v1499 = vadd.f32 %v970, %v1498
  %v1500 = vpop.f32.mrf.mxu0
  %v1501 = vadd.f32 %v970, %v1500
  %1502 = vmatprep.mubr.bf16.mxu0 %v1053
  %1503 = vmatmul.mubr.bf16.gmra.mxu0 %v1052
  %v1504 = vpop.f32.mrf.mxu0
  %v1505 = vadd.f32 %v975, %v1504
  %v1506 = vpop.f32.mrf.mxu0
  %v1507 = vadd.f32 %v975, %v1506
  %v1508 = vpop.f32.mrf.mxu0
  %v1509 = vadd.f32 %v980, %v1508
  %v1510 = vpop.f32.mrf.mxu0
  %v1511 = vadd.f32 %v980, %v1510
  %1512 = vmatprep.mubr.bf16.mxu0 %v1059
  %1513 = vmatmul.mubr.bf16.gmra.mxu0 %v1058
  %v1514 = vpop.f32.mrf.mxu0
  %v1515 = vadd.f32 %v985, %v1514
  %v1516 = vpop.f32.mrf.mxu0
  %v1517 = vadd.f32 %v985, %v1516
  %v1518 = vpop.f32.mrf.mxu0
  %v1519 = vadd.f32 %v990, %v1518
  %v1520 = vpop.f32.mrf.mxu0
  %v1521 = vadd.f32 %v990, %v1520
  %1522 = vdwg.mxu0
  %1523 = vmatprep.subr.bf16.mxu0 %v799
  %1524 = vmatpush1.bf16.msra.mxu0 %v798
  %1525 = vmatprep.subr.bf16.mxu0 %v793
  %1526 = vmatpush1.bf16.msra.mxu0 %v792
  %1527 = vmatprep.subr.bf16.mxu0 %v787
  %1528 = vmatpush1.bf16.msra.mxu0 %v786
  %1529 = vmatprep.subr.bf16.mxu0 %v781
  %1530 = vmatpush1.bf16.msra.mxu0 %v780
  %1531 = vmatprep.subr.bf16.mxu0 %v775
  %1532 = vmatpush1.bf16.msra.mxu0 %v774
  %1533 = vmatprep.subr.bf16.mxu0 %v769
  %1534 = vmatpush1.bf16.msra.mxu0 %v768
  %1535 = vmatprep.subr.bf16.mxu0 %v763
  %1536 = vmatpush1.bf16.msra.mxu0 %v762
  %1537 = vmatprep.subr.bf16.mxu0 %v757
  %1538 = vmatpush1.bf16.msra.mxu0 %v756
  %1539 = vmatprep.subr.bf16.mxu0 %v847
  %1540 = vmatpush2.bf16.msra.mxu0 %v846
  %1541 = vmatprep.subr.bf16.mxu0 %v841
  %1542 = vmatpush2.bf16.msra.mxu0 %v840
  %1543 = vmatprep.subr.bf16.mxu0 %v835
  %1544 = vmatpush2.bf16.msra.mxu0 %v834
  %1545 = vmatprep.subr.bf16.mxu0 %v829
  %1546 = vmatpush2.bf16.msra.mxu0 %v828
  %1547 = vmatprep.subr.bf16.mxu0 %v823
  %1548 = vmatpush2.bf16.msra.mxu0 %v822
  %1549 = vmatprep.subr.bf16.mxu0 %v817
  %1550 = vmatpush2.bf16.msra.mxu0 %v816
  %1551 = vmatprep.subr.bf16.mxu0 %v811
  %1552 = vmatpush2.bf16.msra.mxu0 %v810
  %1553 = vmatprep.subr.bf16.mxu0 %v805
  %1554 = vmatpush2.bf16.msra.mxu0 %v804
  %1555 = vmatprep.mubr.bf16.mxu0 %v1049
  %1556 = vmatmul.mubr.bf16.gmra.mxu0 %v1048
  %v1557 = vpop.f32.mrf.mxu0
  %v1558 = vadd.f32 %v1495, %v1557
  %v1559 = vpop.f32.mrf.mxu0
  %v1560 = vadd.f32 %v1497, %v1559
  %v1561 = vpop.f32.mrf.mxu0
  %v1562 = vadd.f32 %v1499, %v1561
  %v1563 = vpop.f32.mrf.mxu0
  %v1564 = vadd.f32 %v1501, %v1563
  %1565 = vmatprep.mubr.bf16.mxu0 %v1055
  %1566 = vmatmul.mubr.bf16.gmra.mxu0 %v1054
  %v1567 = vpop.f32.mrf.mxu0
  %v1568 = vadd.f32 %v1505, %v1567
  %v1569 = vpop.f32.mrf.mxu0
  %v1570 = vadd.f32 %v1507, %v1569
  %v1571 = vpop.f32.mrf.mxu0
  %v1572 = vadd.f32 %v1509, %v1571
  %v1573 = vpop.f32.mrf.mxu0
  %v1574 = vadd.f32 %v1511, %v1573
  %1575 = vmatprep.mubr.bf16.mxu0 %v1061
  %1576 = vmatmul.mubr.bf16.gmra.mxu0 %v1060
  %v1577 = vpop.f32.mrf.mxu0
  %v1578 = vadd.f32 %v1515, %v1577
  %v1579 = vpop.f32.mrf.mxu0
  %v1580 = vadd.f32 %v1517, %v1579
  %v1581 = vpop.f32.mrf.mxu0
  %v1582 = vadd.f32 %v1519, %v1581
  %v1583 = vpop.f32.mrf.mxu0
  %v1584 = vadd.f32 %v1521, %v1583
  %1585 = vdwg.mxu0
  %1586 = vmatprep.subr.bf16.mxu0 %v895
  %1587 = vmatpush1.bf16.msra.mxu0 %v894
  %1588 = vmatprep.subr.bf16.mxu0 %v889
  %1589 = vmatpush1.bf16.msra.mxu0 %v888
  %1590 = vmatprep.subr.bf16.mxu0 %v883
  %1591 = vmatpush1.bf16.msra.mxu0 %v882
  %1592 = vmatprep.subr.bf16.mxu0 %v877
  %1593 = vmatpush1.bf16.msra.mxu0 %v876
  %1594 = vmatprep.subr.bf16.mxu0 %v871
  %1595 = vmatpush1.bf16.msra.mxu0 %v870
  %1596 = vmatprep.subr.bf16.mxu0 %v865
  %1597 = vmatpush1.bf16.msra.mxu0 %v864
  %1598 = vmatprep.subr.bf16.mxu0 %v859
  %1599 = vmatpush1.bf16.msra.mxu0 %v858
  %1600 = vmatprep.subr.bf16.mxu0 %v853
  %1601 = vmatpush1.bf16.msra.mxu0 %v852
  %1602 = vmatprep.subr.bf16.mxu0 %v943
  %1603 = vmatpush2.bf16.msra.mxu0 %v942
  %1604 = vmatprep.subr.bf16.mxu0 %v937
  %1605 = vmatpush2.bf16.msra.mxu0 %v936
  %1606 = vmatprep.subr.bf16.mxu0 %v931
  %1607 = vmatpush2.bf16.msra.mxu0 %v930
  %1608 = vmatprep.subr.bf16.mxu0 %v925
  %1609 = vmatpush2.bf16.msra.mxu0 %v924
  %1610 = vmatprep.subr.bf16.mxu0 %v919
  %1611 = vmatpush2.bf16.msra.mxu0 %v918
  %1612 = vmatprep.subr.bf16.mxu0 %v913
  %1613 = vmatpush2.bf16.msra.mxu0 %v912
  %1614 = vmatprep.subr.bf16.mxu0 %v907
  %1615 = vmatpush2.bf16.msra.mxu0 %v906
  %1616 = vmatprep.subr.bf16.mxu0 %v901
  %1617 = vmatpush2.bf16.msra.mxu0 %v900
  %1618 = vmatprep.mubr.bf16.mxu0 %v1051
  %1619 = vmatmul.mubr.bf16.gmra.mxu0 %v1050
  %v1620 = vpop.f32.mrf.mxu0
  %v1621 = vadd.f32 %v1558, %v1620
  %v1622 = vpop.f32.mrf.mxu0
  %v1623 = vadd.f32 %v1560, %v1622
  %v1624 = vpop.f32.mrf.mxu0
  %v1625 = vadd.f32 %v1562, %v1624
  %v1626 = vpop.f32.mrf.mxu0
  %v1627 = vadd.f32 %v1564, %v1626
  %1628 = vmatprep.mubr.bf16.mxu0 %v1057
  %1629 = vmatmul.mubr.bf16.gmra.mxu0 %v1056
  %v1630 = vpop.f32.mrf.mxu0
  %v1631 = vadd.f32 %v1568, %v1630
  %v1632 = vpop.f32.mrf.mxu0
  %v1633 = vadd.f32 %v1570, %v1632
  %v1634 = vpop.f32.mrf.mxu0
  %v1635 = vadd.f32 %v1572, %v1634
  %v1636 = vpop.f32.mrf.mxu0
  %v1637 = vadd.f32 %v1574, %v1636
  %1638 = vmatprep.mubr.bf16.mxu0 %v1063
  %1639 = vmatmul.mubr.bf16.gmra.mxu0 %v1062
  %v1640 = vpop.f32.mrf.mxu0
  %v1641 = vadd.f32 %v1578, %v1640
  %v1642 = vpop.f32.mrf.mxu0
  %v1643 = vadd.f32 %v1580, %v1642
  %v1644 = vpop.f32.mrf.mxu0
  %v1645 = vadd.f32 %v1582, %v1644
  %v1646 = vpop.f32.mrf.mxu0
  %v1647 = vadd.f32 %v1584, %v1646
  %1648 = vdwg.mxu0
  %v1649 = vpack.c.bf16 %v1247, %v1243
  %v1650 = vpack.c.bf16 %v1249, %v1245
  %v1651 = vpack.c.bf16 %v1436, %v1432
  %v1652 = vpack.c.bf16 %v1438, %v1434
  %v1653 = vpack.c.bf16 %v1625, %v1621
  %v1654 = vpack.c.bf16 %v1627, %v1623
  %v1655 = vpack.c.bf16 %v1257, %v1253
  %v1656 = vpack.c.bf16 %v1259, %v1255
  %v1657 = vpack.c.bf16 %v1446, %v1442
  %v1658 = vpack.c.bf16 %v1448, %v1444
  %v1659 = vpack.c.bf16 %v1635, %v1631
  %v1660 = vpack.c.bf16 %v1637, %v1633
  %v1661 = vpack.c.bf16 %v1267, %v1263
  %v1662 = vpack.c.bf16 %v1269, %v1265
  %v1663 = vpack.c.bf16 %v1456, %v1452
  %v1664 = vpack.c.bf16 %v1458, %v1454
  %v1665 = vpack.c.bf16 %v1645, %v1641
  %v1666 = vpack.c.bf16 %v1647, %v1643
  %v1667 = vld [vmem:[%s3] sm:$0xff]
  %v1668 = vld [vmem:[%s3 + $0x8] sm:$0xff]
  %v1669 = vld [vmem:[%s3 + $0x10] sm:$0xff]
  %v1670 = vld [vmem:[%s3 + $0x18] sm:$0xff]
  %v1671 = vld [vmem:[%s3 + $0x20] sm:$0xff]
  %v1672 = vld [vmem:[%s3 + $0x28] sm:$0xff]
  %v1673 = vld [vmem:[%s3 + $0x30] sm:$0xff]
  %v1674 = vld [vmem:[%s3 + $0x38] sm:$0xff]
  %v1675 = vld [vmem:[%s3 + $0x40] sm:$0xff]
  %v1676 = vld [vmem:[%s3 + $0x48] sm:$0xff]
  %v1677 = vld [vmem:[%s3 + $0x50] sm:$0xff]
  %v1678 = vld [vmem:[%s3 + $0x58] sm:$0xff]
  %v1679 = vld [vmem:[%s3 + $0x60] sm:$0xff]
  %v1680 = vld [vmem:[%s3 + $0x68] sm:$0xff]
  %v1681 = vld [vmem:[%s3 + $0x70] sm:$0xff]
  %v1682 = vld [vmem:[%s3 + $0x78] sm:$0xff]
  %v1683 = vld [vmem:[%s3 + $0x80] sm:$0xff]
  %v1684 = vld [vmem:[%s3 + $0x88] sm:$0xff]
  %v1685 = vld [vmem:[%s3 + $0x90] sm:$0xff]
  %v1686 = vld [vmem:[%s3 + $0x98] sm:$0xff]
  %v1687 = vld [vmem:[%s3 + $0xa0] sm:$0xff]
  %v1688 = vld [vmem:[%s3 + $0xa8] sm:$0xff]
  %v1689 = vld [vmem:[%s3 + $0xb0] sm:$0xff]
  %v1690 = vld [vmem:[%s3 + $0xb8] sm:$0xff]
  %v1691 = vld [vmem:[%s3 + $0xc0] sm:$0xff]
  %v1692 = vld [vmem:[%s3 + $0xc8] sm:$0xff]
  %v1693 = vld [vmem:[%s3 + $0xd0] sm:$0xff]
  %v1694 = vld [vmem:[%s3 + $0xd8] sm:$0xff]
  %v1695 = vld [vmem:[%s3 + $0xe0] sm:$0xff]
  %v1696 = vld [vmem:[%s3 + $0xe8] sm:$0xff]
  %v1697 = vld [vmem:[%s3 + $0xf0] sm:$0xff]
  %v1698 = vld [vmem:[%s3 + $0xf8] sm:$0xff]
  %v1699 = vld [vmem:[%s3 + $0x100] sm:$0xff]
  %v1700 = vld [vmem:[%s3 + $0x108] sm:$0xff]
  %v1701 = vld [vmem:[%s3 + $0x110] sm:$0xff]
  %v1702 = vld [vmem:[%s3 + $0x118] sm:$0xff]
  %v1703 = vld [vmem:[%s3 + $0x120] sm:$0xff]
  %v1704 = vld [vmem:[%s3 + $0x128] sm:$0xff]
  %v1705 = vld [vmem:[%s3 + $0x130] sm:$0xff]
  %v1706 = vld [vmem:[%s3 + $0x138] sm:$0xff]
  %v1707 = vld [vmem:[%s3 + $0x140] sm:$0xff]
  %v1708 = vld [vmem:[%s3 + $0x148] sm:$0xff]
  %v1709 = vld [vmem:[%s3 + $0x150] sm:$0xff]
  %v1710 = vld [vmem:[%s3 + $0x158] sm:$0xff]
  %v1711 = vld [vmem:[%s3 + $0x160] sm:$0xff]
  %v1712 = vld [vmem:[%s3 + $0x168] sm:$0xff]
  %v1713 = vld [vmem:[%s3 + $0x170] sm:$0xff]
  %v1714 = vld [vmem:[%s3 + $0x178] sm:$0xff]
  %v1715 = vld [vmem:[%s3 + $0x180] sm:$0xff]
  %v1716 = vld [vmem:[%s3 + $0x188] sm:$0xff]
  %v1717 = vld [vmem:[%s3 + $0x190] sm:$0xff]
  %v1718 = vld [vmem:[%s3 + $0x198] sm:$0xff]
  %v1719 = vld [vmem:[%s3 + $0x1a0] sm:$0xff]
  %v1720 = vld [vmem:[%s3 + $0x1a8] sm:$0xff]
  %v1721 = vld [vmem:[%s3 + $0x1b0] sm:$0xff]
  %v1722 = vld [vmem:[%s3 + $0x1b8] sm:$0xff]
  %v1723 = vld [vmem:[%s3 + $0x1c0] sm:$0xff]
  %v1724 = vld [vmem:[%s3 + $0x1c8] sm:$0xff]
  %v1725 = vld [vmem:[%s3 + $0x1d0] sm:$0xff]
  %v1726 = vld [vmem:[%s3 + $0x1d8] sm:$0xff]
  %v1727 = vld [vmem:[%s3 + $0x1e0] sm:$0xff]
  %v1728 = vld [vmem:[%s3 + $0x1e8] sm:$0xff]
  %v1729 = vld [vmem:[%s3 + $0x1f0] sm:$0xff]
  %v1730 = vld [vmem:[%s3 + $0x1f8] sm:$0xff]
  %v1731 = vld [vmem:[%s3 + $0x200] sm:$0xff]
  %v1732 = vld [vmem:[%s3 + $0x208] sm:$0xff]
  %v1733 = vld [vmem:[%s3 + $0x210] sm:$0xff]
  %v1734 = vld [vmem:[%s3 + $0x218] sm:$0xff]
  %v1735 = vld [vmem:[%s3 + $0x220] sm:$0xff]
  %v1736 = vld [vmem:[%s3 + $0x228] sm:$0xff]
  %v1737 = vld [vmem:[%s3 + $0x230] sm:$0xff]
  %v1738 = vld [vmem:[%s3 + $0x238] sm:$0xff]
  %v1739 = vld [vmem:[%s3 + $0x240] sm:$0xff]
  %v1740 = vld [vmem:[%s3 + $0x248] sm:$0xff]
  %v1741 = vld [vmem:[%s3 + $0x250] sm:$0xff]
  %v1742 = vld [vmem:[%s3 + $0x258] sm:$0xff]
  %v1743 = vld [vmem:[%s3 + $0x260] sm:$0xff]
  %v1744 = vld [vmem:[%s3 + $0x268] sm:$0xff]
  %v1745 = vld [vmem:[%s3 + $0x270] sm:$0xff]
  %v1746 = vld [vmem:[%s3 + $0x278] sm:$0xff]
  %v1747 = vld [vmem:[%s3 + $0x280] sm:$0xff]
  %v1748 = vld [vmem:[%s3 + $0x288] sm:$0xff]
  %v1749 = vld [vmem:[%s3 + $0x290] sm:$0xff]
  %v1750 = vld [vmem:[%s3 + $0x298] sm:$0xff]
  %v1751 = vld [vmem:[%s3 + $0x2a0] sm:$0xff]
  %v1752 = vld [vmem:[%s3 + $0x2a8] sm:$0xff]
  %v1753 = vld [vmem:[%s3 + $0x2b0] sm:$0xff]
  %v1754 = vld [vmem:[%s3 + $0x2b8] sm:$0xff]
  %v1755 = vld [vmem:[%s3 + $0x2c0] sm:$0xff]
  %v1756 = vld [vmem:[%s3 + $0x2c8] sm:$0xff]
  %v1757 = vld [vmem:[%s3 + $0x2d0] sm:$0xff]
  %v1758 = vld [vmem:[%s3 + $0x2d8] sm:$0xff]
  %v1759 = vld [vmem:[%s3 + $0x2e0] sm:$0xff]
  %v1760 = vld [vmem:[%s3 + $0x2e8] sm:$0xff]
  %v1761 = vld [vmem:[%s3 + $0x2f0] sm:$0xff]
  %v1762 = vld [vmem:[%s3 + $0x2f8] sm:$0xff]
  %v1763 = vld [vmem:[%s3 + $0x300] sm:$0xff]
  %v1764 = vld [vmem:[%s3 + $0x308] sm:$0xff]
  %v1765 = vld [vmem:[%s3 + $0x310] sm:$0xff]
  %v1766 = vld [vmem:[%s3 + $0x318] sm:$0xff]
  %v1767 = vld [vmem:[%s3 + $0x320] sm:$0xff]
  %v1768 = vld [vmem:[%s3 + $0x328] sm:$0xff]
  %v1769 = vld [vmem:[%s3 + $0x330] sm:$0xff]
  %v1770 = vld [vmem:[%s3 + $0x338] sm:$0xff]
  %v1771 = vld [vmem:[%s3 + $0x340] sm:$0xff]
  %v1772 = vld [vmem:[%s3 + $0x348] sm:$0xff]
  %v1773 = vld [vmem:[%s3 + $0x350] sm:$0xff]
  %v1774 = vld [vmem:[%s3 + $0x358] sm:$0xff]
  %v1775 = vld [vmem:[%s3 + $0x360] sm:$0xff]
  %v1776 = vld [vmem:[%s3 + $0x368] sm:$0xff]
  %v1777 = vld [vmem:[%s3 + $0x370] sm:$0xff]
  %v1778 = vld [vmem:[%s3 + $0x378] sm:$0xff]
  %v1779 = vld [vmem:[%s3 + $0x380] sm:$0xff]
  %v1780 = vld [vmem:[%s3 + $0x388] sm:$0xff]
  %v1781 = vld [vmem:[%s3 + $0x390] sm:$0xff]
  %v1782 = vld [vmem:[%s3 + $0x398] sm:$0xff]
  %v1783 = vld [vmem:[%s3 + $0x3a0] sm:$0xff]
  %v1784 = vld [vmem:[%s3 + $0x3a8] sm:$0xff]
  %v1785 = vld [vmem:[%s3 + $0x3b0] sm:$0xff]
  %v1786 = vld [vmem:[%s3 + $0x3b8] sm:$0xff]
  %v1787 = vld [vmem:[%s3 + $0x3c0] sm:$0xff]
  %v1788 = vld [vmem:[%s3 + $0x3c8] sm:$0xff]
  %v1789 = vld [vmem:[%s3 + $0x3d0] sm:$0xff]
  %v1790 = vld [vmem:[%s3 + $0x3d8] sm:$0xff]
  %v1791 = vld [vmem:[%s3 + $0x3e0] sm:$0xff]
  %v1792 = vld [vmem:[%s3 + $0x3e8] sm:$0xff]
  %v1793 = vld [vmem:[%s3 + $0x3f0] sm:$0xff]
  %v1794 = vld [vmem:[%s3 + $0x3f8] sm:$0xff]
  %v1795 = vld [vmem:[%s3 + $0x400] sm:$0xff]
  %v1796 = vld [vmem:[%s3 + $0x408] sm:$0xff]
  %v1797 = vld [vmem:[%s3 + $0x410] sm:$0xff]
  %v1798 = vld [vmem:[%s3 + $0x418] sm:$0xff]
  %v1799 = vld [vmem:[%s3 + $0x420] sm:$0xff]
  %v1800 = vld [vmem:[%s3 + $0x428] sm:$0xff]
  %v1801 = vld [vmem:[%s3 + $0x430] sm:$0xff]
  %v1802 = vld [vmem:[%s3 + $0x438] sm:$0xff]
  %v1803 = vld [vmem:[%s3 + $0x440] sm:$0xff]
  %v1804 = vld [vmem:[%s3 + $0x448] sm:$0xff]
  %v1805 = vld [vmem:[%s3 + $0x450] sm:$0xff]
  %v1806 = vld [vmem:[%s3 + $0x458] sm:$0xff]
  %v1807 = vld [vmem:[%s3 + $0x460] sm:$0xff]
  %v1808 = vld [vmem:[%s3 + $0x468] sm:$0xff]
  %v1809 = vld [vmem:[%s3 + $0x470] sm:$0xff]
  %v1810 = vld [vmem:[%s3 + $0x478] sm:$0xff]
  %v1811 = vld [vmem:[%s3 + $0x480] sm:$0xff]
  %v1812 = vld [vmem:[%s3 + $0x488] sm:$0xff]
  %v1813 = vld [vmem:[%s3 + $0x490] sm:$0xff]
  %v1814 = vld [vmem:[%s3 + $0x498] sm:$0xff]
  %v1815 = vld [vmem:[%s3 + $0x4a0] sm:$0xff]
  %v1816 = vld [vmem:[%s3 + $0x4a8] sm:$0xff]
  %v1817 = vld [vmem:[%s3 + $0x4b0] sm:$0xff]
  %v1818 = vld [vmem:[%s3 + $0x4b8] sm:$0xff]
  %v1819 = vld [vmem:[%s3 + $0x4c0] sm:$0xff]
  %v1820 = vld [vmem:[%s3 + $0x4c8] sm:$0xff]
  %v1821 = vld [vmem:[%s3 + $0x4d0] sm:$0xff]
  %v1822 = vld [vmem:[%s3 + $0x4d8] sm:$0xff]
  %v1823 = vld [vmem:[%s3 + $0x4e0] sm:$0xff]
  %v1824 = vld [vmem:[%s3 + $0x4e8] sm:$0xff]
  %v1825 = vld [vmem:[%s3 + $0x4f0] sm:$0xff]
  %v1826 = vld [vmem:[%s3 + $0x4f8] sm:$0xff]
  %v1827 = vld [vmem:[%s3 + $0x500] sm:$0xff]
  %v1828 = vld [vmem:[%s3 + $0x508] sm:$0xff]
  %v1829 = vld [vmem:[%s3 + $0x510] sm:$0xff]
  %v1830 = vld [vmem:[%s3 + $0x518] sm:$0xff]
  %v1831 = vld [vmem:[%s3 + $0x520] sm:$0xff]
  %v1832 = vld [vmem:[%s3 + $0x528] sm:$0xff]
  %v1833 = vld [vmem:[%s3 + $0x530] sm:$0xff]
  %v1834 = vld [vmem:[%s3 + $0x538] sm:$0xff]
  %v1835 = vld [vmem:[%s3 + $0x540] sm:$0xff]
  %v1836 = vld [vmem:[%s3 + $0x548] sm:$0xff]
  %v1837 = vld [vmem:[%s3 + $0x550] sm:$0xff]
  %v1838 = vld [vmem:[%s3 + $0x558] sm:$0xff]
  %v1839 = vld [vmem:[%s3 + $0x560] sm:$0xff]
  %v1840 = vld [vmem:[%s3 + $0x568] sm:$0xff]
  %v1841 = vld [vmem:[%s3 + $0x570] sm:$0xff]
  %v1842 = vld [vmem:[%s3 + $0x578] sm:$0xff]
  %v1843 = vld [vmem:[%s3 + $0x580] sm:$0xff]
  %v1844 = vld [vmem:[%s3 + $0x588] sm:$0xff]
  %v1845 = vld [vmem:[%s3 + $0x590] sm:$0xff]
  %v1846 = vld [vmem:[%s3 + $0x598] sm:$0xff]
  %v1847 = vld [vmem:[%s3 + $0x5a0] sm:$0xff]
  %v1848 = vld [vmem:[%s3 + $0x5a8] sm:$0xff]
  %v1849 = vld [vmem:[%s3 + $0x5b0] sm:$0xff]
  %v1850 = vld [vmem:[%s3 + $0x5b8] sm:$0xff]
  %v1851 = vld [vmem:[%s3 + $0x5c0] sm:$0xff]
  %v1852 = vld [vmem:[%s3 + $0x5c8] sm:$0xff]
  %v1853 = vld [vmem:[%s3 + $0x5d0] sm:$0xff]
  %v1854 = vld [vmem:[%s3 + $0x5d8] sm:$0xff]
  %v1855 = vld [vmem:[%s3 + $0x5e0] sm:$0xff]
  %v1856 = vld [vmem:[%s3 + $0x5e8] sm:$0xff]
  %v1857 = vld [vmem:[%s3 + $0x5f0] sm:$0xff]
  %v1858 = vld [vmem:[%s3 + $0x5f8] sm:$0xff]
  %v1860 = vlaneseq
  %v1861 = vshrl.u32 %v1860, 7
  %v1862 = vsub.s32 0, %v1861
  %v1863 = vrot.slane %v36, %v1862
  %v1864 = vlaneseq
  %v1865 = vshrl.u32 %v1864, 7
  %v1866 = vsub.s32 1, %v1865
  %v1867 = vrot.slane %v36, %v1866
  %v1868 = vlaneseq
  %v1869 = vshrl.u32 %v1868, 7
  %v1870 = vsub.s32 2, %v1869
  %v1871 = vrot.slane %v36, %v1870
  %v1872 = vlaneseq
  %v1873 = vshrl.u32 %v1872, 7
  %v1874 = vsub.s32 3, %v1873
  %v1875 = vrot.slane %v36, %v1874
  %v2072 = vunpack.c.l.b16 %v1667
  %v2073 = vunpack.c.h.b16 %v1667
  %v2074 = vunpack.c.l.b16 %v1668
  %v2075 = vunpack.c.h.b16 %v1668
  %v2076 = vunpack.c.l.b16 %v1669
  %v2077 = vunpack.c.h.b16 %v1669
  %v2078 = vunpack.c.l.b16 %v1670
  %v2079 = vunpack.c.h.b16 %v1670
  %v2080 = vunpack.c.l.b16 %v1671
  %v2081 = vunpack.c.h.b16 %v1671
  %v2082 = vunpack.c.l.b16 %v1672
  %v2083 = vunpack.c.h.b16 %v1672
  %v2084 = vunpack.c.l.b16 %v1673
  %v2085 = vunpack.c.h.b16 %v1673
  %v2086 = vunpack.c.l.b16 %v1674
  %v2087 = vunpack.c.h.b16 %v1674
  %v2088 = vunpack.c.l.b16 %v1675
  %v2089 = vunpack.c.h.b16 %v1675
  %v2090 = vunpack.c.l.b16 %v1676
  %v2091 = vunpack.c.h.b16 %v1676
  %v2092 = vunpack.c.l.b16 %v1677
  %v2093 = vunpack.c.h.b16 %v1677
  %v2094 = vunpack.c.l.b16 %v1678
  %v2095 = vunpack.c.h.b16 %v1678
  %v2096 = vunpack.c.l.b16 %v1679
  %v2097 = vunpack.c.h.b16 %v1679
  %v2098 = vunpack.c.l.b16 %v1680
  %v2099 = vunpack.c.h.b16 %v1680
  %v2100 = vunpack.c.l.b16 %v1681
  %v2101 = vunpack.c.h.b16 %v1681
  %v2102 = vunpack.c.l.b16 %v1682
  %v2103 = vunpack.c.h.b16 %v1682
  %v2104 = vunpack.c.l.b16 %v1683
  %v2105 = vunpack.c.h.b16 %v1683
  %v2106 = vunpack.c.l.b16 %v1684
  %v2107 = vunpack.c.h.b16 %v1684
  %v2108 = vunpack.c.l.b16 %v1685
  %v2109 = vunpack.c.h.b16 %v1685
  %v2110 = vunpack.c.l.b16 %v1686
  %v2111 = vunpack.c.h.b16 %v1686
  %v2112 = vunpack.c.l.b16 %v1687
  %v2113 = vunpack.c.h.b16 %v1687
  %v2114 = vunpack.c.l.b16 %v1688
  %v2115 = vunpack.c.h.b16 %v1688
  %v2116 = vunpack.c.l.b16 %v1689
  %v2117 = vunpack.c.h.b16 %v1689
  %v2118 = vunpack.c.l.b16 %v1690
  %v2119 = vunpack.c.h.b16 %v1690
  %v2120 = vunpack.c.l.b16 %v1691
  %v2121 = vunpack.c.h.b16 %v1691
  %v2122 = vunpack.c.l.b16 %v1692
  %v2123 = vunpack.c.h.b16 %v1692
  %v2124 = vunpack.c.l.b16 %v1693
  %v2125 = vunpack.c.h.b16 %v1693
  %v2126 = vunpack.c.l.b16 %v1694
  %v2127 = vunpack.c.h.b16 %v1694
  %v2128 = vunpack.c.l.b16 %v1695
  %v2129 = vunpack.c.h.b16 %v1695
  %v2130 = vunpack.c.l.b16 %v1696
  %v2131 = vunpack.c.h.b16 %v1696
  %v2132 = vunpack.c.l.b16 %v1697
  %v2133 = vunpack.c.h.b16 %v1697
  %v2134 = vunpack.c.l.b16 %v1698
  %v2135 = vunpack.c.h.b16 %v1698
  %v2136 = vunpack.c.l.b16 %v1699
  %v2137 = vunpack.c.h.b16 %v1699
  %v2138 = vunpack.c.l.b16 %v1700
  %v2139 = vunpack.c.h.b16 %v1700
  %v2140 = vunpack.c.l.b16 %v1701
  %v2141 = vunpack.c.h.b16 %v1701
  %v2142 = vunpack.c.l.b16 %v1702
  %v2143 = vunpack.c.h.b16 %v1702
  %v2144 = vunpack.c.l.b16 %v1703
  %v2145 = vunpack.c.h.b16 %v1703
  %v2146 = vunpack.c.l.b16 %v1704
  %v2147 = vunpack.c.h.b16 %v1704
  %v2148 = vunpack.c.l.b16 %v1705
  %v2149 = vunpack.c.h.b16 %v1705
  %v2150 = vunpack.c.l.b16 %v1706
  %v2151 = vunpack.c.h.b16 %v1706
  %v2152 = vunpack.c.l.b16 %v1707
  %v2153 = vunpack.c.h.b16 %v1707
  %v2154 = vunpack.c.l.b16 %v1708
  %v2155 = vunpack.c.h.b16 %v1708
  %v2156 = vunpack.c.l.b16 %v1709
  %v2157 = vunpack.c.h.b16 %v1709
  %v2158 = vunpack.c.l.b16 %v1710
  %v2159 = vunpack.c.h.b16 %v1710
  %v2160 = vunpack.c.l.b16 %v1711
  %v2161 = vunpack.c.h.b16 %v1711
  %v2162 = vunpack.c.l.b16 %v1712
  %v2163 = vunpack.c.h.b16 %v1712
  %v2164 = vunpack.c.l.b16 %v1713
  %v2165 = vunpack.c.h.b16 %v1713
  %v2166 = vunpack.c.l.b16 %v1714
  %v2167 = vunpack.c.h.b16 %v1714
  %v2168 = vunpack.c.l.b16 %v1715
  %v2169 = vunpack.c.h.b16 %v1715
  %v2170 = vunpack.c.l.b16 %v1716
  %v2171 = vunpack.c.h.b16 %v1716
  %v2172 = vunpack.c.l.b16 %v1717
  %v2173 = vunpack.c.h.b16 %v1717
  %v2174 = vunpack.c.l.b16 %v1718
  %v2175 = vunpack.c.h.b16 %v1718
  %v2176 = vunpack.c.l.b16 %v1719
  %v2177 = vunpack.c.h.b16 %v1719
  %v2178 = vunpack.c.l.b16 %v1720
  %v2179 = vunpack.c.h.b16 %v1720
  %v2180 = vunpack.c.l.b16 %v1721
  %v2181 = vunpack.c.h.b16 %v1721
  %v2182 = vunpack.c.l.b16 %v1722
  %v2183 = vunpack.c.h.b16 %v1722
  %v2184 = vunpack.c.l.b16 %v1723
  %v2185 = vunpack.c.h.b16 %v1723
  %v2186 = vunpack.c.l.b16 %v1724
  %v2187 = vunpack.c.h.b16 %v1724
  %v2188 = vunpack.c.l.b16 %v1725
  %v2189 = vunpack.c.h.b16 %v1725
  %v2190 = vunpack.c.l.b16 %v1726
  %v2191 = vunpack.c.h.b16 %v1726
  %v2192 = vunpack.c.l.b16 %v1727
  %v2193 = vunpack.c.h.b16 %v1727
  %v2194 = vunpack.c.l.b16 %v1728
  %v2195 = vunpack.c.h.b16 %v1728
  %v2196 = vunpack.c.l.b16 %v1729
  %v2197 = vunpack.c.h.b16 %v1729
  %v2198 = vunpack.c.l.b16 %v1730
  %v2199 = vunpack.c.h.b16 %v1730
  %v2200 = vunpack.c.l.b16 %v1731
  %v2201 = vunpack.c.h.b16 %v1731
  %v2202 = vunpack.c.l.b16 %v1732
  %v2203 = vunpack.c.h.b16 %v1732
  %v2204 = vunpack.c.l.b16 %v1733
  %v2205 = vunpack.c.h.b16 %v1733
  %v2206 = vunpack.c.l.b16 %v1734
  %v2207 = vunpack.c.h.b16 %v1734
  %v2208 = vunpack.c.l.b16 %v1735
  %v2209 = vunpack.c.h.b16 %v1735
  %v2210 = vunpack.c.l.b16 %v1736
  %v2211 = vunpack.c.h.b16 %v1736
  %v2212 = vunpack.c.l.b16 %v1737
  %v2213 = vunpack.c.h.b16 %v1737
  %v2214 = vunpack.c.l.b16 %v1738
  %v2215 = vunpack.c.h.b16 %v1738
  %v2216 = vunpack.c.l.b16 %v1739
  %v2217 = vunpack.c.h.b16 %v1739
  %v2218 = vunpack.c.l.b16 %v1740
  %v2219 = vunpack.c.h.b16 %v1740
  %v2220 = vunpack.c.l.b16 %v1741
  %v2221 = vunpack.c.h.b16 %v1741
  %v2222 = vunpack.c.l.b16 %v1742
  %v2223 = vunpack.c.h.b16 %v1742
  %v2224 = vunpack.c.l.b16 %v1743
  %v2225 = vunpack.c.h.b16 %v1743
  %v2226 = vunpack.c.l.b16 %v1744
  %v2227 = vunpack.c.h.b16 %v1744
  %v2228 = vunpack.c.l.b16 %v1745
  %v2229 = vunpack.c.h.b16 %v1745
  %v2230 = vunpack.c.l.b16 %v1746
  %v2231 = vunpack.c.h.b16 %v1746
  %v2232 = vunpack.c.l.b16 %v1747
  %v2233 = vunpack.c.h.b16 %v1747
  %v2234 = vunpack.c.l.b16 %v1748
  %v2235 = vunpack.c.h.b16 %v1748
  %v2236 = vunpack.c.l.b16 %v1749
  %v2237 = vunpack.c.h.b16 %v1749
  %v2238 = vunpack.c.l.b16 %v1750
  %v2239 = vunpack.c.h.b16 %v1750
  %v2240 = vunpack.c.l.b16 %v1751
  %v2241 = vunpack.c.h.b16 %v1751
  %v2242 = vunpack.c.l.b16 %v1752
  %v2243 = vunpack.c.h.b16 %v1752
  %v2244 = vunpack.c.l.b16 %v1753
  %v2245 = vunpack.c.h.b16 %v1753
  %v2246 = vunpack.c.l.b16 %v1754
  %v2247 = vunpack.c.h.b16 %v1754
  %v2248 = vunpack.c.l.b16 %v1755
  %v2249 = vunpack.c.h.b16 %v1755
  %v2250 = vunpack.c.l.b16 %v1756
  %v2251 = vunpack.c.h.b16 %v1756
  %v2252 = vunpack.c.l.b16 %v1757
  %v2253 = vunpack.c.h.b16 %v1757
  %v2254 = vunpack.c.l.b16 %v1758
  %v2255 = vunpack.c.h.b16 %v1758
  %v2256 = vunpack.c.l.b16 %v1759
  %v2257 = vunpack.c.h.b16 %v1759
  %v2258 = vunpack.c.l.b16 %v1760
  %v2259 = vunpack.c.h.b16 %v1760
  %v2260 = vunpack.c.l.b16 %v1761
  %v2261 = vunpack.c.h.b16 %v1761
  %v2262 = vunpack.c.l.b16 %v1762
  %v2263 = vunpack.c.h.b16 %v1762
  %v2264 = vunpack.c.l.b16 %v1763
  %v2265 = vunpack.c.h.b16 %v1763
  %v2266 = vunpack.c.l.b16 %v1764
  %v2267 = vunpack.c.h.b16 %v1764
  %v2268 = vunpack.c.l.b16 %v1765
  %v2269 = vunpack.c.h.b16 %v1765
  %v2270 = vunpack.c.l.b16 %v1766
  %v2271 = vunpack.c.h.b16 %v1766
  %v2272 = vunpack.c.l.b16 %v1767
  %v2273 = vunpack.c.h.b16 %v1767
  %v2274 = vunpack.c.l.b16 %v1768
  %v2275 = vunpack.c.h.b16 %v1768
  %v2276 = vunpack.c.l.b16 %v1769
  %v2277 = vunpack.c.h.b16 %v1769
  %v2278 = vunpack.c.l.b16 %v1770
  %v2279 = vunpack.c.h.b16 %v1770
  %v2280 = vunpack.c.l.b16 %v1771
  %v2281 = vunpack.c.h.b16 %v1771
  %v2282 = vunpack.c.l.b16 %v1772
  %v2283 = vunpack.c.h.b16 %v1772
  %v2284 = vunpack.c.l.b16 %v1773
  %v2285 = vunpack.c.h.b16 %v1773
  %v2286 = vunpack.c.l.b16 %v1774
  %v2287 = vunpack.c.h.b16 %v1774
  %v2288 = vunpack.c.l.b16 %v1775
  %v2289 = vunpack.c.h.b16 %v1775
  %v2290 = vunpack.c.l.b16 %v1776
  %v2291 = vunpack.c.h.b16 %v1776
  %v2292 = vunpack.c.l.b16 %v1777
  %v2293 = vunpack.c.h.b16 %v1777
  %v2294 = vunpack.c.l.b16 %v1778
  %v2295 = vunpack.c.h.b16 %v1778
  %v2296 = vunpack.c.l.b16 %v1779
  %v2297 = vunpack.c.h.b16 %v1779
  %v2298 = vunpack.c.l.b16 %v1780
  %v2299 = vunpack.c.h.b16 %v1780
  %v2300 = vunpack.c.l.b16 %v1781
  %v2301 = vunpack.c.h.b16 %v1781
  %v2302 = vunpack.c.l.b16 %v1782
  %v2303 = vunpack.c.h.b16 %v1782
  %v2304 = vunpack.c.l.b16 %v1783
  %v2305 = vunpack.c.h.b16 %v1783
  %v2306 = vunpack.c.l.b16 %v1784
  %v2307 = vunpack.c.h.b16 %v1784
  %v2308 = vunpack.c.l.b16 %v1785
  %v2309 = vunpack.c.h.b16 %v1785
  %v2310 = vunpack.c.l.b16 %v1786
  %v2311 = vunpack.c.h.b16 %v1786
  %v2312 = vunpack.c.l.b16 %v1787
  %v2313 = vunpack.c.h.b16 %v1787
  %v2314 = vunpack.c.l.b16 %v1788
  %v2315 = vunpack.c.h.b16 %v1788
  %v2316 = vunpack.c.l.b16 %v1789
  %v2317 = vunpack.c.h.b16 %v1789
  %v2318 = vunpack.c.l.b16 %v1790
  %v2319 = vunpack.c.h.b16 %v1790
  %v2320 = vunpack.c.l.b16 %v1791
  %v2321 = vunpack.c.h.b16 %v1791
  %v2322 = vunpack.c.l.b16 %v1792
  %v2323 = vunpack.c.h.b16 %v1792
  %v2324 = vunpack.c.l.b16 %v1793
  %v2325 = vunpack.c.h.b16 %v1793
  %v2326 = vunpack.c.l.b16 %v1794
  %v2327 = vunpack.c.h.b16 %v1794
  %v2328 = vunpack.c.l.b16 %v1795
  %v2329 = vunpack.c.h.b16 %v1795
  %v2330 = vunpack.c.l.b16 %v1796
  %v2331 = vunpack.c.h.b16 %v1796
  %v2332 = vunpack.c.l.b16 %v1797
  %v2333 = vunpack.c.h.b16 %v1797
  %v2334 = vunpack.c.l.b16 %v1798
  %v2335 = vunpack.c.h.b16 %v1798
  %v2336 = vunpack.c.l.b16 %v1799
  %v2337 = vunpack.c.h.b16 %v1799
  %v2338 = vunpack.c.l.b16 %v1800
  %v2339 = vunpack.c.h.b16 %v1800
  %v2340 = vunpack.c.l.b16 %v1801
  %v2341 = vunpack.c.h.b16 %v1801
  %v2342 = vunpack.c.l.b16 %v1802
  %v2343 = vunpack.c.h.b16 %v1802
  %v2344 = vunpack.c.l.b16 %v1803
  %v2345 = vunpack.c.h.b16 %v1803
  %v2346 = vunpack.c.l.b16 %v1804
  %v2347 = vunpack.c.h.b16 %v1804
  %v2348 = vunpack.c.l.b16 %v1805
  %v2349 = vunpack.c.h.b16 %v1805
  %v2350 = vunpack.c.l.b16 %v1806
  %v2351 = vunpack.c.h.b16 %v1806
  %v2352 = vunpack.c.l.b16 %v1807
  %v2353 = vunpack.c.h.b16 %v1807
  %v2354 = vunpack.c.l.b16 %v1808
  %v2355 = vunpack.c.h.b16 %v1808
  %v2356 = vunpack.c.l.b16 %v1809
  %v2357 = vunpack.c.h.b16 %v1809
  %v2358 = vunpack.c.l.b16 %v1810
  %v2359 = vunpack.c.h.b16 %v1810
  %v2360 = vunpack.c.l.b16 %v1811
  %v2361 = vunpack.c.h.b16 %v1811
  %v2362 = vunpack.c.l.b16 %v1812
  %v2363 = vunpack.c.h.b16 %v1812
  %v2364 = vunpack.c.l.b16 %v1813
  %v2365 = vunpack.c.h.b16 %v1813
  %v2366 = vunpack.c.l.b16 %v1814
  %v2367 = vunpack.c.h.b16 %v1814
  %v2368 = vunpack.c.l.b16 %v1815
  %v2369 = vunpack.c.h.b16 %v1815
  %v2370 = vunpack.c.l.b16 %v1816
  %v2371 = vunpack.c.h.b16 %v1816
  %v2372 = vunpack.c.l.b16 %v1817
  %v2373 = vunpack.c.h.b16 %v1817
  %v2374 = vunpack.c.l.b16 %v1818
  %v2375 = vunpack.c.h.b16 %v1818
  %v2376 = vunpack.c.l.b16 %v1819
  %v2377 = vunpack.c.h.b16 %v1819
  %v2378 = vunpack.c.l.b16 %v1820
  %v2379 = vunpack.c.h.b16 %v1820
  %v2380 = vunpack.c.l.b16 %v1821
  %v2381 = vunpack.c.h.b16 %v1821
  %v2382 = vunpack.c.l.b16 %v1822
  %v2383 = vunpack.c.h.b16 %v1822
  %v2384 = vunpack.c.l.b16 %v1823
  %v2385 = vunpack.c.h.b16 %v1823
  %v2386 = vunpack.c.l.b16 %v1824
  %v2387 = vunpack.c.h.b16 %v1824
  %v2388 = vunpack.c.l.b16 %v1825
  %v2389 = vunpack.c.h.b16 %v1825
  %v2390 = vunpack.c.l.b16 %v1826
  %v2391 = vunpack.c.h.b16 %v1826
  %v2392 = vunpack.c.l.b16 %v1827
  %v2393 = vunpack.c.h.b16 %v1827
  %v2394 = vunpack.c.l.b16 %v1828
  %v2395 = vunpack.c.h.b16 %v1828
  %v2396 = vunpack.c.l.b16 %v1829
  %v2397 = vunpack.c.h.b16 %v1829
  %v2398 = vunpack.c.l.b16 %v1830
  %v2399 = vunpack.c.h.b16 %v1830
  %v2400 = vunpack.c.l.b16 %v1831
  %v2401 = vunpack.c.h.b16 %v1831
  %v2402 = vunpack.c.l.b16 %v1832
  %v2403 = vunpack.c.h.b16 %v1832
  %v2404 = vunpack.c.l.b16 %v1833
  %v2405 = vunpack.c.h.b16 %v1833
  %v2406 = vunpack.c.l.b16 %v1834
  %v2407 = vunpack.c.h.b16 %v1834
  %v2408 = vunpack.c.l.b16 %v1835
  %v2409 = vunpack.c.h.b16 %v1835
  %v2410 = vunpack.c.l.b16 %v1836
  %v2411 = vunpack.c.h.b16 %v1836
  %v2412 = vunpack.c.l.b16 %v1837
  %v2413 = vunpack.c.h.b16 %v1837
  %v2414 = vunpack.c.l.b16 %v1838
  %v2415 = vunpack.c.h.b16 %v1838
  %v2416 = vunpack.c.l.b16 %v1839
  %v2417 = vunpack.c.h.b16 %v1839
  %v2418 = vunpack.c.l.b16 %v1840
  %v2419 = vunpack.c.h.b16 %v1840
  %v2420 = vunpack.c.l.b16 %v1841
  %v2421 = vunpack.c.h.b16 %v1841
  %v2422 = vunpack.c.l.b16 %v1842
  %v2423 = vunpack.c.h.b16 %v1842
  %v2424 = vunpack.c.l.b16 %v1843
  %v2425 = vunpack.c.h.b16 %v1843
  %v2426 = vunpack.c.l.b16 %v1844
  %v2427 = vunpack.c.h.b16 %v1844
  %v2428 = vunpack.c.l.b16 %v1845
  %v2429 = vunpack.c.h.b16 %v1845
  %v2430 = vunpack.c.l.b16 %v1846
  %v2431 = vunpack.c.h.b16 %v1846
  %v2432 = vunpack.c.l.b16 %v1847
  %v2433 = vunpack.c.h.b16 %v1847
  %v2434 = vunpack.c.l.b16 %v1848
  %v2435 = vunpack.c.h.b16 %v1848
  %v2436 = vunpack.c.l.b16 %v1849
  %v2437 = vunpack.c.h.b16 %v1849
  %v2438 = vunpack.c.l.b16 %v1850
  %v2439 = vunpack.c.h.b16 %v1850
  %v2440 = vunpack.c.l.b16 %v1851
  %v2441 = vunpack.c.h.b16 %v1851
  %v2442 = vunpack.c.l.b16 %v1852
  %v2443 = vunpack.c.h.b16 %v1852
  %v2444 = vunpack.c.l.b16 %v1853
  %v2445 = vunpack.c.h.b16 %v1853
  %v2446 = vunpack.c.l.b16 %v1854
  %v2447 = vunpack.c.h.b16 %v1854
  %v2448 = vunpack.c.l.b16 %v1855
  %v2449 = vunpack.c.h.b16 %v1855
  %v2450 = vunpack.c.l.b16 %v1856
  %v2451 = vunpack.c.h.b16 %v1856
  %v2452 = vunpack.c.l.b16 %v1857
  %v2453 = vunpack.c.h.b16 %v1857
  %v2454 = vunpack.c.l.b16 %v1858
  %v2455 = vunpack.c.h.b16 %v1858
  %v2456 = vpack.c.b16 %v2076, %v2072
  %v2457 = vpack.c.b16 %v2077, %v2073
  %v2458 = vpack.c.b16 %v2078, %v2074
  %v2459 = vpack.c.b16 %v2079, %v2075
  %v2460 = vpack.c.b16 %v2084, %v2080
  %v2461 = vpack.c.b16 %v2085, %v2081
  %v2462 = vpack.c.b16 %v2086, %v2082
  %v2463 = vpack.c.b16 %v2087, %v2083
  %v2464 = vpack.c.b16 %v2092, %v2088
  %v2465 = vpack.c.b16 %v2093, %v2089
  %v2466 = vpack.c.b16 %v2094, %v2090
  %v2467 = vpack.c.b16 %v2095, %v2091
  %v2468 = vpack.c.b16 %v2100, %v2096
  %v2469 = vpack.c.b16 %v2101, %v2097
  %v2470 = vpack.c.b16 %v2102, %v2098
  %v2471 = vpack.c.b16 %v2103, %v2099
  %v2472 = vpack.c.b16 %v2108, %v2104
  %v2473 = vpack.c.b16 %v2109, %v2105
  %v2474 = vpack.c.b16 %v2110, %v2106
  %v2475 = vpack.c.b16 %v2111, %v2107
  %v2476 = vpack.c.b16 %v2116, %v2112
  %v2477 = vpack.c.b16 %v2117, %v2113
  %v2478 = vpack.c.b16 %v2118, %v2114
  %v2479 = vpack.c.b16 %v2119, %v2115
  %v2480 = vpack.c.b16 %v2124, %v2120
  %v2481 = vpack.c.b16 %v2125, %v2121
  %v2482 = vpack.c.b16 %v2126, %v2122
  %v2483 = vpack.c.b16 %v2127, %v2123
  %v2484 = vpack.c.b16 %v2132, %v2128
  %v2485 = vpack.c.b16 %v2133, %v2129
  %v2486 = vpack.c.b16 %v2134, %v2130
  %v2487 = vpack.c.b16 %v2135, %v2131
  %v2488 = vpack.c.b16 %v2140, %v2136
  %v2489 = vpack.c.b16 %v2141, %v2137
  %v2490 = vpack.c.b16 %v2142, %v2138
  %v2491 = vpack.c.b16 %v2143, %v2139
  %v2492 = vpack.c.b16 %v2148, %v2144
  %v2493 = vpack.c.b16 %v2149, %v2145
  %v2494 = vpack.c.b16 %v2150, %v2146
  %v2495 = vpack.c.b16 %v2151, %v2147
  %v2496 = vpack.c.b16 %v2156, %v2152
  %v2497 = vpack.c.b16 %v2157, %v2153
  %v2498 = vpack.c.b16 %v2158, %v2154
  %v2499 = vpack.c.b16 %v2159, %v2155
  %v2500 = vpack.c.b16 %v2164, %v2160
  %v2501 = vpack.c.b16 %v2165, %v2161
  %v2502 = vpack.c.b16 %v2166, %v2162
  %v2503 = vpack.c.b16 %v2167, %v2163
  %v2504 = vpack.c.b16 %v2172, %v2168
  %v2505 = vpack.c.b16 %v2173, %v2169
  %v2506 = vpack.c.b16 %v2174, %v2170
  %v2507 = vpack.c.b16 %v2175, %v2171
  %v2508 = vpack.c.b16 %v2180, %v2176
  %v2509 = vpack.c.b16 %v2181, %v2177
  %v2510 = vpack.c.b16 %v2182, %v2178
  %v2511 = vpack.c.b16 %v2183, %v2179
  %v2512 = vpack.c.b16 %v2188, %v2184
  %v2513 = vpack.c.b16 %v2189, %v2185
  %v2514 = vpack.c.b16 %v2190, %v2186
  %v2515 = vpack.c.b16 %v2191, %v2187
  %v2516 = vpack.c.b16 %v2196, %v2192
  %v2517 = vpack.c.b16 %v2197, %v2193
  %v2518 = vpack.c.b16 %v2198, %v2194
  %v2519 = vpack.c.b16 %v2199, %v2195
  %v2520 = vpack.c.b16 %v2204, %v2200
  %v2521 = vpack.c.b16 %v2205, %v2201
  %v2522 = vpack.c.b16 %v2206, %v2202
  %v2523 = vpack.c.b16 %v2207, %v2203
  %v2524 = vpack.c.b16 %v2212, %v2208
  %v2525 = vpack.c.b16 %v2213, %v2209
  %v2526 = vpack.c.b16 %v2214, %v2210
  %v2527 = vpack.c.b16 %v2215, %v2211
  %v2528 = vpack.c.b16 %v2220, %v2216
  %v2529 = vpack.c.b16 %v2221, %v2217
  %v2530 = vpack.c.b16 %v2222, %v2218
  %v2531 = vpack.c.b16 %v2223, %v2219
  %v2532 = vpack.c.b16 %v2228, %v2224
  %v2533 = vpack.c.b16 %v2229, %v2225
  %v2534 = vpack.c.b16 %v2230, %v2226
  %v2535 = vpack.c.b16 %v2231, %v2227
  %v2536 = vpack.c.b16 %v2236, %v2232
  %v2537 = vpack.c.b16 %v2237, %v2233
  %v2538 = vpack.c.b16 %v2238, %v2234
  %v2539 = vpack.c.b16 %v2239, %v2235
  %v2540 = vpack.c.b16 %v2244, %v2240
  %v2541 = vpack.c.b16 %v2245, %v2241
  %v2542 = vpack.c.b16 %v2246, %v2242
  %v2543 = vpack.c.b16 %v2247, %v2243
  %v2544 = vpack.c.b16 %v2252, %v2248
  %v2545 = vpack.c.b16 %v2253, %v2249
  %v2546 = vpack.c.b16 %v2254, %v2250
  %v2547 = vpack.c.b16 %v2255, %v2251
  %v2548 = vpack.c.b16 %v2260, %v2256
  %v2549 = vpack.c.b16 %v2261, %v2257
  %v2550 = vpack.c.b16 %v2262, %v2258
  %v2551 = vpack.c.b16 %v2263, %v2259
  %v2552 = vpack.c.b16 %v2268, %v2264
  %v2553 = vpack.c.b16 %v2269, %v2265
  %v2554 = vpack.c.b16 %v2270, %v2266
  %v2555 = vpack.c.b16 %v2271, %v2267
  %v2556 = vpack.c.b16 %v2276, %v2272
  %v2557 = vpack.c.b16 %v2277, %v2273
  %v2558 = vpack.c.b16 %v2278, %v2274
  %v2559 = vpack.c.b16 %v2279, %v2275
  %v2560 = vpack.c.b16 %v2284, %v2280
  %v2561 = vpack.c.b16 %v2285, %v2281
  %v2562 = vpack.c.b16 %v2286, %v2282
  %v2563 = vpack.c.b16 %v2287, %v2283
  %v2564 = vpack.c.b16 %v2292, %v2288
  %v2565 = vpack.c.b16 %v2293, %v2289
  %v2566 = vpack.c.b16 %v2294, %v2290
  %v2567 = vpack.c.b16 %v2295, %v2291
  %v2568 = vpack.c.b16 %v2300, %v2296
  %v2569 = vpack.c.b16 %v2301, %v2297
  %v2570 = vpack.c.b16 %v2302, %v2298
  %v2571 = vpack.c.b16 %v2303, %v2299
  %v2572 = vpack.c.b16 %v2308, %v2304
  %v2573 = vpack.c.b16 %v2309, %v2305
  %v2574 = vpack.c.b16 %v2310, %v2306
  %v2575 = vpack.c.b16 %v2311, %v2307
  %v2576 = vpack.c.b16 %v2316, %v2312
  %v2577 = vpack.c.b16 %v2317, %v2313
  %v2578 = vpack.c.b16 %v2318, %v2314
  %v2579 = vpack.c.b16 %v2319, %v2315
  %v2580 = vpack.c.b16 %v2324, %v2320
  %v2581 = vpack.c.b16 %v2325, %v2321
  %v2582 = vpack.c.b16 %v2326, %v2322
  %v2583 = vpack.c.b16 %v2327, %v2323
  %v2584 = vpack.c.b16 %v2332, %v2328
  %v2585 = vpack.c.b16 %v2333, %v2329
  %v2586 = vpack.c.b16 %v2334, %v2330
  %v2587 = vpack.c.b16 %v2335, %v2331
  %v2588 = vpack.c.b16 %v2340, %v2336
  %v2589 = vpack.c.b16 %v2341, %v2337
  %v2590 = vpack.c.b16 %v2342, %v2338
  %v2591 = vpack.c.b16 %v2343, %v2339
  %v2592 = vpack.c.b16 %v2348, %v2344
  %v2593 = vpack.c.b16 %v2349, %v2345
  %v2594 = vpack.c.b16 %v2350, %v2346
  %v2595 = vpack.c.b16 %v2351, %v2347
  %v2596 = vpack.c.b16 %v2356, %v2352
  %v2597 = vpack.c.b16 %v2357, %v2353
  %v2598 = vpack.c.b16 %v2358, %v2354
  %v2599 = vpack.c.b16 %v2359, %v2355
  %v2600 = vpack.c.b16 %v2364, %v2360
  %v2601 = vpack.c.b16 %v2365, %v2361
  %v2602 = vpack.c.b16 %v2366, %v2362
  %v2603 = vpack.c.b16 %v2367, %v2363
  %v2604 = vpack.c.b16 %v2372, %v2368
  %v2605 = vpack.c.b16 %v2373, %v2369
  %v2606 = vpack.c.b16 %v2374, %v2370
  %v2607 = vpack.c.b16 %v2375, %v2371
  %v2608 = vpack.c.b16 %v2380, %v2376
  %v2609 = vpack.c.b16 %v2381, %v2377
  %v2610 = vpack.c.b16 %v2382, %v2378
  %v2611 = vpack.c.b16 %v2383, %v2379
  %v2612 = vpack.c.b16 %v2388, %v2384
  %v2613 = vpack.c.b16 %v2389, %v2385
  %v2614 = vpack.c.b16 %v2390, %v2386
  %v2615 = vpack.c.b16 %v2391, %v2387
  %v2616 = vpack.c.b16 %v2396, %v2392
  %v2617 = vpack.c.b16 %v2397, %v2393
  %v2618 = vpack.c.b16 %v2398, %v2394
  %v2619 = vpack.c.b16 %v2399, %v2395
  %v2620 = vpack.c.b16 %v2404, %v2400
  %v2621 = vpack.c.b16 %v2405, %v2401
  %v2622 = vpack.c.b16 %v2406, %v2402
  %v2623 = vpack.c.b16 %v2407, %v2403
  %v2624 = vpack.c.b16 %v2412, %v2408
  %v2625 = vpack.c.b16 %v2413, %v2409
  %v2626 = vpack.c.b16 %v2414, %v2410
  %v2627 = vpack.c.b16 %v2415, %v2411
  %v2628 = vpack.c.b16 %v2420, %v2416
  %v2629 = vpack.c.b16 %v2421, %v2417
  %v2630 = vpack.c.b16 %v2422, %v2418
  %v2631 = vpack.c.b16 %v2423, %v2419
  %v2632 = vpack.c.b16 %v2428, %v2424
  %v2633 = vpack.c.b16 %v2429, %v2425
  %v2634 = vpack.c.b16 %v2430, %v2426
  %v2635 = vpack.c.b16 %v2431, %v2427
  %v2636 = vpack.c.b16 %v2436, %v2432
  %v2637 = vpack.c.b16 %v2437, %v2433
  %v2638 = vpack.c.b16 %v2438, %v2434
  %v2639 = vpack.c.b16 %v2439, %v2435
  %v2640 = vpack.c.b16 %v2444, %v2440
  %v2641 = vpack.c.b16 %v2445, %v2441
  %v2642 = vpack.c.b16 %v2446, %v2442
  %v2643 = vpack.c.b16 %v2447, %v2443
  %v2644 = vpack.c.b16 %v2452, %v2448
  %v2645 = vpack.c.b16 %v2453, %v2449
  %v2646 = vpack.c.b16 %v2454, %v2450
  %v2647 = vpack.c.b16 %v2455, %v2451
  %2840 = vmatprep.subr.bf16.mxu0 %v2485
  %2841 = vmatpush1.bf16.msra.mxu0 %v2484
  %2842 = vmatprep.subr.bf16.mxu0 %v2481
  %2843 = vmatpush1.bf16.msra.mxu0 %v2480
  %2844 = vmatprep.subr.bf16.mxu0 %v2477
  %2845 = vmatpush1.bf16.msra.mxu0 %v2476
  %2846 = vmatprep.subr.bf16.mxu0 %v2473
  %2847 = vmatpush1.bf16.msra.mxu0 %v2472
  %2848 = vmatprep.subr.bf16.mxu0 %v2469
  %2849 = vmatpush1.bf16.msra.mxu0 %v2468
  %2850 = vmatprep.subr.bf16.mxu0 %v2465
  %2851 = vmatpush1.bf16.msra.mxu0 %v2464
  %2852 = vmatprep.subr.bf16.mxu0 %v2461
  %2853 = vmatpush1.bf16.msra.mxu0 %v2460
  %2854 = vmatprep.subr.bf16.mxu0 %v2457
  %2855 = vmatpush1.bf16.msra.mxu0 %v2456
  %2856 = vmatprep.subr.bf16.mxu0 %v2517
  %2857 = vmatpush2.bf16.msra.mxu0 %v2516
  %2858 = vmatprep.subr.bf16.mxu0 %v2513
  %2859 = vmatpush2.bf16.msra.mxu0 %v2512
  %2860 = vmatprep.subr.bf16.mxu0 %v2509
  %2861 = vmatpush2.bf16.msra.mxu0 %v2508
  %2862 = vmatprep.subr.bf16.mxu0 %v2505
  %2863 = vmatpush2.bf16.msra.mxu0 %v2504
  %2864 = vmatprep.subr.bf16.mxu0 %v2501
  %2865 = vmatpush2.bf16.msra.mxu0 %v2500
  %2866 = vmatprep.subr.bf16.mxu0 %v2497
  %2867 = vmatpush2.bf16.msra.mxu0 %v2496
  %2868 = vmatprep.subr.bf16.mxu0 %v2493
  %2869 = vmatpush2.bf16.msra.mxu0 %v2492
  %2870 = vmatprep.subr.bf16.mxu0 %v2489
  %2871 = vmatpush2.bf16.msra.mxu0 %v2488
  %2872 = vmatprep.mubr.bf16.mxu0 %v1650
  %2873 = vmatmul.mubr.bf16.gmra.mxu0 %v1649
  %v2874 = vpop.f32.mrf.mxu0
  %v2875 = vadd.f32 %v1863, %v2874
  %v2876 = vpop.f32.mrf.mxu0
  %v2877 = vadd.f32 %v1867, %v2876
  %v2878 = vpop.f32.mrf.mxu0
  %v2879 = vadd.f32 %v1863, %v2878
  %v2880 = vpop.f32.mrf.mxu0
  %v2881 = vadd.f32 %v1867, %v2880
  %2882 = vmatprep.mubr.bf16.mxu0 %v1656
  %2883 = vmatmul.mubr.bf16.gmra.mxu0 %v1655
  %v2884 = vpop.f32.mrf.mxu0
  %v2885 = vadd.f32 %v1863, %v2884
  %v2886 = vpop.f32.mrf.mxu0
  %v2887 = vadd.f32 %v1867, %v2886
  %v2888 = vpop.f32.mrf.mxu0
  %v2889 = vadd.f32 %v1863, %v2888
  %v2890 = vpop.f32.mrf.mxu0
  %v2891 = vadd.f32 %v1867, %v2890
  %2892 = vmatprep.mubr.bf16.mxu0 %v1662
  %2893 = vmatmul.mubr.bf16.gmra.mxu0 %v1661
  %v2894 = vpop.f32.mrf.mxu0
  %v2895 = vadd.f32 %v1863, %v2894
  %v2896 = vpop.f32.mrf.mxu0
  %v2897 = vadd.f32 %v1867, %v2896
  %v2898 = vpop.f32.mrf.mxu0
  %v2899 = vadd.f32 %v1863, %v2898
  %v2900 = vpop.f32.mrf.mxu0
  %v2901 = vadd.f32 %v1867, %v2900
  %2902 = vdwg.mxu0
  %2903 = vmatprep.subr.bf16.mxu0 %v2549
  %2904 = vmatpush1.bf16.msra.mxu0 %v2548
  %2905 = vmatprep.subr.bf16.mxu0 %v2545
  %2906 = vmatpush1.bf16.msra.mxu0 %v2544
  %2907 = vmatprep.subr.bf16.mxu0 %v2541
  %2908 = vmatpush1.bf16.msra.mxu0 %v2540
  %2909 = vmatprep.subr.bf16.mxu0 %v2537
  %2910 = vmatpush1.bf16.msra.mxu0 %v2536
  %2911 = vmatprep.subr.bf16.mxu0 %v2533
  %2912 = vmatpush1.bf16.msra.mxu0 %v2532
  %2913 = vmatprep.subr.bf16.mxu0 %v2529
  %2914 = vmatpush1.bf16.msra.mxu0 %v2528
  %2915 = vmatprep.subr.bf16.mxu0 %v2525
  %2916 = vmatpush1.bf16.msra.mxu0 %v2524
  %2917 = vmatprep.subr.bf16.mxu0 %v2521
  %2918 = vmatpush1.bf16.msra.mxu0 %v2520
  %2919 = vmatprep.subr.bf16.mxu0 %v2581
  %2920 = vmatpush2.bf16.msra.mxu0 %v2580
  %2921 = vmatprep.subr.bf16.mxu0 %v2577
  %2922 = vmatpush2.bf16.msra.mxu0 %v2576
  %2923 = vmatprep.subr.bf16.mxu0 %v2573
  %2924 = vmatpush2.bf16.msra.mxu0 %v2572
  %2925 = vmatprep.subr.bf16.mxu0 %v2569
  %2926 = vmatpush2.bf16.msra.mxu0 %v2568
  %2927 = vmatprep.subr.bf16.mxu0 %v2565
  %2928 = vmatpush2.bf16.msra.mxu0 %v2564
  %2929 = vmatprep.subr.bf16.mxu0 %v2561
  %2930 = vmatpush2.bf16.msra.mxu0 %v2560
  %2931 = vmatprep.subr.bf16.mxu0 %v2557
  %2932 = vmatpush2.bf16.msra.mxu0 %v2556
  %2933 = vmatprep.subr.bf16.mxu0 %v2553
  %2934 = vmatpush2.bf16.msra.mxu0 %v2552
  %2935 = vmatprep.mubr.bf16.mxu0 %v1652
  %2936 = vmatmul.mubr.bf16.gmra.mxu0 %v1651
  %v2937 = vpop.f32.mrf.mxu0
  %v2938 = vadd.f32 %v2875, %v2937
  %v2939 = vpop.f32.mrf.mxu0
  %v2940 = vadd.f32 %v2877, %v2939
  %v2941 = vpop.f32.mrf.mxu0
  %v2942 = vadd.f32 %v2879, %v2941
  %v2943 = vpop.f32.mrf.mxu0
  %v2944 = vadd.f32 %v2881, %v2943
  %2945 = vmatprep.mubr.bf16.mxu0 %v1658
  %2946 = vmatmul.mubr.bf16.gmra.mxu0 %v1657
  %v2947 = vpop.f32.mrf.mxu0
  %v2948 = vadd.f32 %v2885, %v2947
  %v2949 = vpop.f32.mrf.mxu0
  %v2950 = vadd.f32 %v2887, %v2949
  %v2951 = vpop.f32.mrf.mxu0
  %v2952 = vadd.f32 %v2889, %v2951
  %v2953 = vpop.f32.mrf.mxu0
  %v2954 = vadd.f32 %v2891, %v2953
  %2955 = vmatprep.mubr.bf16.mxu0 %v1664
  %2956 = vmatmul.mubr.bf16.gmra.mxu0 %v1663
  %v2957 = vpop.f32.mrf.mxu0
  %v2958 = vadd.f32 %v2895, %v2957
  %v2959 = vpop.f32.mrf.mxu0
  %v2960 = vadd.f32 %v2897, %v2959
  %v2961 = vpop.f32.mrf.mxu0
  %v2962 = vadd.f32 %v2899, %v2961
  %v2963 = vpop.f32.mrf.mxu0
  %v2964 = vadd.f32 %v2901, %v2963
  %2965 = vdwg.mxu0
  %2966 = vmatprep.subr.bf16.mxu0 %v2613
  %2967 = vmatpush1.bf16.msra.mxu0 %v2612
  %2968 = vmatprep.subr.bf16.mxu0 %v2609
  %2969 = vmatpush1.bf16.msra.mxu0 %v2608
  %2970 = vmatprep.subr.bf16.mxu0 %v2605
  %2971 = vmatpush1.bf16.msra.mxu0 %v2604
  %2972 = vmatprep.subr.bf16.mxu0 %v2601
  %2973 = vmatpush1.bf16.msra.mxu0 %v2600
  %2974 = vmatprep.subr.bf16.mxu0 %v2597
  %2975 = vmatpush1.bf16.msra.mxu0 %v2596
  %2976 = vmatprep.subr.bf16.mxu0 %v2593
  %2977 = vmatpush1.bf16.msra.mxu0 %v2592
  %2978 = vmatprep.subr.bf16.mxu0 %v2589
  %2979 = vmatpush1.bf16.msra.mxu0 %v2588
  %2980 = vmatprep.subr.bf16.mxu0 %v2585
  %2981 = vmatpush1.bf16.msra.mxu0 %v2584
  %2982 = vmatprep.subr.bf16.mxu0 %v2645
  %2983 = vmatpush2.bf16.msra.mxu0 %v2644
  %2984 = vmatprep.subr.bf16.mxu0 %v2641
  %2985 = vmatpush2.bf16.msra.mxu0 %v2640
  %2986 = vmatprep.subr.bf16.mxu0 %v2637
  %2987 = vmatpush2.bf16.msra.mxu0 %v2636
  %2988 = vmatprep.subr.bf16.mxu0 %v2633
  %2989 = vmatpush2.bf16.msra.mxu0 %v2632
  %2990 = vmatprep.subr.bf16.mxu0 %v2629
  %2991 = vmatpush2.bf16.msra.mxu0 %v2628
  %2992 = vmatprep.subr.bf16.mxu0 %v2625
  %2993 = vmatpush2.bf16.msra.mxu0 %v2624
  %2994 = vmatprep.subr.bf16.mxu0 %v2621
  %2995 = vmatpush2.bf16.msra.mxu0 %v2620
  %2996 = vmatprep.subr.bf16.mxu0 %v2617
  %2997 = vmatpush2.bf16.msra.mxu0 %v2616
  %2998 = vmatprep.mubr.bf16.mxu0 %v1654
  %2999 = vmatmul.mubr.bf16.gmra.mxu0 %v1653
  %v3000 = vpop.f32.mrf.mxu0
  %v3001 = vadd.f32 %v2938, %v3000
  %v3002 = vpop.f32.mrf.mxu0
  %v3003 = vadd.f32 %v2940, %v3002
  %v3004 = vpop.f32.mrf.mxu0
  %v3005 = vadd.f32 %v2942, %v3004
  %v3006 = vpop.f32.mrf.mxu0
  %v3007 = vadd.f32 %v2944, %v3006
  %3008 = vmatprep.mubr.bf16.mxu0 %v1660
  %3009 = vmatmul.mubr.bf16.gmra.mxu0 %v1659
  %v3010 = vpop.f32.mrf.mxu0
  %v3011 = vadd.f32 %v2948, %v3010
  %v3012 = vpop.f32.mrf.mxu0
  %v3013 = vadd.f32 %v2950, %v3012
  %v3014 = vpop.f32.mrf.mxu0
  %v3015 = vadd.f32 %v2952, %v3014
  %v3016 = vpop.f32.mrf.mxu0
  %v3017 = vadd.f32 %v2954, %v3016
  %3018 = vmatprep.mubr.bf16.mxu0 %v1666
  %3019 = vmatmul.mubr.bf16.gmra.mxu0 %v1665
  %v3020 = vpop.f32.mrf.mxu0
  %v3021 = vadd.f32 %v2958, %v3020
  %v3022 = vpop.f32.mrf.mxu0
  %v3023 = vadd.f32 %v2960, %v3022
  %v3024 = vpop.f32.mrf.mxu0
  %v3025 = vadd.f32 %v2962, %v3024
  %v3026 = vpop.f32.mrf.mxu0
  %v3027 = vadd.f32 %v2964, %v3026
  %3028 = vdwg.mxu0
  %3029 = vmatprep.subr.bf16.mxu0 %v2487
  %3030 = vmatpush1.bf16.msra.mxu0 %v2486
  %3031 = vmatprep.subr.bf16.mxu0 %v2483
  %3032 = vmatpush1.bf16.msra.mxu0 %v2482
  %3033 = vmatprep.subr.bf16.mxu0 %v2479
  %3034 = vmatpush1.bf16.msra.mxu0 %v2478
  %3035 = vmatprep.subr.bf16.mxu0 %v2475
  %3036 = vmatpush1.bf16.msra.mxu0 %v2474
  %3037 = vmatprep.subr.bf16.mxu0 %v2471
  %3038 = vmatpush1.bf16.msra.mxu0 %v2470
  %3039 = vmatprep.subr.bf16.mxu0 %v2467
  %3040 = vmatpush1.bf16.msra.mxu0 %v2466
  %3041 = vmatprep.subr.bf16.mxu0 %v2463
  %3042 = vmatpush1.bf16.msra.mxu0 %v2462
  %3043 = vmatprep.subr.bf16.mxu0 %v2459
  %3044 = vmatpush1.bf16.msra.mxu0 %v2458
  %3045 = vmatprep.subr.bf16.mxu0 %v2519
  %3046 = vmatpush2.bf16.msra.mxu0 %v2518
  %3047 = vmatprep.subr.bf16.mxu0 %v2515
  %3048 = vmatpush2.bf16.msra.mxu0 %v2514
  %3049 = vmatprep.subr.bf16.mxu0 %v2511
  %3050 = vmatpush2.bf16.msra.mxu0 %v2510
  %3051 = vmatprep.subr.bf16.mxu0 %v2507
  %3052 = vmatpush2.bf16.msra.mxu0 %v2506
  %3053 = vmatprep.subr.bf16.mxu0 %v2503
  %3054 = vmatpush2.bf16.msra.mxu0 %v2502
  %3055 = vmatprep.subr.bf16.mxu0 %v2499
  %3056 = vmatpush2.bf16.msra.mxu0 %v2498
  %3057 = vmatprep.subr.bf16.mxu0 %v2495
  %3058 = vmatpush2.bf16.msra.mxu0 %v2494
  %3059 = vmatprep.subr.bf16.mxu0 %v2491
  %3060 = vmatpush2.bf16.msra.mxu0 %v2490
  %3061 = vmatprep.mubr.bf16.mxu0 %v1650
  %3062 = vmatmul.mubr.bf16.gmra.mxu0 %v1649
  %v3063 = vpop.f32.mrf.mxu0
  %v3064 = vadd.f32 %v1871, %v3063
  %v3065 = vpop.f32.mrf.mxu0
  %v3066 = vadd.f32 %v1875, %v3065
  %v3067 = vpop.f32.mrf.mxu0
  %v3068 = vadd.f32 %v1871, %v3067
  %v3069 = vpop.f32.mrf.mxu0
  %v3070 = vadd.f32 %v1875, %v3069
  %3071 = vmatprep.mubr.bf16.mxu0 %v1656
  %3072 = vmatmul.mubr.bf16.gmra.mxu0 %v1655
  %v3073 = vpop.f32.mrf.mxu0
  %v3074 = vadd.f32 %v1871, %v3073
  %v3075 = vpop.f32.mrf.mxu0
  %v3076 = vadd.f32 %v1875, %v3075
  %v3077 = vpop.f32.mrf.mxu0
  %v3078 = vadd.f32 %v1871, %v3077
  %v3079 = vpop.f32.mrf.mxu0
  %v3080 = vadd.f32 %v1875, %v3079
  %3081 = vmatprep.mubr.bf16.mxu0 %v1662
  %3082 = vmatmul.mubr.bf16.gmra.mxu0 %v1661
  %v3083 = vpop.f32.mrf.mxu0
  %v3084 = vadd.f32 %v1871, %v3083
  %v3085 = vpop.f32.mrf.mxu0
  %v3086 = vadd.f32 %v1875, %v3085
  %v3087 = vpop.f32.mrf.mxu0
  %v3088 = vadd.f32 %v1871, %v3087
  %v3089 = vpop.f32.mrf.mxu0
  %v3090 = vadd.f32 %v1875, %v3089
  %3091 = vdwg.mxu0
  %3092 = vmatprep.subr.bf16.mxu0 %v2551
  %3093 = vmatpush1.bf16.msra.mxu0 %v2550
  %3094 = vmatprep.subr.bf16.mxu0 %v2547
  %3095 = vmatpush1.bf16.msra.mxu0 %v2546
  %3096 = vmatprep.subr.bf16.mxu0 %v2543
  %3097 = vmatpush1.bf16.msra.mxu0 %v2542
  %3098 = vmatprep.subr.bf16.mxu0 %v2539
  %3099 = vmatpush1.bf16.msra.mxu0 %v2538
  %3100 = vmatprep.subr.bf16.mxu0 %v2535
  %3101 = vmatpush1.bf16.msra.mxu0 %v2534
  %3102 = vmatprep.subr.bf16.mxu0 %v2531
  %3103 = vmatpush1.bf16.msra.mxu0 %v2530
  %3104 = vmatprep.subr.bf16.mxu0 %v2527
  %3105 = vmatpush1.bf16.msra.mxu0 %v2526
  %3106 = vmatprep.subr.bf16.mxu0 %v2523
  %3107 = vmatpush1.bf16.msra.mxu0 %v2522
  %3108 = vmatprep.subr.bf16.mxu0 %v2583
  %3109 = vmatpush2.bf16.msra.mxu0 %v2582
  %3110 = vmatprep.subr.bf16.mxu0 %v2579
  %3111 = vmatpush2.bf16.msra.mxu0 %v2578
  %3112 = vmatprep.subr.bf16.mxu0 %v2575
  %3113 = vmatpush2.bf16.msra.mxu0 %v2574
  %3114 = vmatprep.subr.bf16.mxu0 %v2571
  %3115 = vmatpush2.bf16.msra.mxu0 %v2570
  %3116 = vmatprep.subr.bf16.mxu0 %v2567
  %3117 = vmatpush2.bf16.msra.mxu0 %v2566
  %3118 = vmatprep.subr.bf16.mxu0 %v2563
  %3119 = vmatpush2.bf16.msra.mxu0 %v2562
  %3120 = vmatprep.subr.bf16.mxu0 %v2559
  %3121 = vmatpush2.bf16.msra.mxu0 %v2558
  %3122 = vmatprep.subr.bf16.mxu0 %v2555
  %3123 = vmatpush2.bf16.msra.mxu0 %v2554
  %3124 = vmatprep.mubr.bf16.mxu0 %v1652
  %3125 = vmatmul.mubr.bf16.gmra.mxu0 %v1651
  %v3126 = vpop.f32.mrf.mxu0
  %v3127 = vadd.f32 %v3064, %v3126
  %v3128 = vpop.f32.mrf.mxu0
  %v3129 = vadd.f32 %v3066, %v3128
  %v3130 = vpop.f32.mrf.mxu0
  %v3131 = vadd.f32 %v3068, %v3130
  %v3132 = vpop.f32.mrf.mxu0
  %v3133 = vadd.f32 %v3070, %v3132
  %3134 = vmatprep.mubr.bf16.mxu0 %v1658
  %3135 = vmatmul.mubr.bf16.gmra.mxu0 %v1657
  %v3136 = vpop.f32.mrf.mxu0
  %v3137 = vadd.f32 %v3074, %v3136
  %v3138 = vpop.f32.mrf.mxu0
  %v3139 = vadd.f32 %v3076, %v3138
  %v3140 = vpop.f32.mrf.mxu0
  %v3141 = vadd.f32 %v3078, %v3140
  %v3142 = vpop.f32.mrf.mxu0
  %v3143 = vadd.f32 %v3080, %v3142
  %3144 = vmatprep.mubr.bf16.mxu0 %v1664
  %3145 = vmatmul.mubr.bf16.gmra.mxu0 %v1663
  %v3146 = vpop.f32.mrf.mxu0
  %v3147 = vadd.f32 %v3084, %v3146
  %v3148 = vpop.f32.mrf.mxu0
  %v3149 = vadd.f32 %v3086, %v3148
  %v3150 = vpop.f32.mrf.mxu0
  %v3151 = vadd.f32 %v3088, %v3150
  %v3152 = vpop.f32.mrf.mxu0
  %v3153 = vadd.f32 %v3090, %v3152
  %3154 = vdwg.mxu0
  %3155 = vmatprep.subr.bf16.mxu0 %v2615
  %3156 = vmatpush1.bf16.msra.mxu0 %v2614
  %3157 = vmatprep.subr.bf16.mxu0 %v2611
  %3158 = vmatpush1.bf16.msra.mxu0 %v2610
  %3159 = vmatprep.subr.bf16.mxu0 %v2607
  %3160 = vmatpush1.bf16.msra.mxu0 %v2606
  %3161 = vmatprep.subr.bf16.mxu0 %v2603
  %3162 = vmatpush1.bf16.msra.mxu0 %v2602
  %3163 = vmatprep.subr.bf16.mxu0 %v2599
  %3164 = vmatpush1.bf16.msra.mxu0 %v2598
  %3165 = vmatprep.subr.bf16.mxu0 %v2595
  %3166 = vmatpush1.bf16.msra.mxu0 %v2594
  %3167 = vmatprep.subr.bf16.mxu0 %v2591
  %3168 = vmatpush1.bf16.msra.mxu0 %v2590
  %3169 = vmatprep.subr.bf16.mxu0 %v2587
  %3170 = vmatpush1.bf16.msra.mxu0 %v2586
  %3171 = vmatprep.subr.bf16.mxu0 %v2647
  %3172 = vmatpush2.bf16.msra.mxu0 %v2646
  %3173 = vmatprep.subr.bf16.mxu0 %v2643
  %3174 = vmatpush2.bf16.msra.mxu0 %v2642
  %3175 = vmatprep.subr.bf16.mxu0 %v2639
  %3176 = vmatpush2.bf16.msra.mxu0 %v2638
  %3177 = vmatprep.subr.bf16.mxu0 %v2635
  %3178 = vmatpush2.bf16.msra.mxu0 %v2634
  %3179 = vmatprep.subr.bf16.mxu0 %v2631
  %3180 = vmatpush2.bf16.msra.mxu0 %v2630
  %3181 = vmatprep.subr.bf16.mxu0 %v2627
  %3182 = vmatpush2.bf16.msra.mxu0 %v2626
  %3183 = vmatprep.subr.bf16.mxu0 %v2623
  %3184 = vmatpush2.bf16.msra.mxu0 %v2622
  %3185 = vmatprep.subr.bf16.mxu0 %v2619
  %3186 = vmatpush2.bf16.msra.mxu0 %v2618
  %3187 = vmatprep.mubr.bf16.mxu0 %v1654
  %3188 = vmatmul.mubr.bf16.gmra.mxu0 %v1653
  %v3189 = vpop.f32.mrf.mxu0
  %v3190 = vadd.f32 %v3127, %v3189
  %v3191 = vpop.f32.mrf.mxu0
  %v3192 = vadd.f32 %v3129, %v3191
  %v3193 = vpop.f32.mrf.mxu0
  %v3194 = vadd.f32 %v3131, %v3193
  %v3195 = vpop.f32.mrf.mxu0
  %v3196 = vadd.f32 %v3133, %v3195
  %3197 = vmatprep.mubr.bf16.mxu0 %v1660
  %3198 = vmatmul.mubr.bf16.gmra.mxu0 %v1659
  %v3199 = vpop.f32.mrf.mxu0
  %v3200 = vadd.f32 %v3137, %v3199
  %v3201 = vpop.f32.mrf.mxu0
  %v3202 = vadd.f32 %v3139, %v3201
  %v3203 = vpop.f32.mrf.mxu0
  %v3204 = vadd.f32 %v3141, %v3203
  %v3205 = vpop.f32.mrf.mxu0
  %v3206 = vadd.f32 %v3143, %v3205
  %3207 = vmatprep.mubr.bf16.mxu0 %v1666
  %3208 = vmatmul.mubr.bf16.gmra.mxu0 %v1665
  %v3209 = vpop.f32.mrf.mxu0
  %v3210 = vadd.f32 %v3147, %v3209
  %v3211 = vpop.f32.mrf.mxu0
  %v3212 = vadd.f32 %v3149, %v3211
  %v3213 = vpop.f32.mrf.mxu0
  %v3214 = vadd.f32 %v3151, %v3213
  %v3215 = vpop.f32.mrf.mxu0
  %v3216 = vadd.f32 %v3153, %v3215
  %3217 = vdwg.mxu0
  %v3218 = vmax.f32 %v3001, 0.0
  %v3219 = vmax.f32 %v3003, 0.0
  %v3220 = vmax.f32 %v3190, 0.0
  %v3221 = vmax.f32 %v3192, 0.0
  %v3222 = vmax.f32 %v3005, 0.0
  %v3223 = vmax.f32 %v3007, 0.0
  %v3224 = vmax.f32 %v3194, 0.0
  %v3225 = vmax.f32 %v3196, 0.0
  %v3226 = vmax.f32 %v3011, 0.0
  %v3227 = vmax.f32 %v3013, 0.0
  %v3228 = vmax.f32 %v3200, 0.0
  %v3229 = vmax.f32 %v3202, 0.0
  %v3230 = vmax.f32 %v3015, 0.0
  %v3231 = vmax.f32 %v3017, 0.0
  %v3232 = vmax.f32 %v3204, 0.0
  %v3233 = vmax.f32 %v3206, 0.0
  %v3234 = vmax.f32 %v3021, 0.0
  %v3235 = vmax.f32 %v3023, 0.0
  %v3236 = vmax.f32 %v3210, 0.0
  %v3237 = vmax.f32 %v3212, 0.0
  %v3238 = vmax.f32 %v3025, 0.0
  %v3239 = vmax.f32 %v3027, 0.0
  %v3240 = vmax.f32 %v3214, 0.0
  %v3241 = vmax.f32 %v3216, 0.0
  %v3242 = vpack.c.bf16 %v3222, %v3218
  %v3243 = vpack.c.bf16 %v3223, %v3219
  %v3244 = vpack.c.bf16 %v3224, %v3220
  %v3245 = vpack.c.bf16 %v3225, %v3221
  %v3246 = vpack.c.bf16 %v3230, %v3226
  %v3247 = vpack.c.bf16 %v3231, %v3227
  %v3248 = vpack.c.bf16 %v3232, %v3228
  %v3249 = vpack.c.bf16 %v3233, %v3229
  %v3250 = vpack.c.bf16 %v3238, %v3234
  %v3251 = vpack.c.bf16 %v3239, %v3235
  %v3252 = vpack.c.bf16 %v3240, %v3236
  %v3253 = vpack.c.bf16 %v3241, %v3237
  %v3254 = vld [vmem:[%s4] sm:$0xff]
  %v3255 = vld [vmem:[%s4 + $0x8] sm:$0xff]
  %v3256 = vld [vmem:[%s4 + $0x10] sm:$0xff]
  %v3257 = vld [vmem:[%s4 + $0x18] sm:$0xff]
  %v3258 = vld [vmem:[%s4 + $0x20] sm:$0xff]
  %v3259 = vld [vmem:[%s4 + $0x28] sm:$0xff]
  %v3260 = vld [vmem:[%s4 + $0x30] sm:$0xff]
  %v3261 = vld [vmem:[%s4 + $0x38] sm:$0xff]
  %v3262 = vld [vmem:[%s4 + $0x40] sm:$0xff]
  %v3263 = vld [vmem:[%s4 + $0x48] sm:$0xff]
  %v3264 = vld [vmem:[%s4 + $0x50] sm:$0xff]
  %v3265 = vld [vmem:[%s4 + $0x58] sm:$0xff]
  %v3266 = vld [vmem:[%s4 + $0x60] sm:$0xff]
  %v3267 = vld [vmem:[%s4 + $0x68] sm:$0xff]
  %v3268 = vld [vmem:[%s4 + $0x70] sm:$0xff]
  %v3269 = vld [vmem:[%s4 + $0x78] sm:$0xff]
  %v3270 = vld [vmem:[%s4 + $0x80] sm:$0xff]
  %v3271 = vld [vmem:[%s4 + $0x88] sm:$0xff]
  %v3272 = vld [vmem:[%s4 + $0x90] sm:$0xff]
  %v3273 = vld [vmem:[%s4 + $0x98] sm:$0xff]
  %v3274 = vld [vmem:[%s4 + $0xa0] sm:$0xff]
  %v3275 = vld [vmem:[%s4 + $0xa8] sm:$0xff]
  %v3276 = vld [vmem:[%s4 + $0xb0] sm:$0xff]
  %v3277 = vld [vmem:[%s4 + $0xb8] sm:$0xff]
  %v3278 = vld [vmem:[%s4 + $0xc0] sm:$0xff]
  %v3279 = vld [vmem:[%s4 + $0xc8] sm:$0xff]
  %v3280 = vld [vmem:[%s4 + $0xd0] sm:$0xff]
  %v3281 = vld [vmem:[%s4 + $0xd8] sm:$0xff]
  %v3282 = vld [vmem:[%s4 + $0xe0] sm:$0xff]
  %v3283 = vld [vmem:[%s4 + $0xe8] sm:$0xff]
  %v3284 = vld [vmem:[%s4 + $0xf0] sm:$0xff]
  %v3285 = vld [vmem:[%s4 + $0xf8] sm:$0xff]
  %v3286 = vld [vmem:[%s4 + $0x100] sm:$0xff]
  %v3287 = vld [vmem:[%s4 + $0x108] sm:$0xff]
  %v3288 = vld [vmem:[%s4 + $0x110] sm:$0xff]
  %v3289 = vld [vmem:[%s4 + $0x118] sm:$0xff]
  %v3290 = vld [vmem:[%s4 + $0x120] sm:$0xff]
  %v3291 = vld [vmem:[%s4 + $0x128] sm:$0xff]
  %v3292 = vld [vmem:[%s4 + $0x130] sm:$0xff]
  %v3293 = vld [vmem:[%s4 + $0x138] sm:$0xff]
  %v3294 = vld [vmem:[%s4 + $0x140] sm:$0xff]
  %v3295 = vld [vmem:[%s4 + $0x148] sm:$0xff]
  %v3296 = vld [vmem:[%s4 + $0x150] sm:$0xff]
  %v3297 = vld [vmem:[%s4 + $0x158] sm:$0xff]
  %v3298 = vld [vmem:[%s4 + $0x160] sm:$0xff]
  %v3299 = vld [vmem:[%s4 + $0x168] sm:$0xff]
  %v3300 = vld [vmem:[%s4 + $0x170] sm:$0xff]
  %v3301 = vld [vmem:[%s4 + $0x178] sm:$0xff]
  %v3302 = vld [vmem:[%s4 + $0x180] sm:$0xff]
  %v3303 = vld [vmem:[%s4 + $0x188] sm:$0xff]
  %v3304 = vld [vmem:[%s4 + $0x190] sm:$0xff]
  %v3305 = vld [vmem:[%s4 + $0x198] sm:$0xff]
  %v3306 = vld [vmem:[%s4 + $0x1a0] sm:$0xff]
  %v3307 = vld [vmem:[%s4 + $0x1a8] sm:$0xff]
  %v3308 = vld [vmem:[%s4 + $0x1b0] sm:$0xff]
  %v3309 = vld [vmem:[%s4 + $0x1b8] sm:$0xff]
  %v3310 = vld [vmem:[%s4 + $0x1c0] sm:$0xff]
  %v3311 = vld [vmem:[%s4 + $0x1c8] sm:$0xff]
  %v3312 = vld [vmem:[%s4 + $0x1d0] sm:$0xff]
  %v3313 = vld [vmem:[%s4 + $0x1d8] sm:$0xff]
  %v3314 = vld [vmem:[%s4 + $0x1e0] sm:$0xff]
  %v3315 = vld [vmem:[%s4 + $0x1e8] sm:$0xff]
  %v3316 = vld [vmem:[%s4 + $0x1f0] sm:$0xff]
  %v3317 = vld [vmem:[%s4 + $0x1f8] sm:$0xff]
  %v3319 = vlaneseq
  %v3320 = vshrl.u32 %v3319, 7
  %v3321 = vsub.s32 0, %v3320
  %v3322 = vrot.slane %v38, %v3321
  %v3323 = vlaneseq
  %v3324 = vshrl.u32 %v3323, 7
  %v3325 = vsub.s32 1, %v3324
  %v3326 = vrot.slane %v38, %v3325
  %v3393 = vunpack.c.l.b16 %v3254
  %v3394 = vunpack.c.h.b16 %v3254
  %v3395 = vunpack.c.l.b16 %v3255
  %v3396 = vunpack.c.h.b16 %v3255
  %v3397 = vunpack.c.l.b16 %v3256
  %v3398 = vunpack.c.h.b16 %v3256
  %v3399 = vunpack.c.l.b16 %v3257
  %v3400 = vunpack.c.h.b16 %v3257
  %v3401 = vunpack.c.l.b16 %v3258
  %v3402 = vunpack.c.h.b16 %v3258
  %v3403 = vunpack.c.l.b16 %v3259
  %v3404 = vunpack.c.h.b16 %v3259
  %v3405 = vunpack.c.l.b16 %v3260
  %v3406 = vunpack.c.h.b16 %v3260
  %v3407 = vunpack.c.l.b16 %v3261
  %v3408 = vunpack.c.h.b16 %v3261
  %v3409 = vunpack.c.l.b16 %v3262
  %v3410 = vunpack.c.h.b16 %v3262
  %v3411 = vunpack.c.l.b16 %v3263
  %v3412 = vunpack.c.h.b16 %v3263
  %v3413 = vunpack.c.l.b16 %v3264
  %v3414 = vunpack.c.h.b16 %v3264
  %v3415 = vunpack.c.l.b16 %v3265
  %v3416 = vunpack.c.h.b16 %v3265
  %v3417 = vunpack.c.l.b16 %v3266
  %v3418 = vunpack.c.h.b16 %v3266
  %v3419 = vunpack.c.l.b16 %v3267
  %v3420 = vunpack.c.h.b16 %v3267
  %v3421 = vunpack.c.l.b16 %v3268
  %v3422 = vunpack.c.h.b16 %v3268
  %v3423 = vunpack.c.l.b16 %v3269
  %v3424 = vunpack.c.h.b16 %v3269
  %v3425 = vunpack.c.l.b16 %v3270
  %v3426 = vunpack.c.h.b16 %v3270
  %v3427 = vunpack.c.l.b16 %v3271
  %v3428 = vunpack.c.h.b16 %v3271
  %v3429 = vunpack.c.l.b16 %v3272
  %v3430 = vunpack.c.h.b16 %v3272
  %v3431 = vunpack.c.l.b16 %v3273
  %v3432 = vunpack.c.h.b16 %v3273
  %v3433 = vunpack.c.l.b16 %v3274
  %v3434 = vunpack.c.h.b16 %v3274
  %v3435 = vunpack.c.l.b16 %v3275
  %v3436 = vunpack.c.h.b16 %v3275
  %v3437 = vunpack.c.l.b16 %v3276
  %v3438 = vunpack.c.h.b16 %v3276
  %v3439 = vunpack.c.l.b16 %v3277
  %v3440 = vunpack.c.h.b16 %v3277
  %v3441 = vunpack.c.l.b16 %v3278
  %v3442 = vunpack.c.h.b16 %v3278
  %v3443 = vunpack.c.l.b16 %v3279
  %v3444 = vunpack.c.h.b16 %v3279
  %v3445 = vunpack.c.l.b16 %v3280
  %v3446 = vunpack.c.h.b16 %v3280
  %v3447 = vunpack.c.l.b16 %v3281
  %v3448 = vunpack.c.h.b16 %v3281
  %v3449 = vunpack.c.l.b16 %v3282
  %v3450 = vunpack.c.h.b16 %v3282
  %v3451 = vunpack.c.l.b16 %v3283
  %v3452 = vunpack.c.h.b16 %v3283
  %v3453 = vunpack.c.l.b16 %v3284
  %v3454 = vunpack.c.h.b16 %v3284
  %v3455 = vunpack.c.l.b16 %v3285
  %v3456 = vunpack.c.h.b16 %v3285
  %v3457 = vunpack.c.l.b16 %v3286
  %v3458 = vunpack.c.h.b16 %v3286
  %v3459 = vunpack.c.l.b16 %v3287
  %v3460 = vunpack.c.h.b16 %v3287
  %v3461 = vunpack.c.l.b16 %v3288
  %v3462 = vunpack.c.h.b16 %v3288
  %v3463 = vunpack.c.l.b16 %v3289
  %v3464 = vunpack.c.h.b16 %v3289
  %v3465 = vunpack.c.l.b16 %v3290
  %v3466 = vunpack.c.h.b16 %v3290
  %v3467 = vunpack.c.l.b16 %v3291
  %v3468 = vunpack.c.h.b16 %v3291
  %v3469 = vunpack.c.l.b16 %v3292
  %v3470 = vunpack.c.h.b16 %v3292
  %v3471 = vunpack.c.l.b16 %v3293
  %v3472 = vunpack.c.h.b16 %v3293
  %v3473 = vunpack.c.l.b16 %v3294
  %v3474 = vunpack.c.h.b16 %v3294
  %v3475 = vunpack.c.l.b16 %v3295
  %v3476 = vunpack.c.h.b16 %v3295
  %v3477 = vunpack.c.l.b16 %v3296
  %v3478 = vunpack.c.h.b16 %v3296
  %v3479 = vunpack.c.l.b16 %v3297
  %v3480 = vunpack.c.h.b16 %v3297
  %v3481 = vunpack.c.l.b16 %v3298
  %v3482 = vunpack.c.h.b16 %v3298
  %v3483 = vunpack.c.l.b16 %v3299
  %v3484 = vunpack.c.h.b16 %v3299
  %v3485 = vunpack.c.l.b16 %v3300
  %v3486 = vunpack.c.h.b16 %v3300
  %v3487 = vunpack.c.l.b16 %v3301
  %v3488 = vunpack.c.h.b16 %v3301
  %v3489 = vunpack.c.l.b16 %v3302
  %v3490 = vunpack.c.h.b16 %v3302
  %v3491 = vunpack.c.l.b16 %v3303
  %v3492 = vunpack.c.h.b16 %v3303
  %v3493 = vunpack.c.l.b16 %v3304
  %v3494 = vunpack.c.h.b16 %v3304
  %v3495 = vunpack.c.l.b16 %v3305
  %v3496 = vunpack.c.h.b16 %v3305
  %v3497 = vunpack.c.l.b16 %v3306
  %v3498 = vunpack.c.h.b16 %v3306
  %v3499 = vunpack.c.l.b16 %v3307
  %v3500 = vunpack.c.h.b16 %v3307
  %v3501 = vunpack.c.l.b16 %v3308
  %v3502 = vunpack.c.h.b16 %v3308
  %v3503 = vunpack.c.l.b16 %v3309
  %v3504 = vunpack.c.h.b16 %v3309
  %v3505 = vunpack.c.l.b16 %v3310
  %v3506 = vunpack.c.h.b16 %v3310
  %v3507 = vunpack.c.l.b16 %v3311
  %v3508 = vunpack.c.h.b16 %v3311
  %v3509 = vunpack.c.l.b16 %v3312
  %v3510 = vunpack.c.h.b16 %v3312
  %v3511 = vunpack.c.l.b16 %v3313
  %v3512 = vunpack.c.h.b16 %v3313
  %v3513 = vunpack.c.l.b16 %v3314
  %v3514 = vunpack.c.h.b16 %v3314
  %v3515 = vunpack.c.l.b16 %v3315
  %v3516 = vunpack.c.h.b16 %v3315
  %v3517 = vunpack.c.l.b16 %v3316
  %v3518 = vunpack.c.h.b16 %v3316
  %v3519 = vunpack.c.l.b16 %v3317
  %v3520 = vunpack.c.h.b16 %v3317
  %v3521 = vpack.c.b16 %v3395, %v3393
  %v3522 = vpack.c.b16 %v3396, %v3394
  %v3523 = vpack.c.b16 %v3399, %v3397
  %v3524 = vpack.c.b16 %v3400, %v3398
  %v3525 = vpack.c.b16 %v3403, %v3401
  %v3526 = vpack.c.b16 %v3404, %v3402
  %v3527 = vpack.c.b16 %v3407, %v3405
  %v3528 = vpack.c.b16 %v3408, %v3406
  %v3529 = vpack.c.b16 %v3411, %v3409
  %v3530 = vpack.c.b16 %v3412, %v3410
  %v3531 = vpack.c.b16 %v3415, %v3413
  %v3532 = vpack.c.b16 %v3416, %v3414
  %v3533 = vpack.c.b16 %v3419, %v3417
  %v3534 = vpack.c.b16 %v3420, %v3418
  %v3535 = vpack.c.b16 %v3423, %v3421
  %v3536 = vpack.c.b16 %v3424, %v3422
  %v3537 = vpack.c.b16 %v3427, %v3425
  %v3538 = vpack.c.b16 %v3428, %v3426
  %v3539 = vpack.c.b16 %v3431, %v3429
  %v3540 = vpack.c.b16 %v3432, %v3430
  %v3541 = vpack.c.b16 %v3435, %v3433
  %v3542 = vpack.c.b16 %v3436, %v3434
  %v3543 = vpack.c.b16 %v3439, %v3437
  %v3544 = vpack.c.b16 %v3440, %v3438
  %v3545 = vpack.c.b16 %v3443, %v3441
  %v3546 = vpack.c.b16 %v3444, %v3442
  %v3547 = vpack.c.b16 %v3447, %v3445
  %v3548 = vpack.c.b16 %v3448, %v3446
  %v3549 = vpack.c.b16 %v3451, %v3449
  %v3550 = vpack.c.b16 %v3452, %v3450
  %v3551 = vpack.c.b16 %v3455, %v3453
  %v3552 = vpack.c.b16 %v3456, %v3454
  %v3553 = vpack.c.b16 %v3459, %v3457
  %v3554 = vpack.c.b16 %v3460, %v3458
  %v3555 = vpack.c.b16 %v3463, %v3461
  %v3556 = vpack.c.b16 %v3464, %v3462
  %v3557 = vpack.c.b16 %v3467, %v3465
  %v3558 = vpack.c.b16 %v3468, %v3466
  %v3559 = vpack.c.b16 %v3471, %v3469
  %v3560 = vpack.c.b16 %v3472, %v3470
  %v3561 = vpack.c.b16 %v3475, %v3473
  %v3562 = vpack.c.b16 %v3476, %v3474
  %v3563 = vpack.c.b16 %v3479, %v3477
  %v3564 = vpack.c.b16 %v3480, %v3478
  %v3565 = vpack.c.b16 %v3483, %v3481
  %v3566 = vpack.c.b16 %v3484, %v3482
  %v3567 = vpack.c.b16 %v3487, %v3485
  %v3568 = vpack.c.b16 %v3488, %v3486
  %v3569 = vpack.c.b16 %v3491, %v3489
  %v3570 = vpack.c.b16 %v3492, %v3490
  %v3571 = vpack.c.b16 %v3495, %v3493
  %v3572 = vpack.c.b16 %v3496, %v3494
  %v3573 = vpack.c.b16 %v3499, %v3497
  %v3574 = vpack.c.b16 %v3500, %v3498
  %v3575 = vpack.c.b16 %v3503, %v3501
  %v3576 = vpack.c.b16 %v3504, %v3502
  %v3577 = vpack.c.b16 %v3507, %v3505
  %v3578 = vpack.c.b16 %v3508, %v3506
  %v3579 = vpack.c.b16 %v3511, %v3509
  %v3580 = vpack.c.b16 %v3512, %v3510
  %v3581 = vpack.c.b16 %v3515, %v3513
  %v3582 = vpack.c.b16 %v3516, %v3514
  %v3583 = vpack.c.b16 %v3519, %v3517
  %v3584 = vpack.c.b16 %v3520, %v3518
  %3649 = vmatprep.subr.bf16.mxu0 %v3536
  %3650 = vmatpush1.bf16.msra.mxu0 %v3535
  %3651 = vmatprep.subr.bf16.mxu0 %v3534
  %3652 = vmatpush1.bf16.msra.mxu0 %v3533
  %3653 = vmatprep.subr.bf16.mxu0 %v3532
  %3654 = vmatpush1.bf16.msra.mxu0 %v3531
  %3655 = vmatprep.subr.bf16.mxu0 %v3530
  %3656 = vmatpush1.bf16.msra.mxu0 %v3529
  %3657 = vmatprep.subr.bf16.mxu0 %v3528
  %3658 = vmatpush1.bf16.msra.mxu0 %v3527
  %3659 = vmatprep.subr.bf16.mxu0 %v3526
  %3660 = vmatpush1.bf16.msra.mxu0 %v3525
  %3661 = vmatprep.subr.bf16.mxu0 %v3524
  %3662 = vmatpush1.bf16.msra.mxu0 %v3523
  %3663 = vmatprep.subr.bf16.mxu0 %v3522
  %3664 = vmatpush1.bf16.msra.mxu0 %v3521
  %3665 = vmatprep.subr.bf16.mxu0 %v3552
  %3666 = vmatpush2.bf16.msra.mxu0 %v3551
  %3667 = vmatprep.subr.bf16.mxu0 %v3550
  %3668 = vmatpush2.bf16.msra.mxu0 %v3549
  %3669 = vmatprep.subr.bf16.mxu0 %v3548
  %3670 = vmatpush2.bf16.msra.mxu0 %v3547
  %3671 = vmatprep.subr.bf16.mxu0 %v3546
  %3672 = vmatpush2.bf16.msra.mxu0 %v3545
  %3673 = vmatprep.subr.bf16.mxu0 %v3544
  %3674 = vmatpush2.bf16.msra.mxu0 %v3543
  %3675 = vmatprep.subr.bf16.mxu0 %v3542
  %3676 = vmatpush2.bf16.msra.mxu0 %v3541
  %3677 = vmatprep.subr.bf16.mxu0 %v3540
  %3678 = vmatpush2.bf16.msra.mxu0 %v3539
  %3679 = vmatprep.subr.bf16.mxu0 %v3538
  %3680 = vmatpush2.bf16.msra.mxu0 %v3537
  %3681 = vmatprep.mubr.bf16.mxu0 %v3243
  %3682 = vmatmul.mubr.bf16.gmra.mxu0 %v3242
  %v3683 = vpop.f32.mrf.mxu0
  %v3684 = vadd.f32 %v3322, %v3683
  %v3685 = vpop.f32.mrf.mxu0
  %v3686 = vadd.f32 %v3326, %v3685
  %v3687 = vpop.f32.mrf.mxu0
  %v3688 = vadd.f32 %v3322, %v3687
  %v3689 = vpop.f32.mrf.mxu0
  %v3690 = vadd.f32 %v3326, %v3689
  %3691 = vmatprep.mubr.bf16.mxu0 %v3247
  %3692 = vmatmul.mubr.bf16.gmra.mxu0 %v3246
  %v3693 = vpop.f32.mrf.mxu0
  %v3694 = vadd.f32 %v3322, %v3693
  %v3695 = vpop.f32.mrf.mxu0
  %v3696 = vadd.f32 %v3326, %v3695
  %v3697 = vpop.f32.mrf.mxu0
  %v3698 = vadd.f32 %v3322, %v3697
  %v3699 = vpop.f32.mrf.mxu0
  %v3700 = vadd.f32 %v3326, %v3699
  %3701 = vmatprep.mubr.bf16.mxu0 %v3251
  %3702 = vmatmul.mubr.bf16.gmra.mxu0 %v3250
  %v3703 = vpop.f32.mrf.mxu0
  %v3704 = vadd.f32 %v3322, %v3703
  %v3705 = vpop.f32.mrf.mxu0
  %v3706 = vadd.f32 %v3326, %v3705
  %v3707 = vpop.f32.mrf.mxu0
  %v3708 = vadd.f32 %v3322, %v3707
  %v3709 = vpop.f32.mrf.mxu0
  %v3710 = vadd.f32 %v3326, %v3709
  %3711 = vdwg.mxu0
  %3712 = vmatprep.subr.bf16.mxu0 %v3568
  %3713 = vmatpush1.bf16.msra.mxu0 %v3567
  %3714 = vmatprep.subr.bf16.mxu0 %v3566
  %3715 = vmatpush1.bf16.msra.mxu0 %v3565
  %3716 = vmatprep.subr.bf16.mxu0 %v3564
  %3717 = vmatpush1.bf16.msra.mxu0 %v3563
  %3718 = vmatprep.subr.bf16.mxu0 %v3562
  %3719 = vmatpush1.bf16.msra.mxu0 %v3561
  %3720 = vmatprep.subr.bf16.mxu0 %v3560
  %3721 = vmatpush1.bf16.msra.mxu0 %v3559
  %3722 = vmatprep.subr.bf16.mxu0 %v3558
  %3723 = vmatpush1.bf16.msra.mxu0 %v3557
  %3724 = vmatprep.subr.bf16.mxu0 %v3556
  %3725 = vmatpush1.bf16.msra.mxu0 %v3555
  %3726 = vmatprep.subr.bf16.mxu0 %v3554
  %3727 = vmatpush1.bf16.msra.mxu0 %v3553
  %3728 = vmatprep.subr.bf16.mxu0 %v3584
  %3729 = vmatpush2.bf16.msra.mxu0 %v3583
  %3730 = vmatprep.subr.bf16.mxu0 %v3582
  %3731 = vmatpush2.bf16.msra.mxu0 %v3581
  %3732 = vmatprep.subr.bf16.mxu0 %v3580
  %3733 = vmatpush2.bf16.msra.mxu0 %v3579
  %3734 = vmatprep.subr.bf16.mxu0 %v3578
  %3735 = vmatpush2.bf16.msra.mxu0 %v3577
  %3736 = vmatprep.subr.bf16.mxu0 %v3576
  %3737 = vmatpush2.bf16.msra.mxu0 %v3575
  %3738 = vmatprep.subr.bf16.mxu0 %v3574
  %3739 = vmatpush2.bf16.msra.mxu0 %v3573
  %3740 = vmatprep.subr.bf16.mxu0 %v3572
  %3741 = vmatpush2.bf16.msra.mxu0 %v3571
  %3742 = vmatprep.subr.bf16.mxu0 %v3570
  %3743 = vmatpush2.bf16.msra.mxu0 %v3569
  %3744 = vmatprep.mubr.bf16.mxu0 %v3245
  %3745 = vmatmul.mubr.bf16.gmra.mxu0 %v3244
  %v3746 = vpop.f32.mrf.mxu0
  %v3747 = vadd.f32 %v3684, %v3746
  %v3748 = vpop.f32.mrf.mxu0
  %v3749 = vadd.f32 %v3686, %v3748
  %v3750 = vpop.f32.mrf.mxu0
  %v3751 = vadd.f32 %v3688, %v3750
  %v3752 = vpop.f32.mrf.mxu0
  %v3753 = vadd.f32 %v3690, %v3752
  %3754 = vmatprep.mubr.bf16.mxu0 %v3249
  %3755 = vmatmul.mubr.bf16.gmra.mxu0 %v3248
  %v3756 = vpop.f32.mrf.mxu0
  %v3757 = vadd.f32 %v3694, %v3756
  %v3758 = vpop.f32.mrf.mxu0
  %v3759 = vadd.f32 %v3696, %v3758
  %v3760 = vpop.f32.mrf.mxu0
  %v3761 = vadd.f32 %v3698, %v3760
  %v3762 = vpop.f32.mrf.mxu0
  %v3763 = vadd.f32 %v3700, %v3762
  %3764 = vmatprep.mubr.bf16.mxu0 %v3253
  %3765 = vmatmul.mubr.bf16.gmra.mxu0 %v3252
  %v3766 = vpop.f32.mrf.mxu0
  %v3767 = vadd.f32 %v3704, %v3766
  %v3768 = vpop.f32.mrf.mxu0
  %v3769 = vadd.f32 %v3706, %v3768
  %v3770 = vpop.f32.mrf.mxu0
  %v3771 = vadd.f32 %v3708, %v3770
  %v3772 = vpop.f32.mrf.mxu0
  %v3773 = vadd.f32 %v3710, %v3772
  %3774 = vdwg.mxu0
  %v3775 = vmax.f32 %v3747, 0.0
  %v3776 = vmax.f32 %v3749, 0.0
  %v3777 = vmax.f32 %v3751, 0.0
  %v3778 = vmax.f32 %v3753, 0.0
  %v3779 = vmax.f32 %v3757, 0.0
  %v3780 = vmax.f32 %v3759, 0.0
  %v3781 = vmax.f32 %v3761, 0.0
  %v3782 = vmax.f32 %v3763, 0.0
  %v3783 = vmax.f32 %v3767, 0.0
  %v3784 = vmax.f32 %v3769, 0.0
  %v3785 = vmax.f32 %v3771, 0.0
  %v3786 = vmax.f32 %v3773, 0.0
  %v3787 = vpack.c.bf16 %v3777, %v3775
  %v3788 = vpack.c.bf16 %v3778, %v3776
  %v3789 = vpack.c.bf16 %v3781, %v3779
  %v3790 = vpack.c.bf16 %v3782, %v3780
  %v3791 = vpack.c.bf16 %v3785, %v3783
  %v3792 = vpack.c.bf16 %v3786, %v3784
  %v3793 = vld [vmem:[%s5] sm:$0xf]
  %v3794 = vld [vmem:[%s5 + $0x4] sm:$0xf]
  %v3795 = vld [vmem:[%s5 + $0x8] sm:$0xf]
  %v3796 = vld [vmem:[%s5 + $0xc] sm:$0xf]
  %v3797 = vld [vmem:[%s5 + $0x10] sm:$0xf]
  %v3798 = vld [vmem:[%s5 + $0x14] sm:$0xf]
  %v3799 = vld [vmem:[%s5 + $0x18] sm:$0xf]
  %v3800 = vld [vmem:[%s5 + $0x1c] sm:$0xf]
  %v3801 = vld [vmem:[%s5 + $0x20] sm:$0xf]
  %v3802 = vld [vmem:[%s5 + $0x24] sm:$0xf]
  %v3803 = vld [vmem:[%s5 + $0x28] sm:$0xf]
  %v3804 = vld [vmem:[%s5 + $0x2c] sm:$0xf]
  %v3805 = vld [vmem:[%s5 + $0x30] sm:$0xf]
  %v3806 = vld [vmem:[%s5 + $0x34] sm:$0xf]
  %v3807 = vld [vmem:[%s5 + $0x38] sm:$0xf]
  %v3808 = vld [vmem:[%s5 + $0x3c] sm:$0xf]
  %v3809 = vld [vmem:[%s5 + $0x40] sm:$0xf]
  %v3810 = vld [vmem:[%s5 + $0x44] sm:$0xf]
  %v3811 = vld [vmem:[%s5 + $0x48] sm:$0xf]
  %v3812 = vld [vmem:[%s5 + $0x4c] sm:$0xf]
  %v3813 = vld [vmem:[%s5 + $0x50] sm:$0xf]
  %v3814 = vld [vmem:[%s5 + $0x54] sm:$0xf]
  %v3815 = vld [vmem:[%s5 + $0x58] sm:$0xf]
  %v3816 = vld [vmem:[%s5 + $0x5c] sm:$0xf]
  %v3817 = vld [vmem:[%s5 + $0x60] sm:$0xf]
  %v3818 = vld [vmem:[%s5 + $0x64] sm:$0xf]
  %v3819 = vld [vmem:[%s5 + $0x68] sm:$0xf]
  %v3820 = vld [vmem:[%s5 + $0x6c] sm:$0xf]
  %v3821 = vld [vmem:[%s5 + $0x70] sm:$0xf]
  %v3822 = vld [vmem:[%s5 + $0x74] sm:$0xf]
  %v3823 = vld [vmem:[%s5 + $0x78] sm:$0xf]
  %v3824 = vld [vmem:[%s5 + $0x7c] sm:$0xf]
  %v3857 = vunpack.c.l.b16 %v3793
  %v3858 = vunpack.c.l.b16 %v3794
  %v3859 = vunpack.c.l.b16 %v3795
  %v3860 = vunpack.c.l.b16 %v3796
  %v3861 = vunpack.c.l.b16 %v3797
  %v3862 = vunpack.c.l.b16 %v3798
  %v3863 = vunpack.c.l.b16 %v3799
  %v3864 = vunpack.c.l.b16 %v3800
  %v3865 = vunpack.c.l.b16 %v3801
  %v3866 = vunpack.c.l.b16 %v3802
  %v3867 = vunpack.c.l.b16 %v3803
  %v3868 = vunpack.c.l.b16 %v3804
  %v3869 = vunpack.c.l.b16 %v3805
  %v3870 = vunpack.c.l.b16 %v3806
  %v3871 = vunpack.c.l.b16 %v3807
  %v3872 = vunpack.c.l.b16 %v3808
  %v3873 = vunpack.c.l.b16 %v3809
  %v3874 = vunpack.c.l.b16 %v3810
  %v3875 = vunpack.c.l.b16 %v3811
  %v3876 = vunpack.c.l.b16 %v3812
  %v3877 = vunpack.c.l.b16 %v3813
  %v3878 = vunpack.c.l.b16 %v3814
  %v3879 = vunpack.c.l.b16 %v3815
  %v3880 = vunpack.c.l.b16 %v3816
  %v3881 = vunpack.c.l.b16 %v3817
  %v3882 = vunpack.c.l.b16 %v3818
  %v3883 = vunpack.c.l.b16 %v3819
  %v3884 = vunpack.c.l.b16 %v3820
  %v3885 = vunpack.c.l.b16 %v3821
  %v3886 = vunpack.c.l.b16 %v3822
  %v3887 = vunpack.c.l.b16 %v3823
  %v3888 = vunpack.c.l.b16 %v3824
  %v3889 = vpack.c.b16 %v3858, %v3857
  %v3890 = vpack.c.b16 %v3860, %v3859
  %v3891 = vpack.c.b16 %v3862, %v3861
  %v3892 = vpack.c.b16 %v3864, %v3863
  %v3893 = vpack.c.b16 %v3866, %v3865
  %v3894 = vpack.c.b16 %v3868, %v3867
  %v3895 = vpack.c.b16 %v3870, %v3869
  %v3896 = vpack.c.b16 %v3872, %v3871
  %v3897 = vpack.c.b16 %v3874, %v3873
  %v3898 = vpack.c.b16 %v3876, %v3875
  %v3899 = vpack.c.b16 %v3878, %v3877
  %v3900 = vpack.c.b16 %v3880, %v3879
  %v3901 = vpack.c.b16 %v3882, %v3881
  %v3902 = vpack.c.b16 %v3884, %v3883
  %v3903 = vpack.c.b16 %v3886, %v3885
  %v3904 = vpack.c.b16 %v3888, %v3887
  %3921 = vmatprep.subr.bf16.mxu0 0
  %3922 = vmatpush1.bf16.msra.mxu0 %v3896
  %3923 = vmatprep.subr.bf16.mxu0 0
  %3924 = vmatpush1.bf16.msra.mxu0 %v3895
  %3925 = vmatprep.subr.bf16.mxu0 0
  %3926 = vmatpush1.bf16.msra.mxu0 %v3894
  %3927 = vmatprep.subr.bf16.mxu0 0
  %3928 = vmatpush1.bf16.msra.mxu0 %v3893
  %3929 = vmatprep.subr.bf16.mxu0 0
  %3930 = vmatpush1.bf16.msra.mxu0 %v3892
  %3931 = vmatprep.subr.bf16.mxu0 0
  %3932 = vmatpush1.bf16.msra.mxu0 %v3891
  %3933 = vmatprep.subr.bf16.mxu0 0
  %3934 = vmatpush1.bf16.msra.mxu0 %v3890
  %3935 = vmatprep.subr.bf16.mxu0 0
  %3936 = vmatpush1.bf16.msra.mxu0 %v3889
  %3937 = vmatprep.subr.bf16.mxu0 0
  %3938 = vmatpush2.bf16.msra.mxu0 %v3904
  %3939 = vmatprep.subr.bf16.mxu0 0
  %3940 = vmatpush2.bf16.msra.mxu0 %v3903
  %3941 = vmatprep.subr.bf16.mxu0 0
  %3942 = vmatpush2.bf16.msra.mxu0 %v3902
  %3943 = vmatprep.subr.bf16.mxu0 0
  %3944 = vmatpush2.bf16.msra.mxu0 %v3901
  %3945 = vmatprep.subr.bf16.mxu0 0
  %3946 = vmatpush2.bf16.msra.mxu0 %v3900
  %3947 = vmatprep.subr.bf16.mxu0 0
  %3948 = vmatpush2.bf16.msra.mxu0 %v3899
  %3949 = vmatprep.subr.bf16.mxu0 0
  %3950 = vmatpush2.bf16.msra.mxu0 %v3898
  %3951 = vmatprep.subr.bf16.mxu0 0
  %3952 = vmatpush2.bf16.msra.mxu0 %v3897
  %3953 = vmatprep.mubr.bf16.mxu0 %v3788
  %3954 = vmatmul.mubr.bf16.gmra.mxu0 %v3787
  %v3955 = vpop.f32.mrf.mxu0
  %v3956 = vadd.f32 %v39, %v3955
  %v3957 = vpop.f32.mrf.mxu0
  %v3958 = vpop.f32.mrf.mxu0
  %v3959 = vadd.f32 %v39, %v3958
  %v3960 = vpop.f32.mrf.mxu0
  %3961 = vmatprep.mubr.bf16.mxu0 %v3790
  %3962 = vmatmul.mubr.bf16.gmra.mxu0 %v3789
  %v3963 = vpop.f32.mrf.mxu0
  %v3964 = vadd.f32 %v39, %v3963
  %v3965 = vpop.f32.mrf.mxu0
  %v3966 = vpop.f32.mrf.mxu0
  %v3967 = vadd.f32 %v39, %v3966
  %v3968 = vpop.f32.mrf.mxu0
  %3969 = vmatprep.mubr.bf16.mxu0 %v3792
  %3970 = vmatmul.mubr.bf16.gmra.mxu0 %v3791
  %v3971 = vpop.f32.mrf.mxu0
  %v3972 = vadd.f32 %v39, %v3971
  %v3973 = vpop.f32.mrf.mxu0
  %v3974 = vpop.f32.mrf.mxu0
  %v3975 = vadd.f32 %v39, %v3974
  %v3976 = vpop.f32.mrf.mxu0
  %3977 = vdwg.mxu0
  %v3978 = vmax.f32 %v3956, 0.0
  %v3979 = vmax.f32 %v3959, 0.0
  %v3980 = vmax.f32 %v3964, 0.0
  %v3981 = vmax.f32 %v3967, 0.0
  %v3982 = vmax.f32 %v3972, 0.0
  %v3983 = vmax.f32 %v3975, 0.0
  %v3985 = vrot.slane %v43, 3
  %vm3986 = vcmask 392192
  %v3987 = vsel %vm3986, %v3985, 0
  %3989 = vmatprep.subr.mxu0 0.0
  %3990 = vmatpush1.msra.mxu0 0.0
  %3991 = vmatprep.subr.mxu0 0.0
  %3992 = vmatpush1.msra.mxu0 0.0
  %3993 = vmatprep.subr.mxu0 0.0
  %3994 = vmatpush1.msra.mxu0 0.0
  %3995 = vmatprep.subr.mxu0 0.0
  %3996 = vmatpush1.msra.mxu0 0.0
  %3997 = vmatprep.subr.mxu0 0.0
  %3998 = vmatpush1.msra.mxu0 0.0
  %3999 = vmatprep.subr.mxu0 0.0
  %4000 = vmatpush1.msra.mxu0 0.0
  %4001 = vmatprep.subr.mxu0 0.0
  %4002 = vmatpush1.msra.mxu0 0.0
  %4003 = vmatprep.subr.mxu0 0.0
  %4004 = vmatpush1.msra.mxu0 0.0
  %4005 = vmatprep.subr.mxu0 0.0
  %4006 = vmatpush1.msra.mxu0 0.0
  %4007 = vmatprep.subr.mxu0 0.0
  %4008 = vmatpush1.msra.mxu0 0.0
  %4009 = vmatprep.subr.mxu0 0.0
  %4010 = vmatpush1.msra.mxu0 %v3983
  %4011 = vmatprep.subr.mxu0 0.0
  %4012 = vmatpush1.msra.mxu0 %v3982
  %4013 = vmatprep.subr.mxu0 0.0
  %4014 = vmatpush1.msra.mxu0 %v3981
  %4015 = vmatprep.subr.mxu0 0.0
  %4016 = vmatpush1.msra.mxu0 %v3980
  %4017 = vmatprep.subr.mxu0 0.0
  %4018 = vmatpush1.msra.mxu0 %v3979
  %4019 = vmatprep.subr.mxu0 0.0
  %4020 = vmatpush1.msra.mxu0 %v3978
  %4021 = vmatprep.subr.mxu0 0.0
  %4022 = vmatpush2.msra.mxu0 0.0
  %4023 = vmatprep.subr.mxu0 0.0
  %4024 = vmatpush2.msra.mxu0 0.0
  %4025 = vmatprep.subr.mxu0 0.0
  %4026 = vmatpush2.msra.mxu0 0.0
  %4027 = vmatprep.subr.mxu0 0.0
  %4028 = vmatpush2.msra.mxu0 0.0
  %4029 = vmatprep.subr.mxu0 0.0
  %4030 = vmatpush2.msra.mxu0 0.0
  %4031 = vmatprep.subr.mxu0 0.0
  %4032 = vmatpush2.msra.mxu0 0.0
  %4033 = vmatprep.subr.mxu0 0.0
  %4034 = vmatpush2.msra.mxu0 0.0
  %4035 = vmatprep.subr.mxu0 0.0
  %4036 = vmatpush2.msra.mxu0 0.0
  %4037 = vmatprep.subr.mxu0 0.0
  %4038 = vmatpush2.msra.mxu0 0.0
  %4039 = vmatprep.subr.mxu0 0.0
  %4040 = vmatpush2.msra.mxu0 0.0
  %4041 = vmatprep.subr.mxu0 0.0
  %4042 = vmatpush2.msra.mxu0 0.0
  %4043 = vmatprep.subr.mxu0 0.0
  %4044 = vmatpush2.msra.mxu0 0.0
  %4045 = vmatprep.subr.mxu0 0.0
  %4046 = vmatpush2.msra.mxu0 0.0
  %4047 = vmatprep.subr.mxu0 0.0
  %4048 = vmatpush2.msra.mxu0 0.0
  %4049 = vmatprep.subr.mxu0 0.0
  %4050 = vmatpush2.msra.mxu0 0.0
  %4051 = vmatprep.subr.mxu0 0.0
  %4052 = vmatpush2.msra.mxu0 0.0
  %4053 = vmatprep.mubr.f32.mxu0 0.0
  %4054 = vmatmul.mubr.f32.gmra.mxu0 %v3987
  %v4055 = vpop.f32.mrf.mxu0
  %v4056 = vadd.f32 0.0, %v4055
  %v4057 = vpop.f32.mrf.mxu0
  %4058 = vdwg.mxu0
  %v4059 = vld [vmem:[%s1] sm:$0xff]
  %v4060 = vld [vmem:[%s1 + $0x8] sm:$0xff]
  %v4061 = vld [vmem:[%s1 + $0x10] sm:$0xff]
  %v4062 = vld [vmem:[%s1 + $0x18] sm:$0xff]
  %v4063 = vld [vmem:[%s1 + $0x20] sm:$0xff]
  %v4064 = vld [vmem:[%s1 + $0x28] sm:$0xff]
  %v4066 = vrot.slane %v44, 5
  %v4067 = vsel %vm3986, %v4066, 0
  %4069 = vmatprep.subr.mxu0 0.0
  %4070 = vmatpush1.msra.mxu0 0.0
  %4071 = vmatprep.subr.mxu0 0.0
  %4072 = vmatpush1.msra.mxu0 0.0
  %4073 = vmatprep.subr.mxu0 0.0
  %4074 = vmatpush1.msra.mxu0 0.0
  %4075 = vmatprep.subr.mxu0 0.0
  %4076 = vmatpush1.msra.mxu0 0.0
  %4077 = vmatprep.subr.mxu0 0.0
  %4078 = vmatpush1.msra.mxu0 0.0
  %4079 = vmatprep.subr.mxu0 0.0
  %4080 = vmatpush1.msra.mxu0 0.0
  %4081 = vmatprep.subr.mxu0 0.0
  %4082 = vmatpush1.msra.mxu0 0.0
  %4083 = vmatprep.subr.mxu0 0.0
  %4084 = vmatpush1.msra.mxu0 0.0
  %4085 = vmatprep.subr.mxu0 0.0
  %4086 = vmatpush1.msra.mxu0 0.0
  %4087 = vmatprep.subr.mxu0 0.0
  %4088 = vmatpush1.msra.mxu0 0.0
  %4089 = vmatprep.subr.mxu0 0.0
  %4090 = vmatpush1.msra.mxu0 %v4064
  %4091 = vmatprep.subr.mxu0 0.0
  %4092 = vmatpush1.msra.mxu0 %v4063
  %4093 = vmatprep.subr.mxu0 0.0
  %4094 = vmatpush1.msra.mxu0 %v4062
  %4095 = vmatprep.subr.mxu0 0.0
  %4096 = vmatpush1.msra.mxu0 %v4061
  %4097 = vmatprep.subr.mxu0 0.0
  %4098 = vmatpush1.msra.mxu0 %v4060
  %4099 = vmatprep.subr.mxu0 0.0
  %4100 = vmatpush1.msra.mxu0 %v4059
  %4101 = vmatprep.subr.mxu0 0.0
  %4102 = vmatpush2.msra.mxu0 0.0
  %4103 = vmatprep.subr.mxu0 0.0
  %4104 = vmatpush2.msra.mxu0 0.0
  %4105 = vmatprep.subr.mxu0 0.0
  %4106 = vmatpush2.msra.mxu0 0.0
  %4107 = vmatprep.subr.mxu0 0.0
  %4108 = vmatpush2.msra.mxu0 0.0
  %4109 = vmatprep.subr.mxu0 0.0
  %4110 = vmatpush2.msra.mxu0 0.0
  %4111 = vmatprep.subr.mxu0 0.0
  %4112 = vmatpush2.msra.mxu0 0.0
  %4113 = vmatprep.subr.mxu0 0.0
  %4114 = vmatpush2.msra.mxu0 0.0
  %4115 = vmatprep.subr.mxu0 0.0
  %4116 = vmatpush2.msra.mxu0 0.0
  %4117 = vmatprep.subr.mxu0 0.0
  %4118 = vmatpush2.msra.mxu0 0.0
  %4119 = vmatprep.subr.mxu0 0.0
  %4120 = vmatpush2.msra.mxu0 0.0
  %4121 = vmatprep.subr.mxu0 0.0
  %4122 = vmatpush2.msra.mxu0 0.0
  %4123 = vmatprep.subr.mxu0 0.0
  %4124 = vmatpush2.msra.mxu0 0.0
  %4125 = vmatprep.subr.mxu0 0.0
  %4126 = vmatpush2.msra.mxu0 0.0
  %4127 = vmatprep.subr.mxu0 0.0
  %4128 = vmatpush2.msra.mxu0 0.0
  %4129 = vmatprep.subr.mxu0 0.0
  %4130 = vmatpush2.msra.mxu0 0.0
  %4131 = vmatprep.subr.mxu0 0.0
  %4132 = vmatpush2.msra.mxu0 0.0
  %4133 = vmatprep.mubr.f32.mxu0 0.0
  %4134 = vmatmul.mubr.f32.gmra.mxu0 %v4067
  %v4135 = vpop.f32.mrf.mxu0
  %v4136 = vadd.f32 0.0, %v4135
  %v4137 = vpop.f32.mrf.mxu0
  %4138 = vdwg.mxu0
  %v4139 = vpack.c.bf16 %v4056, %v4056
  %v4140 = vpack.c.bf16 %v4136, %v4136
  %v4143 = vunpack.c.l.b16 %v61
  %v4144 = vunpack.c.l.b16 %v62
  %v4145 = vpack.c.b16 %v4144, %v4143
  %vm4147 = vcmask 130048
  %v4149 = vsel %vm4147, %v4140, 0
  %4151 = vmatprep.subr.bf16.mxu0 0
  %4152 = vmatpush1.bf16.msra.mxu0 0
  %4153 = vmatprep.subr.bf16.mxu0 0
  %4154 = vmatpush1.bf16.msra.mxu0 0
  %4155 = vmatprep.subr.bf16.mxu0 0
  %4156 = vmatpush1.bf16.msra.mxu0 0
  %4157 = vmatprep.subr.bf16.mxu0 0
  %4158 = vmatpush1.bf16.msra.mxu0 0
  %4159 = vmatprep.subr.bf16.mxu0 0
  %4160 = vmatpush1.bf16.msra.mxu0 0
  %4161 = vmatprep.subr.bf16.mxu0 0
  %4162 = vmatpush1.bf16.msra.mxu0 0
  %4163 = vmatprep.subr.bf16.mxu0 0
  %4164 = vmatpush1.bf16.msra.mxu0 0
  %4165 = vmatprep.subr.bf16.mxu0 0
  %4166 = vmatpush1.bf16.msra.mxu0 %v4145
  %4167 = vmatprep.subr.bf16.mxu0 0
  %4168 = vmatpush2.bf16.msra.mxu0 0
  %4169 = vmatprep.subr.bf16.mxu0 0
  %4170 = vmatpush2.bf16.msra.mxu0 0
  %4171 = vmatprep.subr.bf16.mxu0 0
  %4172 = vmatpush2.bf16.msra.mxu0 0
  %4173 = vmatprep.subr.bf16.mxu0 0
  %4174 = vmatpush2.bf16.msra.mxu0 0
  %4175 = vmatprep.subr.bf16.mxu0 0
  %4176 = vmatpush2.bf16.msra.mxu0 0
  %4177 = vmatprep.subr.bf16.mxu0 0
  %4178 = vmatpush2.bf16.msra.mxu0 0
  %4179 = vmatprep.subr.bf16.mxu0 0
  %4180 = vmatpush2.bf16.msra.mxu0 0
  %4181 = vmatprep.subr.bf16.mxu0 0
  %4182 = vmatpush2.bf16.msra.mxu0 0
  %4183 = vmatprep.mubr.bf16.mxu0 0
  %4184 = vmatmul.mubr.bf16.gmra.mxu0 %v4149
  %v4185 = vpop.f32.mrf.mxu0
  %v4186 = vadd.f32 0.0, %v4185
  %v4187 = vpop.f32.mrf.mxu0
  %v4188 = vpop.f32.mrf.mxu0
  %v4189 = vpop.f32.mrf.mxu0
  %4190 = vdwg.mxu0
  %v4207 = vunpack.c.l.b16 %v45
  %v4208 = vunpack.c.l.b16 %v46
  %v4209 = vunpack.c.l.b16 %v47
  %v4210 = vunpack.c.l.b16 %v48
  %v4211 = vunpack.c.l.b16 %v49
  %v4212 = vunpack.c.l.b16 %v50
  %v4213 = vunpack.c.l.b16 %v51
  %v4214 = vunpack.c.l.b16 %v52
  %v4215 = vunpack.c.l.b16 %v53
  %v4216 = vunpack.c.l.b16 %v54
  %v4217 = vunpack.c.l.b16 %v55
  %v4218 = vunpack.c.l.b16 %v56
  %v4219 = vunpack.c.l.b16 %v57
  %v4220 = vunpack.c.l.b16 %v58
  %v4221 = vunpack.c.l.b16 %v59
  %v4222 = vunpack.c.l.b16 %v60
  %v4223 = vpack.c.b16 %v4208, %v4207
  %v4224 = vpack.c.b16 %v4210, %v4209
  %v4225 = vpack.c.b16 %v4212, %v4211
  %v4226 = vpack.c.b16 %v4214, %v4213
  %v4227 = vpack.c.b16 %v4216, %v4215
  %v4228 = vpack.c.b16 %v4218, %v4217
  %v4229 = vpack.c.b16 %v4220, %v4219
  %v4230 = vpack.c.b16 %v4222, %v4221
  %4239 = vmatprep.subr.bf16.mxu0 0
  %4240 = vmatpush1.bf16.msra.mxu0 %v4230
  %4241 = vmatprep.subr.bf16.mxu0 0
  %4242 = vmatpush1.bf16.msra.mxu0 %v4229
  %4243 = vmatprep.subr.bf16.mxu0 0
  %4244 = vmatpush1.bf16.msra.mxu0 %v4228
  %4245 = vmatprep.subr.bf16.mxu0 0
  %4246 = vmatpush1.bf16.msra.mxu0 %v4227
  %4247 = vmatprep.subr.bf16.mxu0 0
  %4248 = vmatpush1.bf16.msra.mxu0 %v4226
  %4249 = vmatprep.subr.bf16.mxu0 0
  %4250 = vmatpush1.bf16.msra.mxu0 %v4225
  %4251 = vmatprep.subr.bf16.mxu0 0
  %4252 = vmatpush1.bf16.msra.mxu0 %v4224
  %4253 = vmatprep.subr.bf16.mxu0 0
  %4254 = vmatpush1.bf16.msra.mxu0 %v4223
  %4255 = vmatprep.subr.bf16.mxu0 0
  %4256 = vmatpush2.bf16.msra.mxu0 0
  %4257 = vmatprep.subr.bf16.mxu0 0
  %4258 = vmatpush2.bf16.msra.mxu0 0
  %4259 = vmatprep.subr.bf16.mxu0 0
  %4260 = vmatpush2.bf16.msra.mxu0 0
  %4261 = vmatprep.subr.bf16.mxu0 0
  %4262 = vmatpush2.bf16.msra.mxu0 0
  %4263 = vmatprep.subr.bf16.mxu0 0
  %4264 = vmatpush2.bf16.msra.mxu0 0
  %4265 = vmatprep.subr.bf16.mxu0 0
  %4266 = vmatpush2.bf16.msra.mxu0 0
  %4267 = vmatprep.subr.bf16.mxu0 0
  %4268 = vmatpush2.bf16.msra.mxu0 0
  %4269 = vmatprep.subr.bf16.mxu0 0
  %4270 = vmatpush2.bf16.msra.mxu0 0
  %4271 = vmatprep.mubr.bf16.mxu0 0
  %4272 = vmatmul.mubr.bf16.gmra.mxu0 %v4139
  %v4273 = vpop.f32.mrf.mxu0
  %v4274 = vadd.f32 %v4186, %v4273
  %v4275 = vpop.f32.mrf.mxu0
  %v4276 = vpop.f32.mrf.mxu0
  %v4277 = vpop.f32.mrf.mxu0
  %4278 = vdwg.mxu0
  %v4279 = vadd.f32 %v4274, %v40
  %v4280 = vmax.f32 %v4279, 0.0
  %v4281 = vpack.c.bf16 %v4280, %v4280
  %v4298 = vunpack.c.l.b16 %v63
  %v4299 = vunpack.c.l.b16 %v64
  %v4300 = vunpack.c.l.b16 %v65
  %v4301 = vunpack.c.l.b16 %v66
  %v4302 = vunpack.c.l.b16 %v67
  %v4303 = vunpack.c.l.b16 %v68
  %v4304 = vunpack.c.l.b16 %v69
  %v4305 = vunpack.c.l.b16 %v70
  %v4306 = vunpack.c.l.b16 %v71
  %v4307 = vunpack.c.l.b16 %v72
  %v4308 = vunpack.c.l.b16 %v73
  %v4309 = vunpack.c.l.b16 %v74
  %v4310 = vunpack.c.l.b16 %v75
  %v4311 = vunpack.c.l.b16 %v76
  %v4312 = vunpack.c.l.b16 %v77
  %v4313 = vunpack.c.l.b16 %v78
  %v4314 = vpack.c.b16 %v4299, %v4298
  %v4315 = vpack.c.b16 %v4301, %v4300
  %v4316 = vpack.c.b16 %v4303, %v4302
  %v4317 = vpack.c.b16 %v4305, %v4304
  %v4318 = vpack.c.b16 %v4307, %v4306
  %v4319 = vpack.c.b16 %v4309, %v4308
  %v4320 = vpack.c.b16 %v4311, %v4310
  %v4321 = vpack.c.b16 %v4313, %v4312
  %4330 = vmatprep.subr.bf16.mxu0 0
  %4331 = vmatpush1.bf16.msra.mxu0 %v4321
  %4332 = vmatprep.subr.bf16.mxu0 0
  %4333 = vmatpush1.bf16.msra.mxu0 %v4320
  %4334 = vmatprep.subr.bf16.mxu0 0
  %4335 = vmatpush1.bf16.msra.mxu0 %v4319
  %4336 = vmatprep.subr.bf16.mxu0 0
  %4337 = vmatpush1.bf16.msra.mxu0 %v4318
  %4338 = vmatprep.subr.bf16.mxu0 0
  %4339 = vmatpush1.bf16.msra.mxu0 %v4317
  %4340 = vmatprep.subr.bf16.mxu0 0
  %4341 = vmatpush1.bf16.msra.mxu0 %v4316
  %4342 = vmatprep.subr.bf16.mxu0 0
  %4343 = vmatpush1.bf16.msra.mxu0 %v4315
  %4344 = vmatprep.subr.bf16.mxu0 0
  %4345 = vmatpush1.bf16.msra.mxu0 %v4314
  %4346 = vmatprep.subr.bf16.mxu0 0
  %4347 = vmatpush2.bf16.msra.mxu0 0
  %4348 = vmatprep.subr.bf16.mxu0 0
  %4349 = vmatpush2.bf16.msra.mxu0 0
  %4350 = vmatprep.subr.bf16.mxu0 0
  %4351 = vmatpush2.bf16.msra.mxu0 0
  %4352 = vmatprep.subr.bf16.mxu0 0
  %4353 = vmatpush2.bf16.msra.mxu0 0
  %4354 = vmatprep.subr.bf16.mxu0 0
  %4355 = vmatpush2.bf16.msra.mxu0 0
  %4356 = vmatprep.subr.bf16.mxu0 0
  %4357 = vmatpush2.bf16.msra.mxu0 0
  %4358 = vmatprep.subr.bf16.mxu0 0
  %4359 = vmatpush2.bf16.msra.mxu0 0
  %4360 = vmatprep.subr.bf16.mxu0 0
  %4361 = vmatpush2.bf16.msra.mxu0 0
  %4362 = vmatprep.mubr.bf16.mxu0 0
  %4363 = vmatmul.mubr.bf16.gmra.mxu0 %v4281
  %v4364 = vpop.f32.mrf.mxu0
  %v4365 = vadd.f32 %v41, %v4364
  %v4366 = vpop.f32.mrf.mxu0
  %v4367 = vpop.f32.mrf.mxu0
  %v4368 = vpop.f32.mrf.mxu0
  %4369 = vdwg.mxu0
  %v4370 = vmax.f32 %v4365, 0.0
  %v4371 = vunpack.c.l.bf16 %v79
  %v4372 = vlaneseq
  %v4373 = vshrl.u32 %v4372, 7
  %v4374 = vsub.s32 0, %v4373
  %v4375 = vrot.slane %v4371, %v4374
  %v4376 = vmul.f32 %v4370, %v4375
  %vm4377 = vcmask 1041408
  %v4378 = vsel %vm4377, %v4376, 0.0
  %4379 = vadd.xlane.f32.xlu0 %v4378
  %v4380 = vpop.xlane.xlu0 %4379
  %v4381 = vadd.f32 %v4380, %v42
  %v4382 = vxor.u32 %v4381, 2147483648
  %v4383 = vmul.f32 %v4382, 1.442695
  %v4384 = vpow.pop %v4383
  %v4385 = vadd.f32 %v4384, 1.0
  %v4386 = vrcp.pop %v4385
  %v4387 = vmul.f32 1.0, %v4386
  %vm4388 = vcmask 1024
  %4389 = vst.msk [vmem:[%s8] sm:$0x3] %vm4388, %v4387
  // Predicated region
  $region34: #{aadp_pallas.1} parent=0 // pred_check
    _
  $region35: #{aadp_pallas.1} parent=0 // pred_check_branch
    %4391 = sbr.rel (0) target = $region37
  $region36: #{aadp_pallas.1} parent=0 // pred_region
    _
  $region37: #{aadp_pallas.1} parent=0 // pred_fallthru
    _
  // Predicated region
  $region38: #{aadp_pallas.1} parent=0 // pred_check
    _
  $region39: #{aadp_pallas.1} parent=0 // pred_check_branch
    %4393 = sbr.rel (0) target = $region41
  $region40: #{aadp_pallas.1} parent=0 // pred_region
    _
  $region41: #{aadp_pallas.1} parent=0 // pred_fallthru
    _

</llo_original>
